<compile_context>
chip_gen: v7x
topology: tpu7x:2x2x1
jax: 0.10.0
libtpu: 0.0.40
codegen_flags: <defaults>
</compile_context>

<pallas_src>
import functools
import math

import jax
import jax.numpy as jnp
from jax.experimental import pallas as pl
from jax.experimental.pallas import tpu as pltpu

# ---- model hyper-parameters (small, consistent with the module signature) ----
D_MODEL = 32
NHEAD = 4
DIM_FF = 64
NUM_LAYERS = 2
DROPOUT = 0.1          # eval mode: dropout is identity
BATCH = 2
SEQ = 8
EPS = 1e-5             # torch.nn.LayerNorm default

_VEC_ROWS_PER_LAYER = 8   # bqkv, bo, ln1_g, ln1_b, ln2_g, ln2_b, b1, b2


def _layernorm(x, gamma, beta):
    """Single-pass LayerNorm: var = E[x^2] - mean^2 (biased, like PyTorch)."""
    mu = jnp.mean(x, axis=-1, keepdims=True)
    msq = jnp.mean(x * x, axis=-1, keepdims=True)
    var = msq - mu * mu
    return (x - mu) * jax.lax.rsqrt(var + EPS) * gamma + beta


def encoder_stack_kernel(x_ref, wqkv_ref, wo_ref, w1_ref, w2_ref, vec_ref,
                         o_ref, *, num_layers, nhead, batch, seq):
    """Whole encoder stack (num_layers post-norm layers + final LN), one call.

    x_ref    : (B*S, D)   f32  lane-dense activation slab
    wqkv_ref : (L, D, 3D) bf16 (1/sqrt(dh) pre-folded into Q columns)
    wo_ref   : (L, D, D)  bf16
    w1_ref   : (L, D, F)  bf16
    w2_ref   : (L, F, D)  bf16
    vec_ref  : (8L+2, 3D) f32  row-pack of every bias / LayerNorm vector
    o_ref    : (B*S, D)
    """
    x = x_ref[...].astype(jnp.float32)                 # residual path in f32
    BS, D = x.shape
    F = w1_ref.shape[-1]
    dh = D // nhead

    for li in range(num_layers):                       # static unroll over layers
        base = li * _VEC_ROWS_PER_LAYER
        bqkv = vec_ref[base + 0:base + 1, :3 * D]
        bo   = vec_ref[base + 1:base + 2, :D]
        g1   = vec_ref[base + 2:base + 3, :D]
        b1n  = vec_ref[base + 3:base + 4, :D]
        g2   = vec_ref[base + 4:base + 5, :D]
        b2n  = vec_ref[base + 5:base + 6, :D]
        b1   = vec_ref[base + 6:base + 7, :F]
        b2   = vec_ref[base + 7:base + 8, :D]

        wqkv = wqkv_ref[li]
        wo = wo_ref[li]
        w1 = w1_ref[li]
        w2 = w2_ref[li]

        # --- self attention: QKV projection with batch folded into M --------
        qkv = jnp.dot(x.astype(jnp.bfloat16), wqkv,
                      preferred_element_type=jnp.float32) + bqkv    # (BS, 3D) f32
        qkv16 = qkv.astype(jnp.bfloat16)

        def to_heads(col0):
            # Fold heads into the leading batch axis -> (nhead*B, S, dh),
            # head-major; only lane slices + leading-axis concat (no transposes).
            return jnp.concatenate(
                [qkv16[:, col0 + h * dh: col0 + (h + 1) * dh]
                 .reshape(batch, seq, dh) for h in range(nhead)], axis=0)

        qh = to_heads(0)          # 1/sqrt(dh) already folded into Wq / bq
        kh = to_heads(D)
        vh = to_heads(2 * D)

        # one batched contraction pair over all (head, batch) pairs
        s = jnp.einsum('bqd,bkd->bqk', qh, kh,
                       preferred_element_type=jnp.float32)          # (H*B, S, S)
        s = s - jnp.max(s, axis=-1, keepdims=True)
        p = jnp.exp(s)
        p = p * pl.reciprocal(jnp.sum(p, axis=-1, keepdims=True), approx=True)
        ctx = jnp.einsum('bqk,bkd->bqd', p.astype(jnp.bfloat16), vh,
                         preferred_element_type=jnp.float32)        # (H*B, S, dh)

        # heads back to lanes: (BS, D) with [h0 d0..  | h1 d0.. | ...] ordering
        attn = jnp.concatenate(
            [ctx[h * batch:(h + 1) * batch].reshape(batch * seq, dh)
             for h in range(nhead)], axis=-1)
        attn = jnp.dot(attn.astype(jnp.bfloat16), wo,
                       preferred_element_type=jnp.float32) + bo

        # residual + LayerNorm 1 (norm_first=False -> post-norm)
        y = _layernorm(x + attn, g1, b1n)

        # --- feed-forward (ReLU), batch folded into M ------------------------
        h1 = jnp.dot(y.astype(jnp.bfloat16), w1,
                     preferred_element_type=jnp.float32) + b1
        h1 = jnp.maximum(h1, 0.0)
        ff = jnp.dot(h1.astype(jnp.bfloat16), w2,
                     preferred_element_type=jnp.float32) + b2

        # residual + LayerNorm 2
        x = _layernorm(y + ff, g2, b2n)

    # final LayerNorm of the TransformerEncoder wrapper
    r0 = num_layers * _VEC_ROWS_PER_LAYER
    fg = vec_ref[r0 + 0:r0 + 1, :D]
    fb = vec_ref[r0 + 1:r0 + 2, :D]
    o_ref[...] = _layernorm(x, fg, fb).astype(o_ref.dtype)


# ---------------------- host-side one-time parameter packing ----------------
def pack_params(params, *, nhead=NHEAD):
    """Pack / precondition the torch-layout params for the fused kernel.

    - weight matrices stacked per kind over layers and cast to bf16 (native
      MXU input dtype); 1/sqrt(d_head) folded into the Q projection.
    - every (1, N) bias / LayerNorm vector packed into ONE (8L+2, 3D) f32
      array -> a single DMA instead of 18 tiny padded ones.
    """
    layers = params["layers"]
    d_model = layers[0][0].shape[0]
    dh = d_model // nhead
    scale = 1.0 / math.sqrt(dh)
    width = 3 * d_model

    def pad_row(v):
        v = jnp.asarray(v, jnp.float32).reshape(1, -1)
        return jnp.pad(v, ((0, 0), (0, width - v.shape[1])))

    wqkv_l, wo_l, w1_l, w2_l, rows = [], [], [], [], []
    for (wqkv, bqkv, wo, bo, g1, b1n, g2, b2n, w1, b1, w2, b2) in layers:
        wqkv = wqkv.at[:, :d_model].multiply(scale)   # fold 1/sqrt(dh) into Q
        bqkv = bqkv.at[:, :d_model].multiply(scale)
        wqkv_l.append(wqkv.astype(jnp.bfloat16))
        wo_l.append(wo.astype(jnp.bfloat16))
        w1_l.append(w1.astype(jnp.bfloat16))
        w2_l.append(w2.astype(jnp.bfloat16))
        for v in (bqkv, bo, g1, b1n, g2, b2n, b1, b2):
            rows.append(pad_row(v))
    rows.append(pad_row(params["final_gamma"]))
    rows.append(pad_row(params["final_beta"]))

    return {
        "wqkv": jnp.stack(wqkv_l),               # (L, D, 3D)  bf16
        "wo":   jnp.stack(wo_l),                 # (L, D, D)   bf16
        "w1":   jnp.stack(w1_l),                 # (L, D, F)   bf16
        "w2":   jnp.stack(w2_l),                 # (L, F, D)   bf16
        "vec":  jnp.concatenate(rows, axis=0),   # (8L+2, 3D)  f32
    }


def encoder_forward(src, packed, *, nhead=NHEAD):
    """src: (batch, seq_len, d_model) -> same shape, like Encoder.forward."""
    B, S, D = src.shape
    num_layers = packed["wqkv"].shape[0]
    kernel = functools.partial(encoder_stack_kernel,
                               num_layers=num_layers, nhead=nhead,
                               batch=B, seq=S)
    vmem = pl.BlockSpec(memory_space=pltpu.MemorySpace.VMEM)
    # Grid-less call: single invocation, 6 operands, everything VMEM-resident.
    # TODO(synk): for non-toy sizes add a parallel grid axis over B (v7x has
    # 2 TensorCores) and stream weights per layer once footprint nears 32 MiB.
    out2d = pl.pallas_call(
        kernel,
        out_shape=jax.ShapeDtypeStruct((B * S, D), src.dtype),
        in_specs=[vmem] * 6,
        out_specs=vmem,
    )(src.reshape(B * S, D), packed["wqkv"], packed["wo"], packed["w1"],
      packed["w2"], packed["vec"])
    return out2d.reshape(B, S, D)


# ---------------------- deterministic parameter init ------------------------
def init_params(key, d_model=D_MODEL, dim_ff=DIM_FF, num_layers=NUM_LAYERS):
    layers = []
    for li in range(num_layers):
        ks = jax.random.split(jax.random.fold_in(key, li), 5)
        wqkv = jax.random.normal(ks[0], (d_model, 3 * d_model), jnp.float32) * 0.05
        bqkv = jnp.zeros((1, 3 * d_model), jnp.float32)
        wo = jax.random.normal(ks[1], (d_model, d_model), jnp.float32) * 0.05
        bo = jnp.zeros((1, d_model), jnp.float32)
        ln1_g = jnp.ones((1, d_model), jnp.float32)
        ln1_b = jnp.zeros((1, d_model), jnp.float32)
        ln2_g = jnp.ones((1, d_model), jnp.float32)
        ln2_b = jnp.zeros((1, d_model), jnp.float32)
        w1 = jax.random.normal(ks[2], (d_model, dim_ff), jnp.float32) * 0.05
        b1 = jnp.zeros((1, dim_ff), jnp.float32)
        w2 = jax.random.normal(ks[3], (dim_ff, d_model), jnp.float32) * 0.05
        b2 = jnp.zeros((1, d_model), jnp.float32)
        layers.append((wqkv, bqkv, wo, bo, ln1_g, ln1_b, ln2_g, ln2_b,
                       w1, b1, w2, b2))
    return {
        "layers": layers,
        "final_gamma": jnp.ones((1, d_model), jnp.float32),
        "final_beta": jnp.zeros((1, d_model), jnp.float32),
    }


# ---------------------- pure-JAX f32 reference (for validation) -------------
def reference_forward(src, params):
    def ln(x, g, b):
        mu = jnp.mean(x, axis=-1, keepdims=True)
        var = jnp.mean((x - mu) ** 2, axis=-1, keepdims=True)
        return (x - mu) / jnp.sqrt(var + EPS) * g + b

    x = src
    for (wqkv, bqkv, wo, bo, g1, b1_, g2, b2_, w1, b1, w2, b2) in params["layers"]:
        B, S, D = x.shape
        dh = D // NHEAD
        qkv = x @ wqkv + bqkv
        q, k, v = qkv[..., :D], qkv[..., D:2 * D], qkv[..., 2 * D:]
        q = q.reshape(B, S, NHEAD, dh).transpose(0, 2, 1, 3)
        k = k.reshape(B, S, NHEAD, dh).transpose(0, 2, 1, 3)
        v = v.reshape(B, S, NHEAD, dh).transpose(0, 2, 1, 3)
        s = jnp.einsum("bhqd,bhkd->bhqk", q, k) / jnp.sqrt(dh)
        p = jax.nn.softmax(s, axis=-1)
        a = jnp.einsum("bhqk,bhkd->bhqd", p, v).transpose(0, 2, 1, 3).reshape(B, S, D)
        a = a @ wo + bo
        y = ln(x + a, g1, b1_)
        ff = jnp.maximum(y @ w1 + b1, 0.0) @ w2 + b2
        x = ln(y + ff, g2, b2_)
    return ln(x, params["final_gamma"], params["final_beta"])


if __name__ == "__main__":
    key = jax.random.PRNGKey(0)
    k_x, k_p = jax.random.split(key)
    src = jax.random.normal(k_x, (BATCH, SEQ, D_MODEL), jnp.float32)
    params = init_params(k_p)
    packed = pack_params(params)

    out = encoder_forward(src, packed)
    out = jax.block_until_ready(out)

    ref = reference_forward(src, params)
    assert out.shape == (BATCH, SEQ, D_MODEL)
    # Tolerance covers bf16 MXU inputs + EUP approximate-reciprocal softmax
    # normalization (all accumulation / LayerNorm / softmax math is f32).
    assert jnp.allclose(out, ref, rtol=2e-2, atol=2e-2), "mismatch vs JAX reference"

    # TODO(synk): dropout is treated as eval-mode identity (stochastic
    # training-time dropout intentionally not reproduced).
    print("KERNEL_OK")
</pallas_src>

<mosaic_0001>
module attributes {stable_mosaic.version = 11 : i64} {
  func.func @encoder_stack_kernel(%arg0: memref<16x32xf32, #tpu.memory_space<vmem>>, %arg1: memref<2x32x96xbf16, #tpu.memory_space<vmem>>, %arg2: memref<2x32x32xbf16, #tpu.memory_space<vmem>>, %arg3: memref<2x32x64xbf16, #tpu.memory_space<vmem>>, %arg4: memref<2x64x32xbf16, #tpu.memory_space<vmem>>, %arg5: memref<18x96xf32, #tpu.memory_space<vmem>>, %arg6: memref<16x32xf32, #tpu.memory_space<vmem>>) attributes {dimension_semantics = [], scalar_prefetch = 0 : i64, scratch_operands = 0 : i64, tpu.core_type = #tpu.core_type<tc>} {
    %c0 = arith.constant 0 : index
    %c0_0 = arith.constant 0 : index
    %0 = vector.load %arg0[%c0, %c0_0] : memref<16x32xf32, #tpu.memory_space<vmem>>, vector<16x32xf32>
    %c0_1 = arith.constant 0 : index
    %c0_2 = arith.constant 0 : index
    %1 = vector.load %arg5[%c0_1, %c0_2] : memref<18x96xf32, #tpu.memory_space<vmem>>, vector<1x96xf32>
    %c1 = arith.constant 1 : index
    %c0_3 = arith.constant 0 : index
    %2 = vector.load %arg5[%c1, %c0_3] : memref<18x96xf32, #tpu.memory_space<vmem>>, vector<1x32xf32>
    %c2 = arith.constant 2 : index
    %c0_4 = arith.constant 0 : index
    %3 = vector.load %arg5[%c2, %c0_4] : memref<18x96xf32, #tpu.memory_space<vmem>>, vector<1x32xf32>
    %c3 = arith.constant 3 : index
    %c0_5 = arith.constant 0 : index
    %4 = vector.load %arg5[%c3, %c0_5] : memref<18x96xf32, #tpu.memory_space<vmem>>, vector<1x32xf32>
    %c4 = arith.constant 4 : index
    %c0_6 = arith.constant 0 : index
    %5 = vector.load %arg5[%c4, %c0_6] : memref<18x96xf32, #tpu.memory_space<vmem>>, vector<1x32xf32>
    %c5 = arith.constant 5 : index
    %c0_7 = arith.constant 0 : index
    %6 = vector.load %arg5[%c5, %c0_7] : memref<18x96xf32, #tpu.memory_space<vmem>>, vector<1x32xf32>
    %c6 = arith.constant 6 : index
    %c0_8 = arith.constant 0 : index
    %7 = vector.load %arg5[%c6, %c0_8] : memref<18x96xf32, #tpu.memory_space<vmem>>, vector<1x64xf32>
    %c7 = arith.constant 7 : index
    %c0_9 = arith.constant 0 : index
    %8 = vector.load %arg5[%c7, %c0_9] : memref<18x96xf32, #tpu.memory_space<vmem>>, vector<1x32xf32>
    %c0_10 = arith.constant 0 : index
    %c0_11 = arith.constant 0 : index
    %c0_12 = arith.constant 0 : index
    %9 = vector.load %arg1[%c0_10, %c0_11, %c0_12] : memref<2x32x96xbf16, #tpu.memory_space<vmem>>, vector<1x32x96xbf16>
    %10 = vector.shape_cast %9 : vector<1x32x96xbf16> to vector<32x96xbf16>
    %c0_13 = arith.constant 0 : index
    %c0_14 = arith.constant 0 : index
    %c0_15 = arith.constant 0 : index
    %11 = vector.load %arg2[%c0_13, %c0_14, %c0_15] : memref<2x32x32xbf16, #tpu.memory_space<vmem>>, vector<1x32x32xbf16>
    %12 = vector.shape_cast %11 : vector<1x32x32xbf16> to vector<32x32xbf16>
    %c0_16 = arith.constant 0 : index
    %c0_17 = arith.constant 0 : index
    %c0_18 = arith.constant 0 : index
    %13 = vector.load %arg3[%c0_16, %c0_17, %c0_18] : memref<2x32x64xbf16, #tpu.memory_space<vmem>>, vector<1x32x64xbf16>
    %14 = vector.shape_cast %13 : vector<1x32x64xbf16> to vector<32x64xbf16>
    %c0_19 = arith.constant 0 : index
    %c0_20 = arith.constant 0 : index
    %c0_21 = arith.constant 0 : index
    %15 = vector.load %arg4[%c0_19, %c0_20, %c0_21] : memref<2x64x32xbf16, #tpu.memory_space<vmem>>, vector<1x64x32xbf16>
    %16 = vector.shape_cast %15 : vector<1x64x32xbf16> to vector<64x32xbf16>
    %17 = arith.truncf %0 : vector<16x32xf32> to vector<16x32xbf16>
    %cst = arith.constant dense<0.000000e+00> : vector<16x96xf32>
    %18 = tpu.matmul %17, %10, %cst {dimension_numbers = #tpu.dot_dimension_numbers<[1], [0], [0], [1], [0, 0, 1, 1], [], []>} : vector<16x32xbf16>, vector<32x96xbf16>, vector<16x96xf32> -> vector<16x96xf32>
    %19 = vector.broadcast %1 : vector<1x96xf32> to vector<16x96xf32>
    %20 = arith.addf %18, %19 : vector<16x96xf32>
    %21 = arith.truncf %20 : vector<16x96xf32> to vector<16x96xbf16>
    %22 = vector.extract_strided_slice %21 {offsets = [0, 0], sizes = [16, 8], strides = [1, 1]} : vector<16x96xbf16> to vector<16x8xbf16>
    %23 = vector.shape_cast %22 : vector<16x8xbf16> to vector<2x8x8xbf16>
    %24 = vector.extract_strided_slice %21 {offsets = [0, 8], sizes = [16, 8], strides = [1, 1]} : vector<16x96xbf16> to vector<16x8xbf16>
    %25 = vector.shape_cast %24 : vector<16x8xbf16> to vector<2x8x8xbf16>
    %26 = vector.extract_strided_slice %21 {offsets = [0, 16], sizes = [16, 8], strides = [1, 1]} : vector<16x96xbf16> to vector<16x8xbf16>
    %27 = vector.shape_cast %26 : vector<16x8xbf16> to vector<2x8x8xbf16>
    %28 = vector.extract_strided_slice %21 {offsets = [0, 24], sizes = [16, 8], strides = [1, 1]} : vector<16x96xbf16> to vector<16x8xbf16>
    %29 = vector.shape_cast %28 : vector<16x8xbf16> to vector<2x8x8xbf16>
    %30 = tpu.concatenate %23, %25, %27, %29 in 0 : vector<2x8x8xbf16>, vector<2x8x8xbf16>, vector<2x8x8xbf16>, vector<2x8x8xbf16> -> vector<8x8x8xbf16>
    %31 = vector.extract_strided_slice %21 {offsets = [0, 32], sizes = [16, 8], strides = [1, 1]} : vector<16x96xbf16> to vector<16x8xbf16>
    %32 = vector.shape_cast %31 : vector<16x8xbf16> to vector<2x8x8xbf16>
    %33 = vector.extract_strided_slice %21 {offsets = [0, 40], sizes = [16, 8], strides = [1, 1]} : vector<16x96xbf16> to vector<16x8xbf16>
    %34 = vector.shape_cast %33 : vector<16x8xbf16> to vector<2x8x8xbf16>
    %35 = vector.extract_strided_slice %21 {offsets = [0, 48], sizes = [16, 8], strides = [1, 1]} : vector<16x96xbf16> to vector<16x8xbf16>
    %36 = vector.shape_cast %35 : vector<16x8xbf16> to vector<2x8x8xbf16>
    %37 = vector.extract_strided_slice %21 {offsets = [0, 56], sizes = [16, 8], strides = [1, 1]} : vector<16x96xbf16> to vector<16x8xbf16>
    %38 = vector.shape_cast %37 : vector<16x8xbf16> to vector<2x8x8xbf16>
    %39 = tpu.concatenate %32, %34, %36, %38 in 0 : vector<2x8x8xbf16>, vector<2x8x8xbf16>, vector<2x8x8xbf16>, vector<2x8x8xbf16> -> vector<8x8x8xbf16>
    %40 = vector.extract_strided_slice %21 {offsets = [0, 64], sizes = [16, 8], strides = [1, 1]} : vector<16x96xbf16> to vector<16x8xbf16>
    %41 = vector.shape_cast %40 : vector<16x8xbf16> to vector<2x8x8xbf16>
    %42 = vector.extract_strided_slice %21 {offsets = [0, 72], sizes = [16, 8], strides = [1, 1]} : vector<16x96xbf16> to vector<16x8xbf16>
    %43 = vector.shape_cast %42 : vector<16x8xbf16> to vector<2x8x8xbf16>
    %44 = vector.extract_strided_slice %21 {offsets = [0, 80], sizes = [16, 8], strides = [1, 1]} : vector<16x96xbf16> to vector<16x8xbf16>
    %45 = vector.shape_cast %44 : vector<16x8xbf16> to vector<2x8x8xbf16>
    %46 = vector.extract_strided_slice %21 {offsets = [0, 88], sizes = [16, 8], strides = [1, 1]} : vector<16x96xbf16> to vector<16x8xbf16>
    %47 = vector.shape_cast %46 : vector<16x8xbf16> to vector<2x8x8xbf16>
    %48 = tpu.concatenate %41, %43, %45, %47 in 0 : vector<2x8x8xbf16>, vector<2x8x8xbf16>, vector<2x8x8xbf16>, vector<2x8x8xbf16> -> vector<8x8x8xbf16>
    "tpu.trace_start"() <{level = 10 : i32, message = "bqd,bkd->bqk"}> : () -> ()
    %cst_22 = arith.constant dense<0.000000e+00> : vector<8x8x8xf32>
    %49 = tpu.matmul %30, %39, %cst_22 {dimension_numbers = #tpu.dot_dimension_numbers<[2], [2], [1], [1], [0, 0, 0, 1, 1, 1], [0], [0]>} : vector<8x8x8xbf16>, vector<8x8x8xbf16>, vector<8x8x8xf32> -> vector<8x8x8xf32>
    "tpu.trace_stop"() : () -> ()
    %cst_23 = arith.constant dense<0xFF800000> : vector<8x8xf32>
    %50 = vector.multi_reduction <maximumf>, %49, %cst_23 [2] : vector<8x8x8xf32> to vector<8x8xf32>
    %51 = vector.shape_cast %50 : vector<8x8xf32> to vector<8x8x1xf32>
    %52 = vector.broadcast %51 : vector<8x8x1xf32> to vector<8x8x8xf32>
    %53 = arith.subf %49, %52 : vector<8x8x8xf32>
    %54 = math.exp %53 : vector<8x8x8xf32>
    %cst_24 = arith.constant dense<0.000000e+00> : vector<8x8xf32>
    %55 = vector.multi_reduction <add>, %54, %cst_24 [2] : vector<8x8x8xf32> to vector<8x8xf32>
    %56 = vector.shape_cast %55 : vector<8x8xf32> to vector<8x8x1xf32>
    %57 = tpu.reciprocal %56 {approx = true} : vector<8x8x1xf32> -> vector<8x8x1xf32>
    %58 = vector.broadcast %57 : vector<8x8x1xf32> to vector<8x8x8xf32>
    %59 = arith.mulf %54, %58 : vector<8x8x8xf32>
    %60 = arith.truncf %59 : vector<8x8x8xf32> to vector<8x8x8xbf16>
    "tpu.trace_start"() <{level = 10 : i32, message = "bqk,bkd->bqd"}> : () -> ()
    %cst_25 = arith.constant dense<0.000000e+00> : vector<8x8x8xf32>
    %61 = tpu.matmul %60, %48, %cst_25 {dimension_numbers = #tpu.dot_dimension_numbers<[2], [1], [1], [2], [0, 0, 0, 1, 1, 2], [0], [0]>} : vector<8x8x8xbf16>, vector<8x8x8xbf16>, vector<8x8x8xf32> -> vector<8x8x8xf32>
    "tpu.trace_stop"() : () -> ()
    %62 = vector.extract_strided_slice %61 {offsets = [0, 0, 0], sizes = [2, 8, 8], strides = [1, 1, 1]} : vector<8x8x8xf32> to vector<2x8x8xf32>
    %63 = vector.shape_cast %62 : vector<2x8x8xf32> to vector<16x8xf32>
    %64 = vector.extract_strided_slice %61 {offsets = [2, 0, 0], sizes = [2, 8, 8], strides = [1, 1, 1]} : vector<8x8x8xf32> to vector<2x8x8xf32>
    %65 = vector.shape_cast %64 : vector<2x8x8xf32> to vector<16x8xf32>
    %66 = vector.extract_strided_slice %61 {offsets = [4, 0, 0], sizes = [2, 8, 8], strides = [1, 1, 1]} : vector<8x8x8xf32> to vector<2x8x8xf32>
    %67 = vector.shape_cast %66 : vector<2x8x8xf32> to vector<16x8xf32>
    %68 = vector.extract_strided_slice %61 {offsets = [6, 0, 0], sizes = [2, 8, 8], strides = [1, 1, 1]} : vector<8x8x8xf32> to vector<2x8x8xf32>
    %69 = vector.shape_cast %68 : vector<2x8x8xf32> to vector<16x8xf32>
    %70 = tpu.concatenate %63, %65, %67, %69 in 1 : vector<16x8xf32>, vector<16x8xf32>, vector<16x8xf32>, vector<16x8xf32> -> vector<16x32xf32>
    %71 = arith.truncf %70 : vector<16x32xf32> to vector<16x32xbf16>
    %cst_26 = arith.constant dense<0.000000e+00> : vector<16x32xf32>
    %72 = tpu.matmul %71, %12, %cst_26 {dimension_numbers = #tpu.dot_dimension_numbers<[1], [0], [0], [1], [0, 0, 1, 1], [], []>} : vector<16x32xbf16>, vector<32x32xbf16>, vector<16x32xf32> -> vector<16x32xf32>
    %73 = vector.broadcast %2 : vector<1x32xf32> to vector<16x32xf32>
    %74 = arith.addf %72, %73 : vector<16x32xf32>
    %75 = arith.addf %0, %74 : vector<16x32xf32>
    %cst_27 = arith.constant dense<0.000000e+00> : vector<16xf32>
    %76 = vector.multi_reduction <add>, %75, %cst_27 [1] : vector<16x32xf32> to vector<16xf32>
    %77 = vector.shape_cast %76 : vector<16xf32> to vector<16x1xf32>
    %cst_28 = arith.constant 3.200000e+01 : f32
    %78 = vector.broadcast %cst_28 : f32 to vector<16x1xf32>
    %79 = arith.divf %77, %78 : vector<16x1xf32>
    %80 = arith.mulf %75, %75 : vector<16x32xf32>
    %cst_29 = arith.constant dense<0.000000e+00> : vector<16xf32>
    %81 = vector.multi_reduction <add>, %80, %cst_29 [1] : vector<16x32xf32> to vector<16xf32>
    %82 = vector.shape_cast %81 : vector<16xf32> to vector<16x1xf32>
    %cst_30 = arith.constant 3.200000e+01 : f32
    %83 = vector.broadcast %cst_30 : f32 to vector<16x1xf32>
    %84 = arith.divf %82, %83 : vector<16x1xf32>
    %85 = arith.mulf %79, %79 : vector<16x1xf32>
    %86 = arith.subf %84, %85 : vector<16x1xf32>
    %87 = vector.broadcast %79 : vector<16x1xf32> to vector<16x32xf32>
    %88 = arith.subf %75, %87 : vector<16x32xf32>
    %cst_31 = arith.constant 9.99999974E-6 : f32
    %89 = vector.broadcast %cst_31 : f32 to vector<16x1xf32>
    %90 = arith.addf %86, %89 : vector<16x1xf32>
    %91 = math.rsqrt %90 : vector<16x1xf32>
    %92 = vector.broadcast %91 : vector<16x1xf32> to vector<16x32xf32>
    %93 = arith.mulf %88, %92 : vector<16x32xf32>
    %94 = vector.broadcast %3 : vector<1x32xf32> to vector<16x32xf32>
    %95 = arith.mulf %93, %94 : vector<16x32xf32>
    %96 = vector.broadcast %4 : vector<1x32xf32> to vector<16x32xf32>
    %97 = arith.addf %95, %96 : vector<16x32xf32>
    %98 = arith.truncf %97 : vector<16x32xf32> to vector<16x32xbf16>
    %cst_32 = arith.constant dense<0.000000e+00> : vector<16x64xf32>
    %99 = tpu.matmul %98, %14, %cst_32 {dimension_numbers = #tpu.dot_dimension_numbers<[1], [0], [0], [1], [0, 0, 1, 1], [], []>} : vector<16x32xbf16>, vector<32x64xbf16>, vector<16x64xf32> -> vector<16x64xf32>
    %100 = vector.broadcast %7 : vector<1x64xf32> to vector<16x64xf32>
    %101 = arith.addf %99, %100 : vector<16x64xf32>
    %cst_33 = arith.constant 0.000000e+00 : f32
    %102 = vector.broadcast %cst_33 : f32 to vector<16x64xf32>
    %103 = arith.maximumf %101, %102 : vector<16x64xf32>
    %104 = arith.truncf %103 : vector<16x64xf32> to vector<16x64xbf16>
    %cst_34 = arith.constant dense<0.000000e+00> : vector<16x32xf32>
    %105 = tpu.matmul %104, %16, %cst_34 {dimension_numbers = #tpu.dot_dimension_numbers<[1], [0], [0], [1], [0, 0, 1, 1], [], []>} : vector<16x64xbf16>, vector<64x32xbf16>, vector<16x32xf32> -> vector<16x32xf32>
    %106 = vector.broadcast %8 : vector<1x32xf32> to vector<16x32xf32>
    %107 = arith.addf %105, %106 : vector<16x32xf32>
    %108 = arith.addf %97, %107 : vector<16x32xf32>
    %cst_35 = arith.constant dense<0.000000e+00> : vector<16xf32>
    %109 = vector.multi_reduction <add>, %108, %cst_35 [1] : vector<16x32xf32> to vector<16xf32>
    %110 = vector.shape_cast %109 : vector<16xf32> to vector<16x1xf32>
    %cst_36 = arith.constant 3.200000e+01 : f32
    %111 = vector.broadcast %cst_36 : f32 to vector<16x1xf32>
    %112 = arith.divf %110, %111 : vector<16x1xf32>
    %113 = arith.mulf %108, %108 : vector<16x32xf32>
    %cst_37 = arith.constant dense<0.000000e+00> : vector<16xf32>
    %114 = vector.multi_reduction <add>, %113, %cst_37 [1] : vector<16x32xf32> to vector<16xf32>
    %115 = vector.shape_cast %114 : vector<16xf32> to vector<16x1xf32>
    %cst_38 = arith.constant 3.200000e+01 : f32
    %116 = vector.broadcast %cst_38 : f32 to vector<16x1xf32>
    %117 = arith.divf %115, %116 : vector<16x1xf32>
    %118 = arith.mulf %112, %112 : vector<16x1xf32>
    %119 = arith.subf %117, %118 : vector<16x1xf32>
    %120 = vector.broadcast %112 : vector<16x1xf32> to vector<16x32xf32>
    %121 = arith.subf %108, %120 : vector<16x32xf32>
    %cst_39 = arith.constant 9.99999974E-6 : f32
    %122 = vector.broadcast %cst_39 : f32 to vector<16x1xf32>
    %123 = arith.addf %119, %122 : vector<16x1xf32>
    %124 = math.rsqrt %123 : vector<16x1xf32>
    %125 = vector.broadcast %124 : vector<16x1xf32> to vector<16x32xf32>
    %126 = arith.mulf %121, %125 : vector<16x32xf32>
    %127 = vector.broadcast %5 : vector<1x32xf32> to vector<16x32xf32>
    %128 = arith.mulf %126, %127 : vector<16x32xf32>
    %129 = vector.broadcast %6 : vector<1x32xf32> to vector<16x32xf32>
    %130 = arith.addf %128, %129 : vector<16x32xf32>
    %c8 = arith.constant 8 : index
    %c0_40 = arith.constant 0 : index
    %131 = vector.load %arg5[%c8, %c0_40] : memref<18x96xf32, #tpu.memory_space<vmem>>, vector<1x96xf32>
    %c9 = arith.constant 9 : index
    %c0_41 = arith.constant 0 : index
    %132 = vector.load %arg5[%c9, %c0_41] : memref<18x96xf32, #tpu.memory_space<vmem>>, vector<1x32xf32>
    %c10 = arith.constant 10 : index
    %c0_42 = arith.constant 0 : index
    %133 = vector.load %arg5[%c10, %c0_42] : memref<18x96xf32, #tpu.memory_space<vmem>>, vector<1x32xf32>
    %c11 = arith.constant 11 : index
    %c0_43 = arith.constant 0 : index
    %134 = vector.load %arg5[%c11, %c0_43] : memref<18x96xf32, #tpu.memory_space<vmem>>, vector<1x32xf32>
    %c12 = arith.constant 12 : index
    %c0_44 = arith.constant 0 : index
    %135 = vector.load %arg5[%c12, %c0_44] : memref<18x96xf32, #tpu.memory_space<vmem>>, vector<1x32xf32>
    %c13 = arith.constant 13 : index
    %c0_45 = arith.constant 0 : index
    %136 = vector.load %arg5[%c13, %c0_45] : memref<18x96xf32, #tpu.memory_space<vmem>>, vector<1x32xf32>
    %c14 = arith.constant 14 : index
    %c0_46 = arith.constant 0 : index
    %137 = vector.load %arg5[%c14, %c0_46] : memref<18x96xf32, #tpu.memory_space<vmem>>, vector<1x64xf32>
    %c15 = arith.constant 15 : index
    %c0_47 = arith.constant 0 : index
    %138 = vector.load %arg5[%c15, %c0_47] : memref<18x96xf32, #tpu.memory_space<vmem>>, vector<1x32xf32>
    %c1_48 = arith.constant 1 : index
    %c0_49 = arith.constant 0 : index
    %c0_50 = arith.constant 0 : index
    %139 = vector.load %arg1[%c1_48, %c0_49, %c0_50] : memref<2x32x96xbf16, #tpu.memory_space<vmem>>, vector<1x32x96xbf16>
    %140 = vector.shape_cast %139 : vector<1x32x96xbf16> to vector<32x96xbf16>
    %c1_51 = arith.constant 1 : index
    %c0_52 = arith.constant 0 : index
    %c0_53 = arith.constant 0 : index
    %141 = vector.load %arg2[%c1_51, %c0_52, %c0_53] : memref<2x32x32xbf16, #tpu.memory_space<vmem>>, vector<1x32x32xbf16>
    %142 = vector.shape_cast %141 : vector<1x32x32xbf16> to vector<32x32xbf16>
    %c1_54 = arith.constant 1 : index
    %c0_55 = arith.constant 0 : index
    %c0_56 = arith.constant 0 : index
    %143 = vector.load %arg3[%c1_54, %c0_55, %c0_56] : memref<2x32x64xbf16, #tpu.memory_space<vmem>>, vector<1x32x64xbf16>
    %144 = vector.shape_cast %143 : vector<1x32x64xbf16> to vector<32x64xbf16>
    %c1_57 = arith.constant 1 : index
    %c0_58 = arith.constant 0 : index
    %c0_59 = arith.constant 0 : index
    %145 = vector.load %arg4[%c1_57, %c0_58, %c0_59] : memref<2x64x32xbf16, #tpu.memory_space<vmem>>, vector<1x64x32xbf16>
    %146 = vector.shape_cast %145 : vector<1x64x32xbf16> to vector<64x32xbf16>
    %147 = arith.truncf %130 : vector<16x32xf32> to vector<16x32xbf16>
    %cst_60 = arith.constant dense<0.000000e+00> : vector<16x96xf32>
    %148 = tpu.matmul %147, %140, %cst_60 {dimension_numbers = #tpu.dot_dimension_numbers<[1], [0], [0], [1], [0, 0, 1, 1], [], []>} : vector<16x32xbf16>, vector<32x96xbf16>, vector<16x96xf32> -> vector<16x96xf32>
    %149 = vector.broadcast %131 : vector<1x96xf32> to vector<16x96xf32>
    %150 = arith.addf %148, %149 : vector<16x96xf32>
    %151 = arith.truncf %150 : vector<16x96xf32> to vector<16x96xbf16>
    %152 = vector.extract_strided_slice %151 {offsets = [0, 0], sizes = [16, 8], strides = [1, 1]} : vector<16x96xbf16> to vector<16x8xbf16>
    %153 = vector.shape_cast %152 : vector<16x8xbf16> to vector<2x8x8xbf16>
    %154 = vector.extract_strided_slice %151 {offsets = [0, 8], sizes = [16, 8], strides = [1, 1]} : vector<16x96xbf16> to vector<16x8xbf16>
    %155 = vector.shape_cast %154 : vector<16x8xbf16> to vector<2x8x8xbf16>
    %156 = vector.extract_strided_slice %151 {offsets = [0, 16], sizes = [16, 8], strides = [1, 1]} : vector<16x96xbf16> to vector<16x8xbf16>
    %157 = vector.shape_cast %156 : vector<16x8xbf16> to vector<2x8x8xbf16>
    %158 = vector.extract_strided_slice %151 {offsets = [0, 24], sizes = [16, 8], strides = [1, 1]} : vector<16x96xbf16> to vector<16x8xbf16>
    %159 = vector.shape_cast %158 : vector<16x8xbf16> to vector<2x8x8xbf16>
    %160 = tpu.concatenate %153, %155, %157, %159 in 0 : vector<2x8x8xbf16>, vector<2x8x8xbf16>, vector<2x8x8xbf16>, vector<2x8x8xbf16> -> vector<8x8x8xbf16>
    %161 = vector.extract_strided_slice %151 {offsets = [0, 32], sizes = [16, 8], strides = [1, 1]} : vector<16x96xbf16> to vector<16x8xbf16>
    %162 = vector.shape_cast %161 : vector<16x8xbf16> to vector<2x8x8xbf16>
    %163 = vector.extract_strided_slice %151 {offsets = [0, 40], sizes = [16, 8], strides = [1, 1]} : vector<16x96xbf16> to vector<16x8xbf16>
    %164 = vector.shape_cast %163 : vector<16x8xbf16> to vector<2x8x8xbf16>
    %165 = vector.extract_strided_slice %151 {offsets = [0, 48], sizes = [16, 8], strides = [1, 1]} : vector<16x96xbf16> to vector<16x8xbf16>
    %166 = vector.shape_cast %165 : vector<16x8xbf16> to vector<2x8x8xbf16>
    %167 = vector.extract_strided_slice %151 {offsets = [0, 56], sizes = [16, 8], strides = [1, 1]} : vector<16x96xbf16> to vector<16x8xbf16>
    %168 = vector.shape_cast %167 : vector<16x8xbf16> to vector<2x8x8xbf16>
    %169 = tpu.concatenate %162, %164, %166, %168 in 0 : vector<2x8x8xbf16>, vector<2x8x8xbf16>, vector<2x8x8xbf16>, vector<2x8x8xbf16> -> vector<8x8x8xbf16>
    %170 = vector.extract_strided_slice %151 {offsets = [0, 64], sizes = [16, 8], strides = [1, 1]} : vector<16x96xbf16> to vector<16x8xbf16>
    %171 = vector.shape_cast %170 : vector<16x8xbf16> to vector<2x8x8xbf16>
    %172 = vector.extract_strided_slice %151 {offsets = [0, 72], sizes = [16, 8], strides = [1, 1]} : vector<16x96xbf16> to vector<16x8xbf16>
    %173 = vector.shape_cast %172 : vector<16x8xbf16> to vector<2x8x8xbf16>
    %174 = vector.extract_strided_slice %151 {offsets = [0, 80], sizes = [16, 8], strides = [1, 1]} : vector<16x96xbf16> to vector<16x8xbf16>
    %175 = vector.shape_cast %174 : vector<16x8xbf16> to vector<2x8x8xbf16>
    %176 = vector.extract_strided_slice %151 {offsets = [0, 88], sizes = [16, 8], strides = [1, 1]} : vector<16x96xbf16> to vector<16x8xbf16>
    %177 = vector.shape_cast %176 : vector<16x8xbf16> to vector<2x8x8xbf16>
    %178 = tpu.concatenate %171, %173, %175, %177 in 0 : vector<2x8x8xbf16>, vector<2x8x8xbf16>, vector<2x8x8xbf16>, vector<2x8x8xbf16> -> vector<8x8x8xbf16>
    "tpu.trace_start"() <{level = 10 : i32, message = "bqd,bkd->bqk"}> : () -> ()
    %cst_61 = arith.constant dense<0.000000e+00> : vector<8x8x8xf32>
    %179 = tpu.matmul %160, %169, %cst_61 {dimension_numbers = #tpu.dot_dimension_numbers<[2], [2], [1], [1], [0, 0, 0, 1, 1, 1], [0], [0]>} : vector<8x8x8xbf16>, vector<8x8x8xbf16>, vector<8x8x8xf32> -> vector<8x8x8xf32>
    "tpu.trace_stop"() : () -> ()
    %cst_62 = arith.constant dense<0xFF800000> : vector<8x8xf32>
    %180 = vector.multi_reduction <maximumf>, %179, %cst_62 [2] : vector<8x8x8xf32> to vector<8x8xf32>
    %181 = vector.shape_cast %180 : vector<8x8xf32> to vector<8x8x1xf32>
    %182 = vector.broadcast %181 : vector<8x8x1xf32> to vector<8x8x8xf32>
    %183 = arith.subf %179, %182 : vector<8x8x8xf32>
    %184 = math.exp %183 : vector<8x8x8xf32>
    %cst_63 = arith.constant dense<0.000000e+00> : vector<8x8xf32>
    %185 = vector.multi_reduction <add>, %184, %cst_63 [2] : vector<8x8x8xf32> to vector<8x8xf32>
    %186 = vector.shape_cast %185 : vector<8x8xf32> to vector<8x8x1xf32>
    %187 = tpu.reciprocal %186 {approx = true} : vector<8x8x1xf32> -> vector<8x8x1xf32>
    %188 = vector.broadcast %187 : vector<8x8x1xf32> to vector<8x8x8xf32>
    %189 = arith.mulf %184, %188 : vector<8x8x8xf32>
    %190 = arith.truncf %189 : vector<8x8x8xf32> to vector<8x8x8xbf16>
    "tpu.trace_start"() <{level = 10 : i32, message = "bqk,bkd->bqd"}> : () -> ()
    %cst_64 = arith.constant dense<0.000000e+00> : vector<8x8x8xf32>
    %191 = tpu.matmul %190, %178, %cst_64 {dimension_numbers = #tpu.dot_dimension_numbers<[2], [1], [1], [2], [0, 0, 0, 1, 1, 2], [0], [0]>} : vector<8x8x8xbf16>, vector<8x8x8xbf16>, vector<8x8x8xf32> -> vector<8x8x8xf32>
    "tpu.trace_stop"() : () -> ()
    %192 = vector.extract_strided_slice %191 {offsets = [0, 0, 0], sizes = [2, 8, 8], strides = [1, 1, 1]} : vector<8x8x8xf32> to vector<2x8x8xf32>
    %193 = vector.shape_cast %192 : vector<2x8x8xf32> to vector<16x8xf32>
    %194 = vector.extract_strided_slice %191 {offsets = [2, 0, 0], sizes = [2, 8, 8], strides = [1, 1, 1]} : vector<8x8x8xf32> to vector<2x8x8xf32>
    %195 = vector.shape_cast %194 : vector<2x8x8xf32> to vector<16x8xf32>
    %196 = vector.extract_strided_slice %191 {offsets = [4, 0, 0], sizes = [2, 8, 8], strides = [1, 1, 1]} : vector<8x8x8xf32> to vector<2x8x8xf32>
    %197 = vector.shape_cast %196 : vector<2x8x8xf32> to vector<16x8xf32>
    %198 = vector.extract_strided_slice %191 {offsets = [6, 0, 0], sizes = [2, 8, 8], strides = [1, 1, 1]} : vector<8x8x8xf32> to vector<2x8x8xf32>
    %199 = vector.shape_cast %198 : vector<2x8x8xf32> to vector<16x8xf32>
    %200 = tpu.concatenate %193, %195, %197, %199 in 1 : vector<16x8xf32>, vector<16x8xf32>, vector<16x8xf32>, vector<16x8xf32> -> vector<16x32xf32>
    %201 = arith.truncf %200 : vector<16x32xf32> to vector<16x32xbf16>
    %cst_65 = arith.constant dense<0.000000e+00> : vector<16x32xf32>
    %202 = tpu.matmul %201, %142, %cst_65 {dimension_numbers = #tpu.dot_dimension_numbers<[1], [0], [0], [1], [0, 0, 1, 1], [], []>} : vector<16x32xbf16>, vector<32x32xbf16>, vector<16x32xf32> -> vector<16x32xf32>
    %203 = vector.broadcast %132 : vector<1x32xf32> to vector<16x32xf32>
    %204 = arith.addf %202, %203 : vector<16x32xf32>
    %205 = arith.addf %130, %204 : vector<16x32xf32>
    %cst_66 = arith.constant dense<0.000000e+00> : vector<16xf32>
    %206 = vector.multi_reduction <add>, %205, %cst_66 [1] : vector<16x32xf32> to vector<16xf32>
    %207 = vector.shape_cast %206 : vector<16xf32> to vector<16x1xf32>
    %cst_67 = arith.constant 3.200000e+01 : f32
    %208 = vector.broadcast %cst_67 : f32 to vector<16x1xf32>
    %209 = arith.divf %207, %208 : vector<16x1xf32>
    %210 = arith.mulf %205, %205 : vector<16x32xf32>
    %cst_68 = arith.constant dense<0.000000e+00> : vector<16xf32>
    %211 = vector.multi_reduction <add>, %210, %cst_68 [1] : vector<16x32xf32> to vector<16xf32>
    %212 = vector.shape_cast %211 : vector<16xf32> to vector<16x1xf32>
    %cst_69 = arith.constant 3.200000e+01 : f32
    %213 = vector.broadcast %cst_69 : f32 to vector<16x1xf32>
    %214 = arith.divf %212, %213 : vector<16x1xf32>
    %215 = arith.mulf %209, %209 : vector<16x1xf32>
    %216 = arith.subf %214, %215 : vector<16x1xf32>
    %217 = vector.broadcast %209 : vector<16x1xf32> to vector<16x32xf32>
    %218 = arith.subf %205, %217 : vector<16x32xf32>
    %cst_70 = arith.constant 9.99999974E-6 : f32
    %219 = vector.broadcast %cst_70 : f32 to vector<16x1xf32>
    %220 = arith.addf %216, %219 : vector<16x1xf32>
    %221 = math.rsqrt %220 : vector<16x1xf32>
    %222 = vector.broadcast %221 : vector<16x1xf32> to vector<16x32xf32>
    %223 = arith.mulf %218, %222 : vector<16x32xf32>
    %224 = vector.broadcast %133 : vector<1x32xf32> to vector<16x32xf32>
    %225 = arith.mulf %223, %224 : vector<16x32xf32>
    %226 = vector.broadcast %134 : vector<1x32xf32> to vector<16x32xf32>
    %227 = arith.addf %225, %226 : vector<16x32xf32>
    %228 = arith.truncf %227 : vector<16x32xf32> to vector<16x32xbf16>
    %cst_71 = arith.constant dense<0.000000e+00> : vector<16x64xf32>
    %229 = tpu.matmul %228, %144, %cst_71 {dimension_numbers = #tpu.dot_dimension_numbers<[1], [0], [0], [1], [0, 0, 1, 1], [], []>} : vector<16x32xbf16>, vector<32x64xbf16>, vector<16x64xf32> -> vector<16x64xf32>
    %230 = vector.broadcast %137 : vector<1x64xf32> to vector<16x64xf32>
    %231 = arith.addf %229, %230 : vector<16x64xf32>
    %cst_72 = arith.constant 0.000000e+00 : f32
    %232 = vector.broadcast %cst_72 : f32 to vector<16x64xf32>
    %233 = arith.maximumf %231, %232 : vector<16x64xf32>
    %234 = arith.truncf %233 : vector<16x64xf32> to vector<16x64xbf16>
    %cst_73 = arith.constant dense<0.000000e+00> : vector<16x32xf32>
    %235 = tpu.matmul %234, %146, %cst_73 {dimension_numbers = #tpu.dot_dimension_numbers<[1], [0], [0], [1], [0, 0, 1, 1], [], []>} : vector<16x64xbf16>, vector<64x32xbf16>, vector<16x32xf32> -> vector<16x32xf32>
    %236 = vector.broadcast %138 : vector<1x32xf32> to vector<16x32xf32>
    %237 = arith.addf %235, %236 : vector<16x32xf32>
    %238 = arith.addf %227, %237 : vector<16x32xf32>
    %cst_74 = arith.constant dense<0.000000e+00> : vector<16xf32>
    %239 = vector.multi_reduction <add>, %238, %cst_74 [1] : vector<16x32xf32> to vector<16xf32>
    %240 = vector.shape_cast %239 : vector<16xf32> to vector<16x1xf32>
    %cst_75 = arith.constant 3.200000e+01 : f32
    %241 = vector.broadcast %cst_75 : f32 to vector<16x1xf32>
    %242 = arith.divf %240, %241 : vector<16x1xf32>
    %243 = arith.mulf %238, %238 : vector<16x32xf32>
    %cst_76 = arith.constant dense<0.000000e+00> : vector<16xf32>
    %244 = vector.multi_reduction <add>, %243, %cst_76 [1] : vector<16x32xf32> to vector<16xf32>
    %245 = vector.shape_cast %244 : vector<16xf32> to vector<16x1xf32>
    %cst_77 = arith.constant 3.200000e+01 : f32
    %246 = vector.broadcast %cst_77 : f32 to vector<16x1xf32>
    %247 = arith.divf %245, %246 : vector<16x1xf32>
    %248 = arith.mulf %242, %242 : vector<16x1xf32>
    %249 = arith.subf %247, %248 : vector<16x1xf32>
    %250 = vector.broadcast %242 : vector<16x1xf32> to vector<16x32xf32>
    %251 = arith.subf %238, %250 : vector<16x32xf32>
    %cst_78 = arith.constant 9.99999974E-6 : f32
    %252 = vector.broadcast %cst_78 : f32 to vector<16x1xf32>
    %253 = arith.addf %249, %252 : vector<16x1xf32>
    %254 = math.rsqrt %253 : vector<16x1xf32>
    %255 = vector.broadcast %254 : vector<16x1xf32> to vector<16x32xf32>
    %256 = arith.mulf %251, %255 : vector<16x32xf32>
    %257 = vector.broadcast %135 : vector<1x32xf32> to vector<16x32xf32>
    %258 = arith.mulf %256, %257 : vector<16x32xf32>
    %259 = vector.broadcast %136 : vector<1x32xf32> to vector<16x32xf32>
    %260 = arith.addf %258, %259 : vector<16x32xf32>
    %c16 = arith.constant 16 : index
    %c0_79 = arith.constant 0 : index
    %261 = vector.load %arg5[%c16, %c0_79] : memref<18x96xf32, #tpu.memory_space<vmem>>, vector<1x32xf32>
    %c17 = arith.constant 17 : index
    %c0_80 = arith.constant 0 : index
    %262 = vector.load %arg5[%c17, %c0_80] : memref<18x96xf32, #tpu.memory_space<vmem>>, vector<1x32xf32>
    %cst_81 = arith.constant dense<0.000000e+00> : vector<16xf32>
    %263 = vector.multi_reduction <add>, %260, %cst_81 [1] : vector<16x32xf32> to vector<16xf32>
    %264 = vector.shape_cast %263 : vector<16xf32> to vector<16x1xf32>
    %cst_82 = arith.constant 3.200000e+01 : f32
    %265 = vector.broadcast %cst_82 : f32 to vector<16x1xf32>
    %266 = arith.divf %264, %265 : vector<16x1xf32>
    %267 = arith.mulf %260, %260 : vector<16x32xf32>
    %cst_83 = arith.constant dense<0.000000e+00> : vector<16xf32>
    %268 = vector.multi_reduction <add>, %267, %cst_83 [1] : vector<16x32xf32> to vector<16xf32>
    %269 = vector.shape_cast %268 : vector<16xf32> to vector<16x1xf32>
    %cst_84 = arith.constant 3.200000e+01 : f32
    %270 = vector.broadcast %cst_84 : f32 to vector<16x1xf32>
    %271 = arith.divf %269, %270 : vector<16x1xf32>
    %272 = arith.mulf %266, %266 : vector<16x1xf32>
    %273 = arith.subf %271, %272 : vector<16x1xf32>
    %274 = vector.broadcast %266 : vector<16x1xf32> to vector<16x32xf32>
    %275 = arith.subf %260, %274 : vector<16x32xf32>
    %cst_85 = arith.constant 9.99999974E-6 : f32
    %276 = vector.broadcast %cst_85 : f32 to vector<16x1xf32>
    %277 = arith.addf %273, %276 : vector<16x1xf32>
    %278 = math.rsqrt %277 : vector<16x1xf32>
    %279 = vector.broadcast %278 : vector<16x1xf32> to vector<16x32xf32>
    %280 = arith.mulf %275, %279 : vector<16x32xf32>
    %281 = vector.broadcast %261 : vector<1x32xf32> to vector<16x32xf32>
    %282 = arith.mulf %280, %281 : vector<16x32xf32>
    %283 = vector.broadcast %262 : vector<1x32xf32> to vector<16x32xf32>
    %284 = arith.addf %282, %283 : vector<16x32xf32>
    %c0_86 = arith.constant 0 : index
    %c0_87 = arith.constant 0 : index
    %285 = vector.load %arg6[%c0_86, %c0_87] : memref<16x32xf32, #tpu.memory_space<vmem>>, vector<16x32xf32>
    tpu.vector_store %arg6[%c0_86, %c0_87], %284 {strides = array<i32>} : memref<16x32xf32, #tpu.memory_space<vmem>>, vector<16x32xf32>,
    return
  }
}

</mosaic_0001>

<llo_original>
// kernel: tpu_custom_call.1
$region0: #{tpu_custom_call.1}
  #allocation0 [shape = 'u32[]', space=smem, size = 0x4, offset = 0x4, fixed_abs, tag = 'smem constant byte address 0x4 - core index']
  #allocation1 [shape = 'u32[144,128]{1,0:T(1,128)}', space=vmem, size = 0x12000, scoped, tag = 'internal scratch']
  %s0 = inlined_call_operand.hbm [shape: f32[16,32], index: 0, kind: input, shape index: {}]
  %s1 = inlined_call_operand.vmem [shape: bf16[2,32,96], index: 1, kind: input, shape index: {}]
  %s2 = inlined_call_operand.vmem [shape: bf16[2,32,32], index: 2, kind: input, shape index: {}]
  %s3 = inlined_call_operand.vmem [shape: bf16[2,32,64], index: 3, kind: input, shape index: {}]
  %s4 = inlined_call_operand.vmem [shape: bf16[2,64,32], index: 4, kind: input, shape index: {}]
  %s5 = inlined_call_operand.hbm [shape: f32[18,96], index: 5, kind: input, shape index: {}]
  %s6 = inlined_call_operand.hbm [shape: f32[16,32], index: 6, kind: output, shape index: {}]
  %s7 = sld [smem:[#allocation0]]
  $region42: #{tpu_custom_call.1} parent=0
    _
  %s9 = ssub.s32 1, %s7
  %s10 = scalar_select 0, %s9, %s7
  $region1: #{tpu_custom_call.1} parent=0
    #allocation2 [shape = 'u8[8192]{0}', space=vmem, size = 0x2000, scoped, tag = 'input window, operand 0, single buffered']
    #allocation3 [shape = 's32[1]{0}', space=sflag, size = 0x4, scoped, tag = 'scoped memory for tpu_custom_call.1']
    #allocation4 [shape = 's32[1]{0}', space=sflag, size = 0x4, scoped, tag = 'scoped memory for tpu_custom_call.1']
    #allocation5 [shape = 'u8[12288]{0}', space=vmem, size = 0x3000, scoped, tag = 'input window, operand 5, single buffered']
    #allocation6 [shape = 's32[1]{0}', space=sflag, size = 0x4, scoped, tag = 'scoped memory for tpu_custom_call.1']
    #allocation7 [shape = 'u8[8192]{0}', space=vmem, size = 0x2000, scoped, tag = 'output window, operand 0, single buffered']
    %11 = vsyncpa [#allocation3], 0
    %12 = vsyncpa [#allocation6], 0
    %13 = vsyncpa [#allocation4], 0
    // Predicated region
    $region2: #{tpu_custom_call.1} parent=1 // pred_check
      _
    $region3: #{tpu_custom_call.1} parent=1 // pred_check_branch
      %15 = sbr.rel (0) target = $region5
    $region4: #{tpu_custom_call.1} parent=1 // pred_region
      %s17 = ssub.s32 256, 256
      %18 = vsyncadd [#allocation3], %s17
      %s19 = sshll.u32 [#allocation2], 4
      %s20 = int_to_ptr.vmem [resolvable:$true] %s19
      %25 = dma.hbm_to_vmem [thread:$0]  %s0, 256, %s20, [#allocation3], 128, 128, 8
    $region5: #{tpu_custom_call.1} parent=1 // pred_fallthru
      _
    // Predicated region
    $region6: #{tpu_custom_call.1} parent=1 // pred_check
      _
    $region7: #{tpu_custom_call.1} parent=1 // pred_check_branch
      %27 = sbr.rel (0) target = $region9
    $region8: #{tpu_custom_call.1} parent=1 // pred_region
      _
    $region9: #{tpu_custom_call.1} parent=1 // pred_fallthru
      _
    // Predicated region
    $region10: #{tpu_custom_call.1} parent=1 // pred_check
      _
    $region11: #{tpu_custom_call.1} parent=1 // pred_check_branch
      %29 = sbr.rel (0) target = $region13
    $region12: #{tpu_custom_call.1} parent=1 // pred_region
      _
    $region13: #{tpu_custom_call.1} parent=1 // pred_fallthru
      _
    // Predicated region
    $region14: #{tpu_custom_call.1} parent=1 // pred_check
      _
    $region15: #{tpu_custom_call.1} parent=1 // pred_check_branch
      %31 = sbr.rel (0) target = $region17
    $region16: #{tpu_custom_call.1} parent=1 // pred_region
      _
    $region17: #{tpu_custom_call.1} parent=1 // pred_fallthru
      _
    // Predicated region
    $region18: #{tpu_custom_call.1} parent=1 // pred_check
      _
    $region19: #{tpu_custom_call.1} parent=1 // pred_check_branch
      %33 = sbr.rel (0) target = $region21
    $region20: #{tpu_custom_call.1} parent=1 // pred_region
      _
    $region21: #{tpu_custom_call.1} parent=1 // pred_fallthru
      _
    // Predicated region
    $region22: #{tpu_custom_call.1} parent=1 // pred_check
      _
    $region23: #{tpu_custom_call.1} parent=1 // pred_check_branch
      %35 = sbr.rel (0) target = $region25
    $region24: #{tpu_custom_call.1} parent=1 // pred_region
      %s37 = ssub.s32 384, 384
      %38 = vsyncadd [#allocation6], %s37
      %s39 = sshll.u32 [#allocation5], 4
      %s40 = int_to_ptr.vmem [resolvable:$true] %s39
      %45 = dma.hbm_to_vmem [thread:$0]  %s5, 384, %s40, [#allocation6], 128, 128, 8
    $region25: #{tpu_custom_call.1} parent=1 // pred_fallthru
      _
    // Predicated region
    $region26: #{tpu_custom_call.1} parent=1 // pred_check
      _
    $region27: #{tpu_custom_call.1} parent=1 // pred_check_branch
      %47 = sbr.rel (0) target = $region29
    $region28: #{tpu_custom_call.1} parent=1 // pred_region
      %48 = dma.done [#allocation3], 256
    $region29: #{tpu_custom_call.1} parent=1 // pred_fallthru
      _
    // Predicated region
    $region30: #{tpu_custom_call.1} parent=1 // pred_check
      _
    $region31: #{tpu_custom_call.1} parent=1 // pred_check_branch
      %50 = sbr.rel (0) target = $region33
    $region32: #{tpu_custom_call.1} parent=1 // pred_region
      %51 = dma.done [#allocation6], 384
    $region33: #{tpu_custom_call.1} parent=1 // pred_fallthru
      _
    %v53 = vld [vmem:[#allocation2] sm:$0xff]
    %v54 = vld [vmem:[#allocation2 + $0x8] sm:$0xff]
    %v55 = vld [vmem:[#allocation5] sm:$0x1]
    %v56 = vld [vmem:[#allocation5 + $0x1] sm:$0x1]
    %v57 = vld [vmem:[#allocation5 + $0x2] sm:$0x1]
    %v58 = vld [vmem:[#allocation5 + $0x3] sm:$0x1]
    %v59 = vld [vmem:[#allocation5 + $0x4] sm:$0x1]
    %v60 = vld [vmem:[#allocation5 + $0x5] sm:$0x1]
    %v61 = vld [vmem:[#allocation5 + $0x6] sm:$0x1]
    %v62 = vld [vmem:[#allocation5 + $0x7] sm:$0x1]
    %v63 = vld [vmem:[%s1] sm:$0xf]
    %v64 = vld [vmem:[%s1 + $0x4] sm:$0xf]
    %v65 = vld [vmem:[%s1 + $0x8] sm:$0xf]
    %v66 = vld [vmem:[%s1 + $0xc] sm:$0xf]
    %v67 = vld [vmem:[%s2] sm:$0xf]
    %v68 = vld [vmem:[%s2 + $0x4] sm:$0xf]
    %v69 = vld [vmem:[%s2 + $0x8] sm:$0xf]
    %v70 = vld [vmem:[%s2 + $0xc] sm:$0xf]
    %v71 = vld [vmem:[%s3] sm:$0xf]
    %v72 = vld [vmem:[%s3 + $0x4] sm:$0xf]
    %v73 = vld [vmem:[%s3 + $0x8] sm:$0xf]
    %v74 = vld [vmem:[%s3 + $0xc] sm:$0xf]
    %v75 = vld [vmem:[%s4] sm:$0xf]
    %v76 = vld [vmem:[%s4 + $0x4] sm:$0xf]
    %v77 = vld [vmem:[%s4 + $0x8] sm:$0xf]
    %v78 = vld [vmem:[%s4 + $0xc] sm:$0xf]
    %v79 = vld [vmem:[%s4 + $0x10] sm:$0xf]
    %v80 = vld [vmem:[%s4 + $0x14] sm:$0xf]
    %v81 = vld [vmem:[%s4 + $0x18] sm:$0xf]
    %v82 = vld [vmem:[%s4 + $0x1c] sm:$0xf]
    %v83 = vpack.c.bf16 %v54, %v53
    %v84 = vlaneseq
    %v85 = vshrl.u32 %v84, 7
    %v86 = vsub.s32 0, %v85
    %v87 = vrot.slane %v55, %v86
    %v92 = vunpack.c.l.b16 %v63
    %v93 = vunpack.c.l.b16 %v64
    %v94 = vunpack.c.l.b16 %v65
    %v95 = vunpack.c.l.b16 %v66
    %v96 = vpack.c.b16 %v93, %v92
    %v97 = vpack.c.b16 %v95, %v94
    %vm100 = vcmask 261120
    %v102 = vsel %vm100, %v83, 0
    %104 = vmatprep.subr.bf16.mxu0 0
    %105 = vmatpush1.bf16.msra.mxu0 %v96
    %106 = vmatprep.subr.bf16.mxu0 0
    %107 = vmatpush1.bf16.msra.mxu0 %v97
    %108 = vmatprep.subr.bf16.mxu0 0
    %109 = vmatpush1.bf16.msra.mxu0 0
    %110 = vmatprep.subr.bf16.mxu0 0
    %111 = vmatpush1.bf16.msra.mxu0 0
    %112 = vmatprep.subr.bf16.mxu0 0
    %113 = vmatpush1.bf16.msra.mxu0 0
    %114 = vmatprep.subr.bf16.mxu0 0
    %115 = vmatpush1.bf16.msra.mxu0 0
    %116 = vmatprep.subr.bf16.mxu0 0
    %117 = vmatpush1.bf16.msra.mxu0 0
    %118 = vmatprep.subr.bf16.mxu0 0
    %119 = vmatpush1.bf16.msra.mxu0 0
    %120 = vmatprep.subr.bf16.mxu0 0
    %121 = vmatpush1.bf16.msra.mxu0 0
    %122 = vmatprep.subr.bf16.mxu0 0
    %123 = vmatpush1.bf16.msra.mxu0 0
    %124 = vmatprep.subr.bf16.mxu0 0
    %125 = vmatpush1.bf16.msra.mxu0 0
    %126 = vmatprep.subr.bf16.mxu0 0
    %127 = vmatpush1.bf16.msra.mxu0 0
    %128 = vmatprep.subr.bf16.mxu0 0
    %129 = vmatpush1.bf16.msra.mxu0 0
    %130 = vmatprep.subr.bf16.mxu0 0
    %131 = vmatpush1.bf16.msra.mxu0 0
    %132 = vmatprep.subr.bf16.mxu0 0
    %133 = vmatpush1.bf16.msra.mxu0 0
    %134 = vmatprep.subr.bf16.mxu0 0
    %135 = vmatpush1.bf16.msra.mxu0 0
    %136 = vmatprep.mubr.bf16.mxu0 0
    %137 = vmatmul.mubr.bf16.gmra.mrb[0].mxu0 %v102
    %v138 = vpop.f32.mrb[0].mxu0
    %v139 = vadd.f32 %v87, %v138
    %v140 = vpop.f32.mrb[0].mxu0
    %v141 = vpop.f32.mrb[0].mxu0
    %v142 = vadd.f32 %v87, %v141
    %v143 = vpop.f32.mrb[0].mxu0
    %144 = vdwg.mxu0
    %v145 = vpack.c.bf16 %v142, %v139
    %v147 = vunpack.c.l.b16 %v145
    %v148 = vunpack.c.h.b16 %v145
    %v149 = vpack.c.b16 %v147, %v147
    %v150 = vpack.c.b16 %v148, %v148
    %151 = vrot.lane.b32.xlu0 %v149, 120
    %v152 = vpop.permute.xlu0 %151
    %153 = vrot.lane.b32.xlu0 %v150, 120
    %v154 = vpop.permute.xlu0 %153
    %155 = vrot.lane.b32.xlu0 %v149, 112
    %v156 = vpop.permute.xlu0 %155
    %157 = vrot.lane.b32.xlu0 %v150, 112
    %v158 = vpop.permute.xlu0 %157
    %159 = vrot.lane.b32.xlu0 %v149, 104
    %v160 = vpop.permute.xlu0 %159
    %161 = vrot.lane.b32.xlu0 %v150, 104
    %v162 = vpop.permute.xlu0 %161
    %163 = vrot.lane.b32.xlu0 %v149, 96
    %v164 = vpop.permute.xlu0 %163
    %vm165 = vcmask 64512
    %v167 = vsel %vm165, %v149, 0
    %v170 = vsel %vm165, %v164, 0
    %172 = vmatprep.subr.bf16.mxu0 0
    %173 = vmatpush1.bf16.xpose.msra.mxu0 %v170
    %174 = vmatprep.subr.bf16.mxu0 0
    %175 = vmatpush1.bf16.xpose.msra.mxu0 0
    %176 = vmatprep.subr.bf16.mxu0 0
    %177 = vmatpush1.bf16.xpose.msra.mxu0 0
    %178 = vmatprep.subr.bf16.mxu0 0
    %179 = vmatpush1.bf16.xpose.msra.mxu0 0
    %180 = vmatprep.subr.bf16.mxu0 0
    %181 = vmatpush1.bf16.xpose.msra.mxu0 0
    %182 = vmatprep.subr.bf16.mxu0 0
    %183 = vmatpush1.bf16.xpose.msra.mxu0 0
    %184 = vmatprep.subr.bf16.mxu0 0
    %185 = vmatpush1.bf16.xpose.msra.mxu0 0
    %186 = vmatprep.subr.bf16.mxu0 0
    %187 = vmatpush1.bf16.xpose.msra.mxu0 0
    %188 = vmatprep.subr.bf16.mxu0 0
    %189 = vmatpush1.bf16.xpose.msra.mxu0 0
    %190 = vmatprep.subr.bf16.mxu0 0
    %191 = vmatpush1.bf16.xpose.msra.mxu0 0
    %192 = vmatprep.subr.bf16.mxu0 0
    %193 = vmatpush1.bf16.xpose.msra.mxu0 0
    %194 = vmatprep.subr.bf16.mxu0 0
    %195 = vmatpush1.bf16.xpose.msra.mxu0 0
    %196 = vmatprep.subr.bf16.mxu0 0
    %197 = vmatpush1.bf16.xpose.msra.mxu0 0
    %198 = vmatprep.subr.bf16.mxu0 0
    %199 = vmatpush1.bf16.xpose.msra.mxu0 0
    %200 = vmatprep.subr.bf16.mxu0 0
    %201 = vmatpush1.bf16.xpose.msra.mxu0 0
    %202 = vmatprep.subr.bf16.mxu0 0
    %203 = vmatpush1.bf16.xpose.msra.mxu0 0
    %204 = vmatprep.mubr.bf16.mxu0 0
    %205 = vmatmul.mubr.bf16.gmra.mrb[0].mxu0 %v167
    %v206 = vpop.f32.mrb[0].mxu0
    %v207 = vadd.f32 0.0, %v206
    %v208 = vpop.f32.mrb[0].mxu0
    %v209 = vpop.f32.mrb[0].mxu0
    %v210 = vpop.f32.mrb[0].mxu0
    %211 = vdwg.mxu0
    %212 = vrot.lane.b32.xlu0 %v150, 96
    %v213 = vpop.permute.xlu0 %212
    %v215 = vsel %vm165, %v150, 0
    %v218 = vsel %vm165, %v213, 0
    %220 = vmatprep.subr.bf16.mxu0 0
    %221 = vmatpush1.bf16.xpose.msra.mxu0 %v218
    %222 = vmatprep.subr.bf16.mxu0 0
    %223 = vmatpush1.bf16.xpose.msra.mxu0 0
    %224 = vmatprep.subr.bf16.mxu0 0
    %225 = vmatpush1.bf16.xpose.msra.mxu0 0
    %226 = vmatprep.subr.bf16.mxu0 0
    %227 = vmatpush1.bf16.xpose.msra.mxu0 0
    %228 = vmatprep.subr.bf16.mxu0 0
    %229 = vmatpush1.bf16.xpose.msra.mxu0 0
    %230 = vmatprep.subr.bf16.mxu0 0
    %231 = vmatpush1.bf16.xpose.msra.mxu0 0
    %232 = vmatprep.subr.bf16.mxu0 0
    %233 = vmatpush1.bf16.xpose.msra.mxu0 0
    %234 = vmatprep.subr.bf16.mxu0 0
    %235 = vmatpush1.bf16.xpose.msra.mxu0 0
    %236 = vmatprep.subr.bf16.mxu0 0
    %237 = vmatpush1.bf16.xpose.msra.mxu0 0
    %238 = vmatprep.subr.bf16.mxu0 0
    %239 = vmatpush1.bf16.xpose.msra.mxu0 0
    %240 = vmatprep.subr.bf16.mxu0 0
    %241 = vmatpush1.bf16.xpose.msra.mxu0 0
    %242 = vmatprep.subr.bf16.mxu0 0
    %243 = vmatpush1.bf16.xpose.msra.mxu0 0
    %244 = vmatprep.subr.bf16.mxu0 0
    %245 = vmatpush1.bf16.xpose.msra.mxu0 0
    %246 = vmatprep.subr.bf16.mxu0 0
    %247 = vmatpush1.bf16.xpose.msra.mxu0 0
    %248 = vmatprep.subr.bf16.mxu0 0
    %249 = vmatpush1.bf16.xpose.msra.mxu0 0
    %250 = vmatprep.subr.bf16.mxu0 0
    %251 = vmatpush1.bf16.xpose.msra.mxu0 0
    %252 = vmatprep.mubr.bf16.mxu0 0
    %253 = vmatmul.mubr.bf16.gmra.mrb[0].mxu0 %v215
    %v254 = vpop.f32.mrb[0].mxu0
    %v255 = vadd.f32 0.0, %v254
    %v256 = vpop.f32.mrb[0].mxu0
    %v257 = vpop.f32.mrb[0].mxu0
    %v258 = vpop.f32.mrb[0].mxu0
    %259 = vdwg.mxu0
    %v260 = vunpack.c.l.b16 %v152
    %v261 = vpack.c.b16 %v260, %v260
    %262 = vrot.lane.b32.xlu0 %v261, 96
    %v263 = vpop.permute.xlu0 %262
    %v265 = vsel %vm165, %v152, 0
    %v268 = vsel %vm165, %v263, 0
    %270 = vmatprep.subr.bf16.mxu0 0
    %271 = vmatpush1.bf16.xpose.msra.mxu0 %v268
    %272 = vmatprep.subr.bf16.mxu0 0
    %273 = vmatpush1.bf16.xpose.msra.mxu0 0
    %274 = vmatprep.subr.bf16.mxu0 0
    %275 = vmatpush1.bf16.xpose.msra.mxu0 0
    %276 = vmatprep.subr.bf16.mxu0 0
    %277 = vmatpush1.bf16.xpose.msra.mxu0 0
    %278 = vmatprep.subr.bf16.mxu0 0
    %279 = vmatpush1.bf16.xpose.msra.mxu0 0
    %280 = vmatprep.subr.bf16.mxu0 0
    %281 = vmatpush1.bf16.xpose.msra.mxu0 0
    %282 = vmatprep.subr.bf16.mxu0 0
    %283 = vmatpush1.bf16.xpose.msra.mxu0 0
    %284 = vmatprep.subr.bf16.mxu0 0
    %285 = vmatpush1.bf16.xpose.msra.mxu0 0
    %286 = vmatprep.subr.bf16.mxu0 0
    %287 = vmatpush1.bf16.xpose.msra.mxu0 0
    %288 = vmatprep.subr.bf16.mxu0 0
    %289 = vmatpush1.bf16.xpose.msra.mxu0 0
    %290 = vmatprep.subr.bf16.mxu0 0
    %291 = vmatpush1.bf16.xpose.msra.mxu0 0
    %292 = vmatprep.subr.bf16.mxu0 0
    %293 = vmatpush1.bf16.xpose.msra.mxu0 0
    %294 = vmatprep.subr.bf16.mxu0 0
    %295 = vmatpush1.bf16.xpose.msra.mxu0 0
    %296 = vmatprep.subr.bf16.mxu0 0
    %297 = vmatpush1.bf16.xpose.msra.mxu0 0
    %298 = vmatprep.subr.bf16.mxu0 0
    %299 = vmatpush1.bf16.xpose.msra.mxu0 0
    %300 = vmatprep.subr.bf16.mxu0 0
    %301 = vmatpush1.bf16.xpose.msra.mxu0 0
    %302 = vmatprep.mubr.bf16.mxu0 0
    %303 = vmatmul.mubr.bf16.gmra.mrb[0].mxu0 %v265
    %v304 = vpop.f32.mrb[0].mxu0
    %v305 = vadd.f32 0.0, %v304
    %v306 = vpop.f32.mrb[0].mxu0
    %v307 = vpop.f32.mrb[0].mxu0
    %v308 = vpop.f32.mrb[0].mxu0
    %309 = vdwg.mxu0
    %v310 = vunpack.c.l.b16 %v154
    %v311 = vpack.c.b16 %v310, %v310
    %312 = vrot.lane.b32.xlu0 %v311, 96
    %v313 = vpop.permute.xlu0 %312
    %v315 = vsel %vm165, %v154, 0
    %v318 = vsel %vm165, %v313, 0
    %320 = vmatprep.subr.bf16.mxu0 0
    %321 = vmatpush1.bf16.xpose.msra.mxu0 %v318
    %322 = vmatprep.subr.bf16.mxu0 0
    %323 = vmatpush1.bf16.xpose.msra.mxu0 0
    %324 = vmatprep.subr.bf16.mxu0 0
    %325 = vmatpush1.bf16.xpose.msra.mxu0 0
    %326 = vmatprep.subr.bf16.mxu0 0
    %327 = vmatpush1.bf16.xpose.msra.mxu0 0
    %328 = vmatprep.subr.bf16.mxu0 0
    %329 = vmatpush1.bf16.xpose.msra.mxu0 0
    %330 = vmatprep.subr.bf16.mxu0 0
    %331 = vmatpush1.bf16.xpose.msra.mxu0 0
    %332 = vmatprep.subr.bf16.mxu0 0
    %333 = vmatpush1.bf16.xpose.msra.mxu0 0
    %334 = vmatprep.subr.bf16.mxu0 0
    %335 = vmatpush1.bf16.xpose.msra.mxu0 0
    %336 = vmatprep.subr.bf16.mxu0 0
    %337 = vmatpush1.bf16.xpose.msra.mxu0 0
    %338 = vmatprep.subr.bf16.mxu0 0
    %339 = vmatpush1.bf16.xpose.msra.mxu0 0
    %340 = vmatprep.subr.bf16.mxu0 0
    %341 = vmatpush1.bf16.xpose.msra.mxu0 0
    %342 = vmatprep.subr.bf16.mxu0 0
    %343 = vmatpush1.bf16.xpose.msra.mxu0 0
    %344 = vmatprep.subr.bf16.mxu0 0
    %345 = vmatpush1.bf16.xpose.msra.mxu0 0
    %346 = vmatprep.subr.bf16.mxu0 0
    %347 = vmatpush1.bf16.xpose.msra.mxu0 0
    %348 = vmatprep.subr.bf16.mxu0 0
    %349 = vmatpush1.bf16.xpose.msra.mxu0 0
    %350 = vmatprep.subr.bf16.mxu0 0
    %351 = vmatpush1.bf16.xpose.msra.mxu0 0
    %352 = vmatprep.mubr.bf16.mxu0 0
    %353 = vmatmul.mubr.bf16.gmra.mrb[0].mxu0 %v315
    %v354 = vpop.f32.mrb[0].mxu0
    %v355 = vadd.f32 0.0, %v354
    %v356 = vpop.f32.mrb[0].mxu0
    %v357 = vpop.f32.mrb[0].mxu0
    %v358 = vpop.f32.mrb[0].mxu0
    %359 = vdwg.mxu0
    %v360 = vunpack.c.l.b16 %v156
    %v361 = vpack.c.b16 %v360, %v360
    %362 = vrot.lane.b32.xlu0 %v361, 96
    %v363 = vpop.permute.xlu0 %362
    %v365 = vsel %vm165, %v156, 0
    %v368 = vsel %vm165, %v363, 0
    %370 = vmatprep.subr.bf16.mxu0 0
    %371 = vmatpush1.bf16.xpose.msra.mxu0 %v368
    %372 = vmatprep.subr.bf16.mxu0 0
    %373 = vmatpush1.bf16.xpose.msra.mxu0 0
    %374 = vmatprep.subr.bf16.mxu0 0
    %375 = vmatpush1.bf16.xpose.msra.mxu0 0
    %376 = vmatprep.subr.bf16.mxu0 0
    %377 = vmatpush1.bf16.xpose.msra.mxu0 0
    %378 = vmatprep.subr.bf16.mxu0 0
    %379 = vmatpush1.bf16.xpose.msra.mxu0 0
    %380 = vmatprep.subr.bf16.mxu0 0
    %381 = vmatpush1.bf16.xpose.msra.mxu0 0
    %382 = vmatprep.subr.bf16.mxu0 0
    %383 = vmatpush1.bf16.xpose.msra.mxu0 0
    %384 = vmatprep.subr.bf16.mxu0 0
    %385 = vmatpush1.bf16.xpose.msra.mxu0 0
    %386 = vmatprep.subr.bf16.mxu0 0
    %387 = vmatpush1.bf16.xpose.msra.mxu0 0
    %388 = vmatprep.subr.bf16.mxu0 0
    %389 = vmatpush1.bf16.xpose.msra.mxu0 0
    %390 = vmatprep.subr.bf16.mxu0 0
    %391 = vmatpush1.bf16.xpose.msra.mxu0 0
    %392 = vmatprep.subr.bf16.mxu0 0
    %393 = vmatpush1.bf16.xpose.msra.mxu0 0
    %394 = vmatprep.subr.bf16.mxu0 0
    %395 = vmatpush1.bf16.xpose.msra.mxu0 0
    %396 = vmatprep.subr.bf16.mxu0 0
    %397 = vmatpush1.bf16.xpose.msra.mxu0 0
    %398 = vmatprep.subr.bf16.mxu0 0
    %399 = vmatpush1.bf16.xpose.msra.mxu0 0
    %400 = vmatprep.subr.bf16.mxu0 0
    %401 = vmatpush1.bf16.xpose.msra.mxu0 0
    %402 = vmatprep.mubr.bf16.mxu0 0
    %403 = vmatmul.mubr.bf16.gmra.mrb[0].mxu0 %v365
    %v404 = vpop.f32.mrb[0].mxu0
    %v405 = vadd.f32 0.0, %v404
    %v406 = vpop.f32.mrb[0].mxu0
    %v407 = vpop.f32.mrb[0].mxu0
    %v408 = vpop.f32.mrb[0].mxu0
    %409 = vdwg.mxu0
    %v410 = vunpack.c.l.b16 %v158
    %v411 = vpack.c.b16 %v410, %v410
    %412 = vrot.lane.b32.xlu0 %v411, 96
    %v413 = vpop.permute.xlu0 %412
    %v415 = vsel %vm165, %v158, 0
    %v418 = vsel %vm165, %v413, 0
    %420 = vmatprep.subr.bf16.mxu0 0
    %421 = vmatpush1.bf16.xpose.msra.mxu0 %v418
    %422 = vmatprep.subr.bf16.mxu0 0
    %423 = vmatpush1.bf16.xpose.msra.mxu0 0
    %424 = vmatprep.subr.bf16.mxu0 0
    %425 = vmatpush1.bf16.xpose.msra.mxu0 0
    %426 = vmatprep.subr.bf16.mxu0 0
    %427 = vmatpush1.bf16.xpose.msra.mxu0 0
    %428 = vmatprep.subr.bf16.mxu0 0
    %429 = vmatpush1.bf16.xpose.msra.mxu0 0
    %430 = vmatprep.subr.bf16.mxu0 0
    %431 = vmatpush1.bf16.xpose.msra.mxu0 0
    %432 = vmatprep.subr.bf16.mxu0 0
    %433 = vmatpush1.bf16.xpose.msra.mxu0 0
    %434 = vmatprep.subr.bf16.mxu0 0
    %435 = vmatpush1.bf16.xpose.msra.mxu0 0
    %436 = vmatprep.subr.bf16.mxu0 0
    %437 = vmatpush1.bf16.xpose.msra.mxu0 0
    %438 = vmatprep.subr.bf16.mxu0 0
    %439 = vmatpush1.bf16.xpose.msra.mxu0 0
    %440 = vmatprep.subr.bf16.mxu0 0
    %441 = vmatpush1.bf16.xpose.msra.mxu0 0
    %442 = vmatprep.subr.bf16.mxu0 0
    %443 = vmatpush1.bf16.xpose.msra.mxu0 0
    %444 = vmatprep.subr.bf16.mxu0 0
    %445 = vmatpush1.bf16.xpose.msra.mxu0 0
    %446 = vmatprep.subr.bf16.mxu0 0
    %447 = vmatpush1.bf16.xpose.msra.mxu0 0
    %448 = vmatprep.subr.bf16.mxu0 0
    %449 = vmatpush1.bf16.xpose.msra.mxu0 0
    %450 = vmatprep.subr.bf16.mxu0 0
    %451 = vmatpush1.bf16.xpose.msra.mxu0 0
    %452 = vmatprep.mubr.bf16.mxu0 0
    %453 = vmatmul.mubr.bf16.gmra.mrb[0].mxu0 %v415
    %v454 = vpop.f32.mrb[0].mxu0
    %v455 = vadd.f32 0.0, %v454
    %v456 = vpop.f32.mrb[0].mxu0
    %v457 = vpop.f32.mrb[0].mxu0
    %v458 = vpop.f32.mrb[0].mxu0
    %459 = vdwg.mxu0
    %v460 = vunpack.c.l.b16 %v160
    %v461 = vpack.c.b16 %v460, %v460
    %462 = vrot.lane.b32.xlu0 %v461, 96
    %v463 = vpop.permute.xlu0 %462
    %v465 = vsel %vm165, %v160, 0
    %v468 = vsel %vm165, %v463, 0
    %470 = vmatprep.subr.bf16.mxu0 0
    %471 = vmatpush1.bf16.xpose.msra.mxu0 %v468
    %472 = vmatprep.subr.bf16.mxu0 0
    %473 = vmatpush1.bf16.xpose.msra.mxu0 0
    %474 = vmatprep.subr.bf16.mxu0 0
    %475 = vmatpush1.bf16.xpose.msra.mxu0 0
    %476 = vmatprep.subr.bf16.mxu0 0
    %477 = vmatpush1.bf16.xpose.msra.mxu0 0
    %478 = vmatprep.subr.bf16.mxu0 0
    %479 = vmatpush1.bf16.xpose.msra.mxu0 0
    %480 = vmatprep.subr.bf16.mxu0 0
    %481 = vmatpush1.bf16.xpose.msra.mxu0 0
    %482 = vmatprep.subr.bf16.mxu0 0
    %483 = vmatpush1.bf16.xpose.msra.mxu0 0
    %484 = vmatprep.subr.bf16.mxu0 0
    %485 = vmatpush1.bf16.xpose.msra.mxu0 0
    %486 = vmatprep.subr.bf16.mxu0 0
    %487 = vmatpush1.bf16.xpose.msra.mxu0 0
    %488 = vmatprep.subr.bf16.mxu0 0
    %489 = vmatpush1.bf16.xpose.msra.mxu0 0
    %490 = vmatprep.subr.bf16.mxu0 0
    %491 = vmatpush1.bf16.xpose.msra.mxu0 0
    %492 = vmatprep.subr.bf16.mxu0 0
    %493 = vmatpush1.bf16.xpose.msra.mxu0 0
    %494 = vmatprep.subr.bf16.mxu0 0
    %495 = vmatpush1.bf16.xpose.msra.mxu0 0
    %496 = vmatprep.subr.bf16.mxu0 0
    %497 = vmatpush1.bf16.xpose.msra.mxu0 0
    %498 = vmatprep.subr.bf16.mxu0 0
    %499 = vmatpush1.bf16.xpose.msra.mxu0 0
    %500 = vmatprep.subr.bf16.mxu0 0
    %501 = vmatpush1.bf16.xpose.msra.mxu0 0
    %502 = vmatprep.mubr.bf16.mxu0 0
    %503 = vmatmul.mubr.bf16.gmra.mrb[0].mxu0 %v465
    %v504 = vpop.f32.mrb[0].mxu0
    %v505 = vadd.f32 0.0, %v504
    %v506 = vpop.f32.mrb[0].mxu0
    %v507 = vpop.f32.mrb[0].mxu0
    %v508 = vpop.f32.mrb[0].mxu0
    %509 = vdwg.mxu0
    %v510 = vunpack.c.l.b16 %v162
    %v511 = vpack.c.b16 %v510, %v510
    %512 = vrot.lane.b32.xlu0 %v511, 96
    %v513 = vpop.permute.xlu0 %512
    %v515 = vsel %vm165, %v162, 0
    %v518 = vsel %vm165, %v513, 0
    %520 = vmatprep.subr.bf16.mxu0 0
    %521 = vmatpush1.bf16.xpose.msra.mxu0 %v518
    %522 = vmatprep.subr.bf16.mxu0 0
    %523 = vmatpush1.bf16.xpose.msra.mxu0 0
    %524 = vmatprep.subr.bf16.mxu0 0
    %525 = vmatpush1.bf16.xpose.msra.mxu0 0
    %526 = vmatprep.subr.bf16.mxu0 0
    %527 = vmatpush1.bf16.xpose.msra.mxu0 0
    %528 = vmatprep.subr.bf16.mxu0 0
    %529 = vmatpush1.bf16.xpose.msra.mxu0 0
    %530 = vmatprep.subr.bf16.mxu0 0
    %531 = vmatpush1.bf16.xpose.msra.mxu0 0
    %532 = vmatprep.subr.bf16.mxu0 0
    %533 = vmatpush1.bf16.xpose.msra.mxu0 0
    %534 = vmatprep.subr.bf16.mxu0 0
    %535 = vmatpush1.bf16.xpose.msra.mxu0 0
    %536 = vmatprep.subr.bf16.mxu0 0
    %537 = vmatpush1.bf16.xpose.msra.mxu0 0
    %538 = vmatprep.subr.bf16.mxu0 0
    %539 = vmatpush1.bf16.xpose.msra.mxu0 0
    %540 = vmatprep.subr.bf16.mxu0 0
    %541 = vmatpush1.bf16.xpose.msra.mxu0 0
    %542 = vmatprep.subr.bf16.mxu0 0
    %543 = vmatpush1.bf16.xpose.msra.mxu0 0
    %544 = vmatprep.subr.bf16.mxu0 0
    %545 = vmatpush1.bf16.xpose.msra.mxu0 0
    %546 = vmatprep.subr.bf16.mxu0 0
    %547 = vmatpush1.bf16.xpose.msra.mxu0 0
    %548 = vmatprep.subr.bf16.mxu0 0
    %549 = vmatpush1.bf16.xpose.msra.mxu0 0
    %550 = vmatprep.subr.bf16.mxu0 0
    %551 = vmatpush1.bf16.xpose.msra.mxu0 0
    %552 = vmatprep.mubr.bf16.mxu0 0
    %553 = vmatmul.mubr.bf16.gmra.mrb[0].mxu0 %v515
    %v554 = vpop.f32.mrb[0].mxu0
    %v555 = vadd.f32 0.0, %v554
    %v556 = vpop.f32.mrb[0].mxu0
    %v557 = vpop.f32.mrb[0].mxu0
    %v558 = vpop.f32.mrb[0].mxu0
    %559 = vdwg.mxu0
    %v560 = vsel %vm165, %v207, -inf
    %561 = vmax.xlane.f32.xlu0 %v560
    %v562 = vpop.xlane.xlu0 %561
    %v563 = vsel %vm165, %v255, -inf
    %564 = vmax.xlane.f32.xlu0 %v563
    %v565 = vpop.xlane.xlu0 %564
    %v566 = vsel %vm165, %v305, -inf
    %567 = vmax.xlane.f32.xlu0 %v566
    %v568 = vpop.xlane.xlu0 %567
    %v569 = vsel %vm165, %v355, -inf
    %570 = vmax.xlane.f32.xlu0 %v569
    %v571 = vpop.xlane.xlu0 %570
    %v572 = vsel %vm165, %v405, -inf
    %573 = vmax.xlane.f32.xlu0 %v572
    %v574 = vpop.xlane.xlu0 %573
    %v575 = vsel %vm165, %v455, -inf
    %576 = vmax.xlane.f32.xlu0 %v575
    %v577 = vpop.xlane.xlu0 %576
    %v578 = vsel %vm165, %v505, -inf
    %579 = vmax.xlane.f32.xlu0 %v578
    %v580 = vpop.xlane.xlu0 %579
    %v581 = vsel %vm165, %v555, -inf
    %582 = vmax.xlane.f32.xlu0 %v581
    %v583 = vpop.xlane.xlu0 %582
    %v584 = vsub.f32 %v207, %v562
    %v585 = vsub.f32 %v255, %v565
    %v586 = vsub.f32 %v305, %v568
    %v587 = vsub.f32 %v355, %v571
    %v588 = vsub.f32 %v405, %v574
    %v589 = vsub.f32 %v455, %v577
    %v590 = vsub.f32 %v505, %v580
    %v591 = vsub.f32 %v555, %v583
    %v592 = vmul.f32 %v584, 1.442695
    %v593 = vpow.pop %v592
    %v594 = vmul.f32 %v585, 1.442695
    %v595 = vpow.pop %v594
    %v596 = vmul.f32 %v586, 1.442695
    %v597 = vpow.pop %v596
    %v598 = vmul.f32 %v587, 1.442695
    %v599 = vpow.pop %v598
    %v600 = vmul.f32 %v588, 1.442695
    %v601 = vpow.pop %v600
    %v602 = vmul.f32 %v589, 1.442695
    %v603 = vpow.pop %v602
    %v604 = vmul.f32 %v590, 1.442695
    %v605 = vpow.pop %v604
    %v606 = vmul.f32 %v591, 1.442695
    %v607 = vpow.pop %v606
    %v608 = vsel %vm165, %v593, 0.0
    %609 = vadd.xlane.f32.xlu0 %v608
    %v610 = vpop.xlane.xlu0 %609
    %v611 = vsel %vm165, %v595, 0.0
    %612 = vadd.xlane.f32.xlu0 %v611
    %v613 = vpop.xlane.xlu0 %612
    %v614 = vsel %vm165, %v597, 0.0
    %615 = vadd.xlane.f32.xlu0 %v614
    %v616 = vpop.xlane.xlu0 %615
    %v617 = vsel %vm165, %v599, 0.0
    %618 = vadd.xlane.f32.xlu0 %v617
    %v619 = vpop.xlane.xlu0 %618
    %v620 = vsel %vm165, %v601, 0.0
    %621 = vadd.xlane.f32.xlu0 %v620
    %v622 = vpop.xlane.xlu0 %621
    %v623 = vsel %vm165, %v603, 0.0
    %624 = vadd.xlane.f32.xlu0 %v623
    %v625 = vpop.xlane.xlu0 %624
    %v626 = vsel %vm165, %v605, 0.0
    %627 = vadd.xlane.f32.xlu0 %v626
    %v628 = vpop.xlane.xlu0 %627
    %v629 = vsel %vm165, %v607, 0.0
    %630 = vadd.xlane.f32.xlu0 %v629
    %v631 = vpop.xlane.xlu0 %630
    %v632 = vrcp.pop %v610
    %v633 = vrcp.pop %v613
    %v634 = vrcp.pop %v616
    %v635 = vrcp.pop %v619
    %v636 = vrcp.pop %v622
    %v637 = vrcp.pop %v625
    %v638 = vrcp.pop %v628
    %v639 = vrcp.pop %v631
    %v640 = vmul.f32 %v593, %v632
    %v641 = vmul.f32 %v595, %v633
    %v642 = vmul.f32 %v597, %v634
    %v643 = vmul.f32 %v599, %v635
    %v644 = vmul.f32 %v601, %v636
    %v645 = vmul.f32 %v603, %v637
    %v646 = vmul.f32 %v605, %v638
    %v647 = vmul.f32 %v607, %v639
    %v648 = vpack.c.bf16 %v640, %v640
    %v649 = vpack.c.bf16 %v641, %v641
    %v650 = vpack.c.bf16 %v642, %v642
    %v651 = vpack.c.bf16 %v643, %v643
    %v652 = vpack.c.bf16 %v644, %v644
    %v653 = vpack.c.bf16 %v645, %v645
    %v654 = vpack.c.bf16 %v646, %v646
    %v655 = vpack.c.bf16 %v647, %v647
    %656 = vrot.lane.b32.xlu0 %v149, 64
    %v657 = vpop.permute.xlu0 %656
    %v659 = vsel %vm165, %v648, 0
    %vm661 = vcmask 1043456
    %v663 = vsel %vm661, %v657, 0
    %665 = vmatprep.subr.bf16.mxu0 0
    %666 = vmatpush1.bf16.msra.mxu0 %v663
    %667 = vmatprep.subr.bf16.mxu0 0
    %668 = vmatpush1.bf16.msra.mxu0 0
    %669 = vmatprep.subr.bf16.mxu0 0
    %670 = vmatpush1.bf16.msra.mxu0 0
    %671 = vmatprep.subr.bf16.mxu0 0
    %672 = vmatpush1.bf16.msra.mxu0 0
    %673 = vmatprep.subr.bf16.mxu0 0
    %674 = vmatpush1.bf16.msra.mxu0 0
    %675 = vmatprep.subr.bf16.mxu0 0
    %676 = vmatpush1.bf16.msra.mxu0 0
    %677 = vmatprep.subr.bf16.mxu0 0
    %678 = vmatpush1.bf16.msra.mxu0 0
    %679 = vmatprep.subr.bf16.mxu0 0
    %680 = vmatpush1.bf16.msra.mxu0 0
    %681 = vmatprep.subr.bf16.mxu0 0
    %682 = vmatpush1.bf16.msra.mxu0 0
    %683 = vmatprep.subr.bf16.mxu0 0
    %684 = vmatpush1.bf16.msra.mxu0 0
    %685 = vmatprep.subr.bf16.mxu0 0
    %686 = vmatpush1.bf16.msra.mxu0 0
    %687 = vmatprep.subr.bf16.mxu0 0
    %688 = vmatpush1.bf16.msra.mxu0 0
    %689 = vmatprep.subr.bf16.mxu0 0
    %690 = vmatpush1.bf16.msra.mxu0 0
    %691 = vmatprep.subr.bf16.mxu0 0
    %692 = vmatpush1.bf16.msra.mxu0 0
    %693 = vmatprep.subr.bf16.mxu0 0
    %694 = vmatpush1.bf16.msra.mxu0 0
    %695 = vmatprep.subr.bf16.mxu0 0
    %696 = vmatpush1.bf16.msra.mxu0 0
    %697 = vmatprep.mubr.bf16.mxu0 0
    %698 = vmatmul.mubr.bf16.gmra.mrb[0].mxu0 %v659
    %v699 = vpop.f32.mrb[0].mxu0
    %v700 = vadd.f32 0.0, %v699
    %v701 = vpop.f32.mrb[0].mxu0
    %v702 = vpop.f32.mrb[0].mxu0
    %v703 = vpop.f32.mrb[0].mxu0
    %704 = vdwg.mxu0
    %705 = vrot.lane.b32.xlu0 %v150, 64
    %v706 = vpop.permute.xlu0 %705
    %v708 = vsel %vm165, %v649, 0
    %v711 = vsel %vm661, %v706, 0
    %713 = vmatprep.subr.bf16.mxu0 0
    %714 = vmatpush1.bf16.msra.mxu0 %v711
    %715 = vmatprep.subr.bf16.mxu0 0
    %716 = vmatpush1.bf16.msra.mxu0 0
    %717 = vmatprep.subr.bf16.mxu0 0
    %718 = vmatpush1.bf16.msra.mxu0 0
    %719 = vmatprep.subr.bf16.mxu0 0
    %720 = vmatpush1.bf16.msra.mxu0 0
    %721 = vmatprep.subr.bf16.mxu0 0
    %722 = vmatpush1.bf16.msra.mxu0 0
    %723 = vmatprep.subr.bf16.mxu0 0
    %724 = vmatpush1.bf16.msra.mxu0 0
    %725 = vmatprep.subr.bf16.mxu0 0
    %726 = vmatpush1.bf16.msra.mxu0 0
    %727 = vmatprep.subr.bf16.mxu0 0
    %728 = vmatpush1.bf16.msra.mxu0 0
    %729 = vmatprep.subr.bf16.mxu0 0
    %730 = vmatpush1.bf16.msra.mxu0 0
    %731 = vmatprep.subr.bf16.mxu0 0
    %732 = vmatpush1.bf16.msra.mxu0 0
    %733 = vmatprep.subr.bf16.mxu0 0
    %734 = vmatpush1.bf16.msra.mxu0 0
    %735 = vmatprep.subr.bf16.mxu0 0
    %736 = vmatpush1.bf16.msra.mxu0 0
    %737 = vmatprep.subr.bf16.mxu0 0
    %738 = vmatpush1.bf16.msra.mxu0 0
    %739 = vmatprep.subr.bf16.mxu0 0
    %740 = vmatpush1.bf16.msra.mxu0 0
    %741 = vmatprep.subr.bf16.mxu0 0
    %742 = vmatpush1.bf16.msra.mxu0 0
    %743 = vmatprep.subr.bf16.mxu0 0
    %744 = vmatpush1.bf16.msra.mxu0 0
    %745 = vmatprep.mubr.bf16.mxu0 0
    %746 = vmatmul.mubr.bf16.gmra.mrb[0].mxu0 %v708
    %v747 = vpop.f32.mrb[0].mxu0
    %v748 = vadd.f32 0.0, %v747
    %v749 = vpop.f32.mrb[0].mxu0
    %v750 = vpop.f32.mrb[0].mxu0
    %v751 = vpop.f32.mrb[0].mxu0
    %752 = vdwg.mxu0
    %753 = vrot.lane.b32.xlu0 %v261, 64
    %v754 = vpop.permute.xlu0 %753
    %v756 = vsel %vm165, %v650, 0
    %v759 = vsel %vm661, %v754, 0
    %761 = vmatprep.subr.bf16.mxu0 0
    %762 = vmatpush1.bf16.msra.mxu0 %v759
    %763 = vmatprep.subr.bf16.mxu0 0
    %764 = vmatpush1.bf16.msra.mxu0 0
    %765 = vmatprep.subr.bf16.mxu0 0
    %766 = vmatpush1.bf16.msra.mxu0 0
    %767 = vmatprep.subr.bf16.mxu0 0
    %768 = vmatpush1.bf16.msra.mxu0 0
    %769 = vmatprep.subr.bf16.mxu0 0
    %770 = vmatpush1.bf16.msra.mxu0 0
    %771 = vmatprep.subr.bf16.mxu0 0
    %772 = vmatpush1.bf16.msra.mxu0 0
    %773 = vmatprep.subr.bf16.mxu0 0
    %774 = vmatpush1.bf16.msra.mxu0 0
    %775 = vmatprep.subr.bf16.mxu0 0
    %776 = vmatpush1.bf16.msra.mxu0 0
    %777 = vmatprep.subr.bf16.mxu0 0
    %778 = vmatpush1.bf16.msra.mxu0 0
    %779 = vmatprep.subr.bf16.mxu0 0
    %780 = vmatpush1.bf16.msra.mxu0 0
    %781 = vmatprep.subr.bf16.mxu0 0
    %782 = vmatpush1.bf16.msra.mxu0 0
    %783 = vmatprep.subr.bf16.mxu0 0
    %784 = vmatpush1.bf16.msra.mxu0 0
    %785 = vmatprep.subr.bf16.mxu0 0
    %786 = vmatpush1.bf16.msra.mxu0 0
    %787 = vmatprep.subr.bf16.mxu0 0
    %788 = vmatpush1.bf16.msra.mxu0 0
    %789 = vmatprep.subr.bf16.mxu0 0
    %790 = vmatpush1.bf16.msra.mxu0 0
    %791 = vmatprep.subr.bf16.mxu0 0
    %792 = vmatpush1.bf16.msra.mxu0 0
    %793 = vmatprep.mubr.bf16.mxu0 0
    %794 = vmatmul.mubr.bf16.gmra.mrb[0].mxu0 %v756
    %v795 = vpop.f32.mrb[0].mxu0
    %v796 = vadd.f32 0.0, %v795
    %v797 = vpop.f32.mrb[0].mxu0
    %v798 = vpop.f32.mrb[0].mxu0
    %v799 = vpop.f32.mrb[0].mxu0
    %800 = vdwg.mxu0
    %801 = vrot.lane.b32.xlu0 %v311, 64
    %v802 = vpop.permute.xlu0 %801
    %v804 = vsel %vm165, %v651, 0
    %v807 = vsel %vm661, %v802, 0
    %809 = vmatprep.subr.bf16.mxu0 0
    %810 = vmatpush1.bf16.msra.mxu0 %v807
    %811 = vmatprep.subr.bf16.mxu0 0
    %812 = vmatpush1.bf16.msra.mxu0 0
    %813 = vmatprep.subr.bf16.mxu0 0
    %814 = vmatpush1.bf16.msra.mxu0 0
    %815 = vmatprep.subr.bf16.mxu0 0
    %816 = vmatpush1.bf16.msra.mxu0 0
    %817 = vmatprep.subr.bf16.mxu0 0
    %818 = vmatpush1.bf16.msra.mxu0 0
    %819 = vmatprep.subr.bf16.mxu0 0
    %820 = vmatpush1.bf16.msra.mxu0 0
    %821 = vmatprep.subr.bf16.mxu0 0
    %822 = vmatpush1.bf16.msra.mxu0 0
    %823 = vmatprep.subr.bf16.mxu0 0
    %824 = vmatpush1.bf16.msra.mxu0 0
    %825 = vmatprep.subr.bf16.mxu0 0
    %826 = vmatpush1.bf16.msra.mxu0 0
    %827 = vmatprep.subr.bf16.mxu0 0
    %828 = vmatpush1.bf16.msra.mxu0 0
    %829 = vmatprep.subr.bf16.mxu0 0
    %830 = vmatpush1.bf16.msra.mxu0 0
    %831 = vmatprep.subr.bf16.mxu0 0
    %832 = vmatpush1.bf16.msra.mxu0 0
    %833 = vmatprep.subr.bf16.mxu0 0
    %834 = vmatpush1.bf16.msra.mxu0 0
    %835 = vmatprep.subr.bf16.mxu0 0
    %836 = vmatpush1.bf16.msra.mxu0 0
    %837 = vmatprep.subr.bf16.mxu0 0
    %838 = vmatpush1.bf16.msra.mxu0 0
    %839 = vmatprep.subr.bf16.mxu0 0
    %840 = vmatpush1.bf16.msra.mxu0 0
    %841 = vmatprep.mubr.bf16.mxu0 0
    %842 = vmatmul.mubr.bf16.gmra.mrb[0].mxu0 %v804
    %v843 = vpop.f32.mrb[0].mxu0
    %v844 = vadd.f32 0.0, %v843
    %v845 = vpop.f32.mrb[0].mxu0
    %v846 = vpop.f32.mrb[0].mxu0
    %v847 = vpop.f32.mrb[0].mxu0
    %848 = vdwg.mxu0
    %849 = vrot.lane.b32.xlu0 %v361, 64
    %v850 = vpop.permute.xlu0 %849
    %v852 = vsel %vm165, %v652, 0
    %v855 = vsel %vm661, %v850, 0
    %857 = vmatprep.subr.bf16.mxu0 0
    %858 = vmatpush1.bf16.msra.mxu0 %v855
    %859 = vmatprep.subr.bf16.mxu0 0
    %860 = vmatpush1.bf16.msra.mxu0 0
    %861 = vmatprep.subr.bf16.mxu0 0
    %862 = vmatpush1.bf16.msra.mxu0 0
    %863 = vmatprep.subr.bf16.mxu0 0
    %864 = vmatpush1.bf16.msra.mxu0 0
    %865 = vmatprep.subr.bf16.mxu0 0
    %866 = vmatpush1.bf16.msra.mxu0 0
    %867 = vmatprep.subr.bf16.mxu0 0
    %868 = vmatpush1.bf16.msra.mxu0 0
    %869 = vmatprep.subr.bf16.mxu0 0
    %870 = vmatpush1.bf16.msra.mxu0 0
    %871 = vmatprep.subr.bf16.mxu0 0
    %872 = vmatpush1.bf16.msra.mxu0 0
    %873 = vmatprep.subr.bf16.mxu0 0
    %874 = vmatpush1.bf16.msra.mxu0 0
    %875 = vmatprep.subr.bf16.mxu0 0
    %876 = vmatpush1.bf16.msra.mxu0 0
    %877 = vmatprep.subr.bf16.mxu0 0
    %878 = vmatpush1.bf16.msra.mxu0 0
    %879 = vmatprep.subr.bf16.mxu0 0
    %880 = vmatpush1.bf16.msra.mxu0 0
    %881 = vmatprep.subr.bf16.mxu0 0
    %882 = vmatpush1.bf16.msra.mxu0 0
    %883 = vmatprep.subr.bf16.mxu0 0
    %884 = vmatpush1.bf16.msra.mxu0 0
    %885 = vmatprep.subr.bf16.mxu0 0
    %886 = vmatpush1.bf16.msra.mxu0 0
    %887 = vmatprep.subr.bf16.mxu0 0
    %888 = vmatpush1.bf16.msra.mxu0 0
    %889 = vmatprep.mubr.bf16.mxu0 0
    %890 = vmatmul.mubr.bf16.gmra.mrb[0].mxu0 %v852
    %v891 = vpop.f32.mrb[0].mxu0
    %v892 = vadd.f32 0.0, %v891
    %v893 = vpop.f32.mrb[0].mxu0
    %v894 = vpop.f32.mrb[0].mxu0
    %v895 = vpop.f32.mrb[0].mxu0
    %896 = vdwg.mxu0
    %897 = vrot.lane.b32.xlu0 %v411, 64
    %v898 = vpop.permute.xlu0 %897
    %v900 = vsel %vm165, %v653, 0
    %v903 = vsel %vm661, %v898, 0
    %905 = vmatprep.subr.bf16.mxu0 0
    %906 = vmatpush1.bf16.msra.mxu0 %v903
    %907 = vmatprep.subr.bf16.mxu0 0
    %908 = vmatpush1.bf16.msra.mxu0 0
    %909 = vmatprep.subr.bf16.mxu0 0
    %910 = vmatpush1.bf16.msra.mxu0 0
    %911 = vmatprep.subr.bf16.mxu0 0
    %912 = vmatpush1.bf16.msra.mxu0 0
    %913 = vmatprep.subr.bf16.mxu0 0
    %914 = vmatpush1.bf16.msra.mxu0 0
    %915 = vmatprep.subr.bf16.mxu0 0
    %916 = vmatpush1.bf16.msra.mxu0 0
    %917 = vmatprep.subr.bf16.mxu0 0
    %918 = vmatpush1.bf16.msra.mxu0 0
    %919 = vmatprep.subr.bf16.mxu0 0
    %920 = vmatpush1.bf16.msra.mxu0 0
    %921 = vmatprep.subr.bf16.mxu0 0
    %922 = vmatpush1.bf16.msra.mxu0 0
    %923 = vmatprep.subr.bf16.mxu0 0
    %924 = vmatpush1.bf16.msra.mxu0 0
    %925 = vmatprep.subr.bf16.mxu0 0
    %926 = vmatpush1.bf16.msra.mxu0 0
    %927 = vmatprep.subr.bf16.mxu0 0
    %928 = vmatpush1.bf16.msra.mxu0 0
    %929 = vmatprep.subr.bf16.mxu0 0
    %930 = vmatpush1.bf16.msra.mxu0 0
    %931 = vmatprep.subr.bf16.mxu0 0
    %932 = vmatpush1.bf16.msra.mxu0 0
    %933 = vmatprep.subr.bf16.mxu0 0
    %934 = vmatpush1.bf16.msra.mxu0 0
    %935 = vmatprep.subr.bf16.mxu0 0
    %936 = vmatpush1.bf16.msra.mxu0 0
    %937 = vmatprep.mubr.bf16.mxu0 0
    %938 = vmatmul.mubr.bf16.gmra.mrb[0].mxu0 %v900
    %v939 = vpop.f32.mrb[0].mxu0
    %v940 = vadd.f32 0.0, %v939
    %v941 = vpop.f32.mrb[0].mxu0
    %v942 = vpop.f32.mrb[0].mxu0
    %v943 = vpop.f32.mrb[0].mxu0
    %944 = vdwg.mxu0
    %945 = vrot.lane.b32.xlu0 %v461, 64
    %v946 = vpop.permute.xlu0 %945
    %v948 = vsel %vm165, %v654, 0
    %v951 = vsel %vm661, %v946, 0
    %953 = vmatprep.subr.bf16.mxu0 0
    %954 = vmatpush1.bf16.msra.mxu0 %v951
    %955 = vmatprep.subr.bf16.mxu0 0
    %956 = vmatpush1.bf16.msra.mxu0 0
    %957 = vmatprep.subr.bf16.mxu0 0
    %958 = vmatpush1.bf16.msra.mxu0 0
    %959 = vmatprep.subr.bf16.mxu0 0
    %960 = vmatpush1.bf16.msra.mxu0 0
    %961 = vmatprep.subr.bf16.mxu0 0
    %962 = vmatpush1.bf16.msra.mxu0 0
    %963 = vmatprep.subr.bf16.mxu0 0
    %964 = vmatpush1.bf16.msra.mxu0 0
    %965 = vmatprep.subr.bf16.mxu0 0
    %966 = vmatpush1.bf16.msra.mxu0 0
    %967 = vmatprep.subr.bf16.mxu0 0
    %968 = vmatpush1.bf16.msra.mxu0 0
    %969 = vmatprep.subr.bf16.mxu0 0
    %970 = vmatpush1.bf16.msra.mxu0 0
    %971 = vmatprep.subr.bf16.mxu0 0
    %972 = vmatpush1.bf16.msra.mxu0 0
    %973 = vmatprep.subr.bf16.mxu0 0
    %974 = vmatpush1.bf16.msra.mxu0 0
    %975 = vmatprep.subr.bf16.mxu0 0
    %976 = vmatpush1.bf16.msra.mxu0 0
    %977 = vmatprep.subr.bf16.mxu0 0
    %978 = vmatpush1.bf16.msra.mxu0 0
    %979 = vmatprep.subr.bf16.mxu0 0
    %980 = vmatpush1.bf16.msra.mxu0 0
    %981 = vmatprep.subr.bf16.mxu0 0
    %982 = vmatpush1.bf16.msra.mxu0 0
    %983 = vmatprep.subr.bf16.mxu0 0
    %984 = vmatpush1.bf16.msra.mxu0 0
    %985 = vmatprep.mubr.bf16.mxu0 0
    %986 = vmatmul.mubr.bf16.gmra.mrb[0].mxu0 %v948
    %v987 = vpop.f32.mrb[0].mxu0
    %v988 = vadd.f32 0.0, %v987
    %v989 = vpop.f32.mrb[0].mxu0
    %v990 = vpop.f32.mrb[0].mxu0
    %v991 = vpop.f32.mrb[0].mxu0
    %992 = vdwg.mxu0
    %993 = vrot.lane.b32.xlu0 %v511, 64
    %v994 = vpop.permute.xlu0 %993
    %v996 = vsel %vm165, %v655, 0
    %v999 = vsel %vm661, %v994, 0
    %1001 = vmatprep.subr.bf16.mxu0 0
    %1002 = vmatpush1.bf16.msra.mxu0 %v999
    %1003 = vmatprep.subr.bf16.mxu0 0
    %1004 = vmatpush1.bf16.msra.mxu0 0
    %1005 = vmatprep.subr.bf16.mxu0 0
    %1006 = vmatpush1.bf16.msra.mxu0 0
    %1007 = vmatprep.subr.bf16.mxu0 0
    %1008 = vmatpush1.bf16.msra.mxu0 0
    %1009 = vmatprep.subr.bf16.mxu0 0
    %1010 = vmatpush1.bf16.msra.mxu0 0
    %1011 = vmatprep.subr.bf16.mxu0 0
    %1012 = vmatpush1.bf16.msra.mxu0 0
    %1013 = vmatprep.subr.bf16.mxu0 0
    %1014 = vmatpush1.bf16.msra.mxu0 0
    %1015 = vmatprep.subr.bf16.mxu0 0
    %1016 = vmatpush1.bf16.msra.mxu0 0
    %1017 = vmatprep.subr.bf16.mxu0 0
    %1018 = vmatpush1.bf16.msra.mxu0 0
    %1019 = vmatprep.subr.bf16.mxu0 0
    %1020 = vmatpush1.bf16.msra.mxu0 0
    %1021 = vmatprep.subr.bf16.mxu0 0
    %1022 = vmatpush1.bf16.msra.mxu0 0
    %1023 = vmatprep.subr.bf16.mxu0 0
    %1024 = vmatpush1.bf16.msra.mxu0 0
    %1025 = vmatprep.subr.bf16.mxu0 0
    %1026 = vmatpush1.bf16.msra.mxu0 0
    %1027 = vmatprep.subr.bf16.mxu0 0
    %1028 = vmatpush1.bf16.msra.mxu0 0
    %1029 = vmatprep.subr.bf16.mxu0 0
    %1030 = vmatpush1.bf16.msra.mxu0 0
    %1031 = vmatprep.subr.bf16.mxu0 0
    %1032 = vmatpush1.bf16.msra.mxu0 0
    %1033 = vmatprep.mubr.bf16.mxu0 0
    %1034 = vmatmul.mubr.bf16.gmra.mrb[0].mxu0 %v996
    %v1035 = vpop.f32.mrb[0].mxu0
    %v1036 = vadd.f32 0.0, %v1035
    %v1037 = vpop.f32.mrb[0].mxu0
    %v1038 = vpop.f32.mrb[0].mxu0
    %v1039 = vpop.f32.mrb[0].mxu0
    %1040 = vdwg.mxu0
    %1043 = vrot.lane.b32.xlu0 %v796, 8
    %v1044 = vpop.permute.xlu0 %1043
    %1045 = vrot.lane.b32.xlu0 %v844, 8
    %v1046 = vpop.permute.xlu0 %1045
    %1051 = vrot.lane.b32.xlu0 %v892, 16
    %v1052 = vpop.permute.xlu0 %1051
    %1053 = vrot.lane.b32.xlu0 %v940, 16
    %v1054 = vpop.permute.xlu0 %1053
    %1059 = vrot.lane.b32.xlu0 %v988, 24
    %v1060 = vpop.permute.xlu0 %1059
    %1061 = vrot.lane.b32.xlu0 %v1036, 24
    %v1062 = vpop.permute.xlu0 %1061
    %v1065 = vsel %vm165, %v700, %v1044
    %v1066 = vsel %vm165, %v748, %v1046
    %vm1067 = vcmask 130048
    %v1068 = vsel %vm1067, %v1065, %v1052
    %v1069 = vsel %vm1067, %v1066, %v1054
    %vm1070 = vcmask 195584
    %v1071 = vsel %vm1070, %v1068, %v1060
    %v1072 = vsel %vm1070, %v1069, %v1062
    %v1073 = vpack.c.bf16 %v1072, %v1071
    %v1074 = vlaneseq
    %v1075 = vshrl.u32 %v1074, 7
    %v1076 = vsub.s32 0, %v1075
    %v1077 = vrot.slane %v56, %v1076
    %v1082 = vunpack.c.l.b16 %v67
    %v1083 = vunpack.c.l.b16 %v68
    %v1084 = vunpack.c.l.b16 %v69
    %v1085 = vunpack.c.l.b16 %v70
    %v1086 = vpack.c.b16 %v1083, %v1082
    %v1087 = vpack.c.b16 %v1085, %v1084
    %v1091 = vsel %vm100, %v1073, 0
    %1093 = vmatprep.subr.bf16.mxu0 0
    %1094 = vmatpush1.bf16.msra.mxu0 %v1086
    %1095 = vmatprep.subr.bf16.mxu0 0
    %1096 = vmatpush1.bf16.msra.mxu0 %v1087
    %1097 = vmatprep.subr.bf16.mxu0 0
    %1098 = vmatpush1.bf16.msra.mxu0 0
    %1099 = vmatprep.subr.bf16.mxu0 0
    %1100 = vmatpush1.bf16.msra.mxu0 0
    %1101 = vmatprep.subr.bf16.mxu0 0
    %1102 = vmatpush1.bf16.msra.mxu0 0
    %1103 = vmatprep.subr.bf16.mxu0 0
    %1104 = vmatpush1.bf16.msra.mxu0 0
    %1105 = vmatprep.subr.bf16.mxu0 0
    %1106 = vmatpush1.bf16.msra.mxu0 0
    %1107 = vmatprep.subr.bf16.mxu0 0
    %1108 = vmatpush1.bf16.msra.mxu0 0
    %1109 = vmatprep.subr.bf16.mxu0 0
    %1110 = vmatpush1.bf16.msra.mxu0 0
    %1111 = vmatprep.subr.bf16.mxu0 0
    %1112 = vmatpush1.bf16.msra.mxu0 0
    %1113 = vmatprep.subr.bf16.mxu0 0
    %1114 = vmatpush1.bf16.msra.mxu0 0
    %1115 = vmatprep.subr.bf16.mxu0 0
    %1116 = vmatpush1.bf16.msra.mxu0 0
    %1117 = vmatprep.subr.bf16.mxu0 0
    %1118 = vmatpush1.bf16.msra.mxu0 0
    %1119 = vmatprep.subr.bf16.mxu0 0
    %1120 = vmatpush1.bf16.msra.mxu0 0
    %1121 = vmatprep.subr.bf16.mxu0 0
    %1122 = vmatpush1.bf16.msra.mxu0 0
    %1123 = vmatprep.subr.bf16.mxu0 0
    %1124 = vmatpush1.bf16.msra.mxu0 0
    %1125 = vmatprep.mubr.bf16.mxu0 0
    %1126 = vmatmul.mubr.bf16.gmra.mrb[0].mxu0 %v1091
    %v1127 = vpop.f32.mrb[0].mxu0
    %v1128 = vadd.f32 %v1077, %v1127
    %v1129 = vpop.f32.mrb[0].mxu0
    %v1130 = vpop.f32.mrb[0].mxu0
    %v1131 = vadd.f32 %v1077, %v1130
    %v1132 = vpop.f32.mrb[0].mxu0
    %1133 = vdwg.mxu0
    %v1134 = vadd.f32 %v53, %v1128
    %v1135 = vadd.f32 %v54, %v1131
    %v1136 = vsel %vm100, %v1134, 0.0
    %1137 = vadd.xlane.f32.xlu0 %v1136
    %v1138 = vpop.xlane.xlu0 %1137
    %v1139 = vsel %vm100, %v1135, 0.0
    %1140 = vadd.xlane.f32.xlu0 %v1139
    %v1141 = vpop.xlane.xlu0 %1140
    %v1142 = vrcp.pop 32.0
    %v1143 = vmul.f32 %v1138, %v1142
    %v1144 = vmul.f32 %v1141, %v1142
    %v1145 = vmul.f32 %v1134, %v1134
    %v1146 = vmul.f32 %v1135, %v1135
    %v1147 = vsel %vm100, %v1145, 0.0
    %1148 = vadd.xlane.f32.xlu0 %v1147
    %v1149 = vpop.xlane.xlu0 %1148
    %v1150 = vsel %vm100, %v1146, 0.0
    %1151 = vadd.xlane.f32.xlu0 %v1150
    %v1152 = vpop.xlane.xlu0 %1151
    %v1153 = vmul.f32 %v1149, %v1142
    %v1154 = vmul.f32 %v1152, %v1142
    %v1155 = vmul.f32 %v1143, %v1143
    %v1156 = vmul.f32 %v1144, %v1144
    %v1157 = vsub.f32 %v1153, %v1155
    %v1158 = vsub.f32 %v1154, %v1156
    %v1159 = vsub.f32 %v1134, %v1143
    %v1160 = vsub.f32 %v1135, %v1144
    %v1161 = vadd.f32 %v1157, 1e-05
    %v1162 = vadd.f32 %v1158, 1e-05
    %v1163 = vrsqrt.pop %v1161
    %v1164 = vrsqrt.pop %v1162
    %v1165 = vmul.f32 %v1159, %v1163
    %v1166 = vmul.f32 %v1160, %v1164
    %v1167 = vlaneseq
    %v1168 = vshrl.u32 %v1167, 7
    %v1169 = vsub.s32 0, %v1168
    %v1170 = vrot.slane %v57, %v1169
    %v1171 = vmul.f32 %v1165, %v1170
    %v1172 = vmul.f32 %v1166, %v1170
    %v1173 = vlaneseq
    %v1174 = vshrl.u32 %v1173, 7
    %v1175 = vsub.s32 0, %v1174
    %v1176 = vrot.slane %v58, %v1175
    %v1177 = vadd.f32 %v1171, %v1176
    %v1178 = vadd.f32 %v1172, %v1176
    %v1179 = vpack.c.bf16 %v1178, %v1177
    %v1180 = vlaneseq
    %v1181 = vshrl.u32 %v1180, 7
    %v1182 = vsub.s32 0, %v1181
    %v1183 = vrot.slane %v61, %v1182
    %v1188 = vunpack.c.l.b16 %v71
    %v1189 = vunpack.c.l.b16 %v72
    %v1190 = vunpack.c.l.b16 %v73
    %v1191 = vunpack.c.l.b16 %v74
    %v1192 = vpack.c.b16 %v1189, %v1188
    %v1193 = vpack.c.b16 %v1191, %v1190
    %v1197 = vsel %vm100, %v1179, 0
    %1199 = vmatprep.subr.bf16.mxu0 0
    %1200 = vmatpush1.bf16.msra.mxu0 %v1192
    %1201 = vmatprep.subr.bf16.mxu0 0
    %1202 = vmatpush1.bf16.msra.mxu0 %v1193
    %1203 = vmatprep.subr.bf16.mxu0 0
    %1204 = vmatpush1.bf16.msra.mxu0 0
    %1205 = vmatprep.subr.bf16.mxu0 0
    %1206 = vmatpush1.bf16.msra.mxu0 0
    %1207 = vmatprep.subr.bf16.mxu0 0
    %1208 = vmatpush1.bf16.msra.mxu0 0
    %1209 = vmatprep.subr.bf16.mxu0 0
    %1210 = vmatpush1.bf16.msra.mxu0 0
    %1211 = vmatprep.subr.bf16.mxu0 0
    %1212 = vmatpush1.bf16.msra.mxu0 0
    %1213 = vmatprep.subr.bf16.mxu0 0
    %1214 = vmatpush1.bf16.msra.mxu0 0
    %1215 = vmatprep.subr.bf16.mxu0 0
    %1216 = vmatpush1.bf16.msra.mxu0 0
    %1217 = vmatprep.subr.bf16.mxu0 0
    %1218 = vmatpush1.bf16.msra.mxu0 0
    %1219 = vmatprep.subr.bf16.mxu0 0
    %1220 = vmatpush1.bf16.msra.mxu0 0
    %1221 = vmatprep.subr.bf16.mxu0 0
    %1222 = vmatpush1.bf16.msra.mxu0 0
    %1223 = vmatprep.subr.bf16.mxu0 0
    %1224 = vmatpush1.bf16.msra.mxu0 0
    %1225 = vmatprep.subr.bf16.mxu0 0
    %1226 = vmatpush1.bf16.msra.mxu0 0
    %1227 = vmatprep.subr.bf16.mxu0 0
    %1228 = vmatpush1.bf16.msra.mxu0 0
    %1229 = vmatprep.subr.bf16.mxu0 0
    %1230 = vmatpush1.bf16.msra.mxu0 0
    %1231 = vmatprep.mubr.bf16.mxu0 0
    %1232 = vmatmul.mubr.bf16.gmra.mrb[0].mxu0 %v1197
    %v1233 = vpop.f32.mrb[0].mxu0
    %v1234 = vadd.f32 %v1183, %v1233
    %v1235 = vpop.f32.mrb[0].mxu0
    %v1236 = vpop.f32.mrb[0].mxu0
    %v1237 = vadd.f32 %v1183, %v1236
    %v1238 = vpop.f32.mrb[0].mxu0
    %1239 = vdwg.mxu0
    %v1240 = vmax.f32 %v1234, 0.0
    %v1241 = vmax.f32 %v1237, 0.0
    %v1242 = vpack.c.bf16 %v1241, %v1240
    %v1243 = vlaneseq
    %v1244 = vshrl.u32 %v1243, 7
    %v1245 = vsub.s32 0, %v1244
    %v1246 = vrot.slane %v62, %v1245
    %v1255 = vunpack.c.l.b16 %v75
    %v1256 = vunpack.c.l.b16 %v76
    %v1257 = vunpack.c.l.b16 %v77
    %v1258 = vunpack.c.l.b16 %v78
    %v1259 = vunpack.c.l.b16 %v79
    %v1260 = vunpack.c.l.b16 %v80
    %v1261 = vunpack.c.l.b16 %v81
    %v1262 = vunpack.c.l.b16 %v82
    %v1263 = vpack.c.b16 %v1256, %v1255
    %v1264 = vpack.c.b16 %v1258, %v1257
    %v1265 = vpack.c.b16 %v1260, %v1259
    %v1266 = vpack.c.b16 %v1262, %v1261
    %vm1271 = vcmask 523264
    %v1273 = vsel %vm1271, %v1242, 0
    %1275 = vmatprep.subr.bf16.mxu0 0
    %1276 = vmatpush1.bf16.msra.mxu0 %v1263
    %1277 = vmatprep.subr.bf16.mxu0 0
    %1278 = vmatpush1.bf16.msra.mxu0 %v1264
    %1279 = vmatprep.subr.bf16.mxu0 0
    %1280 = vmatpush1.bf16.msra.mxu0 %v1265
    %1281 = vmatprep.subr.bf16.mxu0 0
    %1282 = vmatpush1.bf16.msra.mxu0 %v1266
    %1283 = vmatprep.subr.bf16.mxu0 0
    %1284 = vmatpush1.bf16.msra.mxu0 0
    %1285 = vmatprep.subr.bf16.mxu0 0
    %1286 = vmatpush1.bf16.msra.mxu0 0
    %1287 = vmatprep.subr.bf16.mxu0 0
    %1288 = vmatpush1.bf16.msra.mxu0 0
    %1289 = vmatprep.subr.bf16.mxu0 0
    %1290 = vmatpush1.bf16.msra.mxu0 0
    %1291 = vmatprep.subr.bf16.mxu0 0
    %1292 = vmatpush1.bf16.msra.mxu0 0
    %1293 = vmatprep.subr.bf16.mxu0 0
    %1294 = vmatpush1.bf16.msra.mxu0 0
    %1295 = vmatprep.subr.bf16.mxu0 0
    %1296 = vmatpush1.bf16.msra.mxu0 0
    %1297 = vmatprep.subr.bf16.mxu0 0
    %1298 = vmatpush1.bf16.msra.mxu0 0
    %1299 = vmatprep.subr.bf16.mxu0 0
    %1300 = vmatpush1.bf16.msra.mxu0 0
    %1301 = vmatprep.subr.bf16.mxu0 0
    %1302 = vmatpush1.bf16.msra.mxu0 0
    %1303 = vmatprep.subr.bf16.mxu0 0
    %1304 = vmatpush1.bf16.msra.mxu0 0
    %1305 = vmatprep.subr.bf16.mxu0 0
    %1306 = vmatpush1.bf16.msra.mxu0 0
    %1307 = vmatprep.mubr.bf16.mxu0 0
    %1308 = vmatmul.mubr.bf16.gmra.mrb[0].mxu0 %v1273
    %v1309 = vpop.f32.mrb[0].mxu0
    %v1310 = vadd.f32 %v1246, %v1309
    %v1311 = vpop.f32.mrb[0].mxu0
    %v1312 = vpop.f32.mrb[0].mxu0
    %v1313 = vadd.f32 %v1246, %v1312
    %v1314 = vpop.f32.mrb[0].mxu0
    %1315 = vdwg.mxu0
    %v1316 = vadd.f32 %v1177, %v1310
    %v1317 = vadd.f32 %v1178, %v1313
    %v1318 = vsel %vm100, %v1316, 0.0
    %1319 = vadd.xlane.f32.xlu0 %v1318
    %v1320 = vpop.xlane.xlu0 %1319
    %v1321 = vsel %vm100, %v1317, 0.0
    %1322 = vadd.xlane.f32.xlu0 %v1321
    %v1323 = vpop.xlane.xlu0 %1322
    %v1324 = vmul.f32 %v1320, %v1142
    %v1325 = vmul.f32 %v1323, %v1142
    %v1326 = vmul.f32 %v1316, %v1316
    %v1327 = vmul.f32 %v1317, %v1317
    %v1328 = vsel %vm100, %v1326, 0.0
    %1329 = vadd.xlane.f32.xlu0 %v1328
    %v1330 = vpop.xlane.xlu0 %1329
    %v1331 = vsel %vm100, %v1327, 0.0
    %1332 = vadd.xlane.f32.xlu0 %v1331
    %v1333 = vpop.xlane.xlu0 %1332
    %v1334 = vmul.f32 %v1330, %v1142
    %v1335 = vmul.f32 %v1333, %v1142
    %v1336 = vmul.f32 %v1324, %v1324
    %v1337 = vmul.f32 %v1325, %v1325
    %v1338 = vsub.f32 %v1334, %v1336
    %v1339 = vsub.f32 %v1335, %v1337
    %v1340 = vsub.f32 %v1316, %v1324
    %v1341 = vsub.f32 %v1317, %v1325
    %v1342 = vadd.f32 %v1338, 1e-05
    %v1343 = vadd.f32 %v1339, 1e-05
    %v1344 = vrsqrt.pop %v1342
    %v1345 = vrsqrt.pop %v1343
    %v1346 = vmul.f32 %v1340, %v1344
    %v1347 = vmul.f32 %v1341, %v1345
    %v1348 = vlaneseq
    %v1349 = vshrl.u32 %v1348, 7
    %v1350 = vsub.s32 0, %v1349
    %v1351 = vrot.slane %v59, %v1350
    %v1352 = vmul.f32 %v1346, %v1351
    %v1353 = vmul.f32 %v1347, %v1351
    %v1354 = vlaneseq
    %v1355 = vshrl.u32 %v1354, 7
    %v1356 = vsub.s32 0, %v1355
    %v1357 = vrot.slane %v60, %v1356
    %v1358 = vadd.f32 %v1352, %v1357
    %v1359 = vadd.f32 %v1353, %v1357
    %v1360 = vld [vmem:[#allocation5 + $0x8] sm:$0x1]
    %v1361 = vld [vmem:[#allocation5 + $0x9] sm:$0x1]
    %v1362 = vld [vmem:[#allocation5 + $0xa] sm:$0x1]
    %v1363 = vld [vmem:[#allocation5 + $0xb] sm:$0x1]
    %v1364 = vld [vmem:[#allocation5 + $0xc] sm:$0x1]
    %v1365 = vld [vmem:[#allocation5 + $0xd] sm:$0x1]
    %v1366 = vld [vmem:[#allocation5 + $0xe] sm:$0x1]
    %v1367 = vld [vmem:[#allocation5 + $0xf] sm:$0x1]
    %s1368 = scalar_lea.vmem %s1, 16
    %v1369 = vld [vmem:[%s1368] sm:$0xf]
    %v1370 = vld [vmem:[%s1368 + $0x4] sm:$0xf]
    %v1371 = vld [vmem:[%s1368 + $0x8] sm:$0xf]
    %v1372 = vld [vmem:[%s1368 + $0xc] sm:$0xf]
    %s1373 = scalar_lea.vmem %s2, 16
    %v1374 = vld [vmem:[%s1373] sm:$0xf]
    %v1375 = vld [vmem:[%s1373 + $0x4] sm:$0xf]
    %v1376 = vld [vmem:[%s1373 + $0x8] sm:$0xf]
    %v1377 = vld [vmem:[%s1373 + $0xc] sm:$0xf]
    %s1378 = scalar_lea.vmem %s3, 16
    %v1379 = vld [vmem:[%s1378] sm:$0xf]
    %v1380 = vld [vmem:[%s1378 + $0x4] sm:$0xf]
    %v1381 = vld [vmem:[%s1378 + $0x8] sm:$0xf]
    %v1382 = vld [vmem:[%s1378 + $0xc] sm:$0xf]
    %s1383 = scalar_lea.vmem %s4, 32
    %v1384 = vld [vmem:[%s1383] sm:$0xf]
    %v1385 = vld [vmem:[%s1383 + $0x4] sm:$0xf]
    %v1386 = vld [vmem:[%s1383 + $0x8] sm:$0xf]
    %v1387 = vld [vmem:[%s1383 + $0xc] sm:$0xf]
    %v1388 = vld [vmem:[%s1383 + $0x10] sm:$0xf]
    %v1389 = vld [vmem:[%s1383 + $0x14] sm:$0xf]
    %v1390 = vld [vmem:[%s1383 + $0x18] sm:$0xf]
    %v1391 = vld [vmem:[%s1383 + $0x1c] sm:$0xf]
    %v1392 = vpack.c.bf16 %v1359, %v1358
    %v1393 = vlaneseq
    %v1394 = vshrl.u32 %v1393, 7
    %v1395 = vsub.s32 0, %v1394
    %v1396 = vrot.slane %v1360, %v1395
    %v1401 = vunpack.c.l.b16 %v1369
    %v1402 = vunpack.c.l.b16 %v1370
    %v1403 = vunpack.c.l.b16 %v1371
    %v1404 = vunpack.c.l.b16 %v1372
    %v1405 = vpack.c.b16 %v1402, %v1401
    %v1406 = vpack.c.b16 %v1404, %v1403
    %v1410 = vsel %vm100, %v1392, 0
    %1412 = vmatprep.subr.bf16.mxu0 0
    %1413 = vmatpush1.bf16.msra.mxu0 %v1405
    %1414 = vmatprep.subr.bf16.mxu0 0
    %1415 = vmatpush1.bf16.msra.mxu0 %v1406
    %1416 = vmatprep.subr.bf16.mxu0 0
    %1417 = vmatpush1.bf16.msra.mxu0 0
    %1418 = vmatprep.subr.bf16.mxu0 0
    %1419 = vmatpush1.bf16.msra.mxu0 0
    %1420 = vmatprep.subr.bf16.mxu0 0
    %1421 = vmatpush1.bf16.msra.mxu0 0
    %1422 = vmatprep.subr.bf16.mxu0 0
    %1423 = vmatpush1.bf16.msra.mxu0 0
    %1424 = vmatprep.subr.bf16.mxu0 0
    %1425 = vmatpush1.bf16.msra.mxu0 0
    %1426 = vmatprep.subr.bf16.mxu0 0
    %1427 = vmatpush1.bf16.msra.mxu0 0
    %1428 = vmatprep.subr.bf16.mxu0 0
    %1429 = vmatpush1.bf16.msra.mxu0 0
    %1430 = vmatprep.subr.bf16.mxu0 0
    %1431 = vmatpush1.bf16.msra.mxu0 0
    %1432 = vmatprep.subr.bf16.mxu0 0
    %1433 = vmatpush1.bf16.msra.mxu0 0
    %1434 = vmatprep.subr.bf16.mxu0 0
    %1435 = vmatpush1.bf16.msra.mxu0 0
    %1436 = vmatprep.subr.bf16.mxu0 0
    %1437 = vmatpush1.bf16.msra.mxu0 0
    %1438 = vmatprep.subr.bf16.mxu0 0
    %1439 = vmatpush1.bf16.msra.mxu0 0
    %1440 = vmatprep.subr.bf16.mxu0 0
    %1441 = vmatpush1.bf16.msra.mxu0 0
    %1442 = vmatprep.subr.bf16.mxu0 0
    %1443 = vmatpush1.bf16.msra.mxu0 0
    %1444 = vmatprep.mubr.bf16.mxu0 0
    %1445 = vmatmul.mubr.bf16.gmra.mrb[0].mxu0 %v1410
    %v1446 = vpop.f32.mrb[0].mxu0
    %v1447 = vadd.f32 %v1396, %v1446
    %v1448 = vpop.f32.mrb[0].mxu0
    %v1449 = vpop.f32.mrb[0].mxu0
    %v1450 = vadd.f32 %v1396, %v1449
    %v1451 = vpop.f32.mrb[0].mxu0
    %1452 = vdwg.mxu0
    %v1453 = vpack.c.bf16 %v1450, %v1447
    %v1455 = vunpack.c.l.b16 %v1453
    %v1456 = vunpack.c.h.b16 %v1453
    %v1457 = vpack.c.b16 %v1455, %v1455
    %v1458 = vpack.c.b16 %v1456, %v1456
    %1459 = vrot.lane.b32.xlu0 %v1457, 120
    %v1460 = vpop.permute.xlu0 %1459
    %1461 = vrot.lane.b32.xlu0 %v1458, 120
    %v1462 = vpop.permute.xlu0 %1461
    %1463 = vrot.lane.b32.xlu0 %v1457, 112
    %v1464 = vpop.permute.xlu0 %1463
    %1465 = vrot.lane.b32.xlu0 %v1458, 112
    %v1466 = vpop.permute.xlu0 %1465
    %1467 = vrot.lane.b32.xlu0 %v1457, 104
    %v1468 = vpop.permute.xlu0 %1467
    %1469 = vrot.lane.b32.xlu0 %v1458, 104
    %v1470 = vpop.permute.xlu0 %1469
    %1471 = vrot.lane.b32.xlu0 %v1457, 96
    %v1472 = vpop.permute.xlu0 %1471
    %v1474 = vsel %vm165, %v1457, 0
    %v1477 = vsel %vm165, %v1472, 0
    %1479 = vmatprep.subr.bf16.mxu0 0
    %1480 = vmatpush1.bf16.xpose.msra.mxu0 %v1477
    %1481 = vmatprep.subr.bf16.mxu0 0
    %1482 = vmatpush1.bf16.xpose.msra.mxu0 0
    %1483 = vmatprep.subr.bf16.mxu0 0
    %1484 = vmatpush1.bf16.xpose.msra.mxu0 0
    %1485 = vmatprep.subr.bf16.mxu0 0
    %1486 = vmatpush1.bf16.xpose.msra.mxu0 0
    %1487 = vmatprep.subr.bf16.mxu0 0
    %1488 = vmatpush1.bf16.xpose.msra.mxu0 0
    %1489 = vmatprep.subr.bf16.mxu0 0
    %1490 = vmatpush1.bf16.xpose.msra.mxu0 0
    %1491 = vmatprep.subr.bf16.mxu0 0
    %1492 = vmatpush1.bf16.xpose.msra.mxu0 0
    %1493 = vmatprep.subr.bf16.mxu0 0
    %1494 = vmatpush1.bf16.xpose.msra.mxu0 0
    %1495 = vmatprep.subr.bf16.mxu0 0
    %1496 = vmatpush1.bf16.xpose.msra.mxu0 0
    %1497 = vmatprep.subr.bf16.mxu0 0
    %1498 = vmatpush1.bf16.xpose.msra.mxu0 0
    %1499 = vmatprep.subr.bf16.mxu0 0
    %1500 = vmatpush1.bf16.xpose.msra.mxu0 0
    %1501 = vmatprep.subr.bf16.mxu0 0
    %1502 = vmatpush1.bf16.xpose.msra.mxu0 0
    %1503 = vmatprep.subr.bf16.mxu0 0
    %1504 = vmatpush1.bf16.xpose.msra.mxu0 0
    %1505 = vmatprep.subr.bf16.mxu0 0
    %1506 = vmatpush1.bf16.xpose.msra.mxu0 0
    %1507 = vmatprep.subr.bf16.mxu0 0
    %1508 = vmatpush1.bf16.xpose.msra.mxu0 0
    %1509 = vmatprep.subr.bf16.mxu0 0
    %1510 = vmatpush1.bf16.xpose.msra.mxu0 0
    %1511 = vmatprep.mubr.bf16.mxu0 0
    %1512 = vmatmul.mubr.bf16.gmra.mrb[0].mxu0 %v1474
    %v1513 = vpop.f32.mrb[0].mxu0
    %v1514 = vadd.f32 0.0, %v1513
    %v1515 = vpop.f32.mrb[0].mxu0
    %v1516 = vpop.f32.mrb[0].mxu0
    %v1517 = vpop.f32.mrb[0].mxu0
    %1518 = vdwg.mxu0
    %1519 = vrot.lane.b32.xlu0 %v1458, 96
    %v1520 = vpop.permute.xlu0 %1519
    %v1522 = vsel %vm165, %v1458, 0
    %v1525 = vsel %vm165, %v1520, 0
    %1527 = vmatprep.subr.bf16.mxu0 0
    %1528 = vmatpush1.bf16.xpose.msra.mxu0 %v1525
    %1529 = vmatprep.subr.bf16.mxu0 0
    %1530 = vmatpush1.bf16.xpose.msra.mxu0 0
    %1531 = vmatprep.subr.bf16.mxu0 0
    %1532 = vmatpush1.bf16.xpose.msra.mxu0 0
    %1533 = vmatprep.subr.bf16.mxu0 0
    %1534 = vmatpush1.bf16.xpose.msra.mxu0 0
    %1535 = vmatprep.subr.bf16.mxu0 0
    %1536 = vmatpush1.bf16.xpose.msra.mxu0 0
    %1537 = vmatprep.subr.bf16.mxu0 0
    %1538 = vmatpush1.bf16.xpose.msra.mxu0 0
    %1539 = vmatprep.subr.bf16.mxu0 0
    %1540 = vmatpush1.bf16.xpose.msra.mxu0 0
    %1541 = vmatprep.subr.bf16.mxu0 0
    %1542 = vmatpush1.bf16.xpose.msra.mxu0 0
    %1543 = vmatprep.subr.bf16.mxu0 0
    %1544 = vmatpush1.bf16.xpose.msra.mxu0 0
    %1545 = vmatprep.subr.bf16.mxu0 0
    %1546 = vmatpush1.bf16.xpose.msra.mxu0 0
    %1547 = vmatprep.subr.bf16.mxu0 0
    %1548 = vmatpush1.bf16.xpose.msra.mxu0 0
    %1549 = vmatprep.subr.bf16.mxu0 0
    %1550 = vmatpush1.bf16.xpose.msra.mxu0 0
    %1551 = vmatprep.subr.bf16.mxu0 0
    %1552 = vmatpush1.bf16.xpose.msra.mxu0 0
    %1553 = vmatprep.subr.bf16.mxu0 0
    %1554 = vmatpush1.bf16.xpose.msra.mxu0 0
    %1555 = vmatprep.subr.bf16.mxu0 0
    %1556 = vmatpush1.bf16.xpose.msra.mxu0 0
    %1557 = vmatprep.subr.bf16.mxu0 0
    %1558 = vmatpush1.bf16.xpose.msra.mxu0 0
    %1559 = vmatprep.mubr.bf16.mxu0 0
    %1560 = vmatmul.mubr.bf16.gmra.mrb[0].mxu0 %v1522
    %v1561 = vpop.f32.mrb[0].mxu0
    %v1562 = vadd.f32 0.0, %v1561
    %v1563 = vpop.f32.mrb[0].mxu0
    %v1564 = vpop.f32.mrb[0].mxu0
    %v1565 = vpop.f32.mrb[0].mxu0
    %1566 = vdwg.mxu0
    %v1567 = vunpack.c.l.b16 %v1460
    %v1568 = vpack.c.b16 %v1567, %v1567
    %1569 = vrot.lane.b32.xlu0 %v1568, 96
    %v1570 = vpop.permute.xlu0 %1569
    %v1572 = vsel %vm165, %v1460, 0
    %v1575 = vsel %vm165, %v1570, 0
    %1577 = vmatprep.subr.bf16.mxu0 0
    %1578 = vmatpush1.bf16.xpose.msra.mxu0 %v1575
    %1579 = vmatprep.subr.bf16.mxu0 0
    %1580 = vmatpush1.bf16.xpose.msra.mxu0 0
    %1581 = vmatprep.subr.bf16.mxu0 0
    %1582 = vmatpush1.bf16.xpose.msra.mxu0 0
    %1583 = vmatprep.subr.bf16.mxu0 0
    %1584 = vmatpush1.bf16.xpose.msra.mxu0 0
    %1585 = vmatprep.subr.bf16.mxu0 0
    %1586 = vmatpush1.bf16.xpose.msra.mxu0 0
    %1587 = vmatprep.subr.bf16.mxu0 0
    %1588 = vmatpush1.bf16.xpose.msra.mxu0 0
    %1589 = vmatprep.subr.bf16.mxu0 0
    %1590 = vmatpush1.bf16.xpose.msra.mxu0 0
    %1591 = vmatprep.subr.bf16.mxu0 0
    %1592 = vmatpush1.bf16.xpose.msra.mxu0 0
    %1593 = vmatprep.subr.bf16.mxu0 0
    %1594 = vmatpush1.bf16.xpose.msra.mxu0 0
    %1595 = vmatprep.subr.bf16.mxu0 0
    %1596 = vmatpush1.bf16.xpose.msra.mxu0 0
    %1597 = vmatprep.subr.bf16.mxu0 0
    %1598 = vmatpush1.bf16.xpose.msra.mxu0 0
    %1599 = vmatprep.subr.bf16.mxu0 0
    %1600 = vmatpush1.bf16.xpose.msra.mxu0 0
    %1601 = vmatprep.subr.bf16.mxu0 0
    %1602 = vmatpush1.bf16.xpose.msra.mxu0 0
    %1603 = vmatprep.subr.bf16.mxu0 0
    %1604 = vmatpush1.bf16.xpose.msra.mxu0 0
    %1605 = vmatprep.subr.bf16.mxu0 0
    %1606 = vmatpush1.bf16.xpose.msra.mxu0 0
    %1607 = vmatprep.subr.bf16.mxu0 0
    %1608 = vmatpush1.bf16.xpose.msra.mxu0 0
    %1609 = vmatprep.mubr.bf16.mxu0 0
    %1610 = vmatmul.mubr.bf16.gmra.mrb[0].mxu0 %v1572
    %v1611 = vpop.f32.mrb[0].mxu0
    %v1612 = vadd.f32 0.0, %v1611
    %v1613 = vpop.f32.mrb[0].mxu0
    %v1614 = vpop.f32.mrb[0].mxu0
    %v1615 = vpop.f32.mrb[0].mxu0
    %1616 = vdwg.mxu0
    %v1617 = vunpack.c.l.b16 %v1462
    %v1618 = vpack.c.b16 %v1617, %v1617
    %1619 = vrot.lane.b32.xlu0 %v1618, 96
    %v1620 = vpop.permute.xlu0 %1619
    %v1622 = vsel %vm165, %v1462, 0
    %v1625 = vsel %vm165, %v1620, 0
    %1627 = vmatprep.subr.bf16.mxu0 0
    %1628 = vmatpush1.bf16.xpose.msra.mxu0 %v1625
    %1629 = vmatprep.subr.bf16.mxu0 0
    %1630 = vmatpush1.bf16.xpose.msra.mxu0 0
    %1631 = vmatprep.subr.bf16.mxu0 0
    %1632 = vmatpush1.bf16.xpose.msra.mxu0 0
    %1633 = vmatprep.subr.bf16.mxu0 0
    %1634 = vmatpush1.bf16.xpose.msra.mxu0 0
    %1635 = vmatprep.subr.bf16.mxu0 0
    %1636 = vmatpush1.bf16.xpose.msra.mxu0 0
    %1637 = vmatprep.subr.bf16.mxu0 0
    %1638 = vmatpush1.bf16.xpose.msra.mxu0 0
    %1639 = vmatprep.subr.bf16.mxu0 0
    %1640 = vmatpush1.bf16.xpose.msra.mxu0 0
    %1641 = vmatprep.subr.bf16.mxu0 0
    %1642 = vmatpush1.bf16.xpose.msra.mxu0 0
    %1643 = vmatprep.subr.bf16.mxu0 0
    %1644 = vmatpush1.bf16.xpose.msra.mxu0 0
    %1645 = vmatprep.subr.bf16.mxu0 0
    %1646 = vmatpush1.bf16.xpose.msra.mxu0 0
    %1647 = vmatprep.subr.bf16.mxu0 0
    %1648 = vmatpush1.bf16.xpose.msra.mxu0 0
    %1649 = vmatprep.subr.bf16.mxu0 0
    %1650 = vmatpush1.bf16.xpose.msra.mxu0 0
    %1651 = vmatprep.subr.bf16.mxu0 0
    %1652 = vmatpush1.bf16.xpose.msra.mxu0 0
    %1653 = vmatprep.subr.bf16.mxu0 0
    %1654 = vmatpush1.bf16.xpose.msra.mxu0 0
    %1655 = vmatprep.subr.bf16.mxu0 0
    %1656 = vmatpush1.bf16.xpose.msra.mxu0 0
    %1657 = vmatprep.subr.bf16.mxu0 0
    %1658 = vmatpush1.bf16.xpose.msra.mxu0 0
    %1659 = vmatprep.mubr.bf16.mxu0 0
    %1660 = vmatmul.mubr.bf16.gmra.mrb[0].mxu0 %v1622
    %v1661 = vpop.f32.mrb[0].mxu0
    %v1662 = vadd.f32 0.0, %v1661
    %v1663 = vpop.f32.mrb[0].mxu0
    %v1664 = vpop.f32.mrb[0].mxu0
    %v1665 = vpop.f32.mrb[0].mxu0
    %1666 = vdwg.mxu0
    %v1667 = vunpack.c.l.b16 %v1464
    %v1668 = vpack.c.b16 %v1667, %v1667
    %1669 = vrot.lane.b32.xlu0 %v1668, 96
    %v1670 = vpop.permute.xlu0 %1669
    %v1672 = vsel %vm165, %v1464, 0
    %v1675 = vsel %vm165, %v1670, 0
    %1677 = vmatprep.subr.bf16.mxu0 0
    %1678 = vmatpush1.bf16.xpose.msra.mxu0 %v1675
    %1679 = vmatprep.subr.bf16.mxu0 0
    %1680 = vmatpush1.bf16.xpose.msra.mxu0 0
    %1681 = vmatprep.subr.bf16.mxu0 0
    %1682 = vmatpush1.bf16.xpose.msra.mxu0 0
    %1683 = vmatprep.subr.bf16.mxu0 0
    %1684 = vmatpush1.bf16.xpose.msra.mxu0 0
    %1685 = vmatprep.subr.bf16.mxu0 0
    %1686 = vmatpush1.bf16.xpose.msra.mxu0 0
    %1687 = vmatprep.subr.bf16.mxu0 0
    %1688 = vmatpush1.bf16.xpose.msra.mxu0 0
    %1689 = vmatprep.subr.bf16.mxu0 0
    %1690 = vmatpush1.bf16.xpose.msra.mxu0 0
    %1691 = vmatprep.subr.bf16.mxu0 0
    %1692 = vmatpush1.bf16.xpose.msra.mxu0 0
    %1693 = vmatprep.subr.bf16.mxu0 0
    %1694 = vmatpush1.bf16.xpose.msra.mxu0 0
    %1695 = vmatprep.subr.bf16.mxu0 0
    %1696 = vmatpush1.bf16.xpose.msra.mxu0 0
    %1697 = vmatprep.subr.bf16.mxu0 0
    %1698 = vmatpush1.bf16.xpose.msra.mxu0 0
    %1699 = vmatprep.subr.bf16.mxu0 0
    %1700 = vmatpush1.bf16.xpose.msra.mxu0 0
    %1701 = vmatprep.subr.bf16.mxu0 0
    %1702 = vmatpush1.bf16.xpose.msra.mxu0 0
    %1703 = vmatprep.subr.bf16.mxu0 0
    %1704 = vmatpush1.bf16.xpose.msra.mxu0 0
    %1705 = vmatprep.subr.bf16.mxu0 0
    %1706 = vmatpush1.bf16.xpose.msra.mxu0 0
    %1707 = vmatprep.subr.bf16.mxu0 0
    %1708 = vmatpush1.bf16.xpose.msra.mxu0 0
    %1709 = vmatprep.mubr.bf16.mxu0 0
    %1710 = vmatmul.mubr.bf16.gmra.mrb[0].mxu0 %v1672
    %v1711 = vpop.f32.mrb[0].mxu0
    %v1712 = vadd.f32 0.0, %v1711
    %v1713 = vpop.f32.mrb[0].mxu0
    %v1714 = vpop.f32.mrb[0].mxu0
    %v1715 = vpop.f32.mrb[0].mxu0
    %1716 = vdwg.mxu0
    %v1717 = vunpack.c.l.b16 %v1466
    %v1718 = vpack.c.b16 %v1717, %v1717
    %1719 = vrot.lane.b32.xlu0 %v1718, 96
    %v1720 = vpop.permute.xlu0 %1719
    %v1722 = vsel %vm165, %v1466, 0
    %v1725 = vsel %vm165, %v1720, 0
    %1727 = vmatprep.subr.bf16.mxu0 0
    %1728 = vmatpush1.bf16.xpose.msra.mxu0 %v1725
    %1729 = vmatprep.subr.bf16.mxu0 0
    %1730 = vmatpush1.bf16.xpose.msra.mxu0 0
    %1731 = vmatprep.subr.bf16.mxu0 0
    %1732 = vmatpush1.bf16.xpose.msra.mxu0 0
    %1733 = vmatprep.subr.bf16.mxu0 0
    %1734 = vmatpush1.bf16.xpose.msra.mxu0 0
    %1735 = vmatprep.subr.bf16.mxu0 0
    %1736 = vmatpush1.bf16.xpose.msra.mxu0 0
    %1737 = vmatprep.subr.bf16.mxu0 0
    %1738 = vmatpush1.bf16.xpose.msra.mxu0 0
    %1739 = vmatprep.subr.bf16.mxu0 0
    %1740 = vmatpush1.bf16.xpose.msra.mxu0 0
    %1741 = vmatprep.subr.bf16.mxu0 0
    %1742 = vmatpush1.bf16.xpose.msra.mxu0 0
    %1743 = vmatprep.subr.bf16.mxu0 0
    %1744 = vmatpush1.bf16.xpose.msra.mxu0 0
    %1745 = vmatprep.subr.bf16.mxu0 0
    %1746 = vmatpush1.bf16.xpose.msra.mxu0 0
    %1747 = vmatprep.subr.bf16.mxu0 0
    %1748 = vmatpush1.bf16.xpose.msra.mxu0 0
    %1749 = vmatprep.subr.bf16.mxu0 0
    %1750 = vmatpush1.bf16.xpose.msra.mxu0 0
    %1751 = vmatprep.subr.bf16.mxu0 0
    %1752 = vmatpush1.bf16.xpose.msra.mxu0 0
    %1753 = vmatprep.subr.bf16.mxu0 0
    %1754 = vmatpush1.bf16.xpose.msra.mxu0 0
    %1755 = vmatprep.subr.bf16.mxu0 0
    %1756 = vmatpush1.bf16.xpose.msra.mxu0 0
    %1757 = vmatprep.subr.bf16.mxu0 0
    %1758 = vmatpush1.bf16.xpose.msra.mxu0 0
    %1759 = vmatprep.mubr.bf16.mxu0 0
    %1760 = vmatmul.mubr.bf16.gmra.mrb[0].mxu0 %v1722
    %v1761 = vpop.f32.mrb[0].mxu0
    %v1762 = vadd.f32 0.0, %v1761
    %v1763 = vpop.f32.mrb[0].mxu0
    %v1764 = vpop.f32.mrb[0].mxu0
    %v1765 = vpop.f32.mrb[0].mxu0
    %1766 = vdwg.mxu0
    %v1767 = vunpack.c.l.b16 %v1468
    %v1768 = vpack.c.b16 %v1767, %v1767
    %1769 = vrot.lane.b32.xlu0 %v1768, 96
    %v1770 = vpop.permute.xlu0 %1769
    %v1772 = vsel %vm165, %v1468, 0
    %v1775 = vsel %vm165, %v1770, 0
    %1777 = vmatprep.subr.bf16.mxu0 0
    %1778 = vmatpush1.bf16.xpose.msra.mxu0 %v1775
    %1779 = vmatprep.subr.bf16.mxu0 0
    %1780 = vmatpush1.bf16.xpose.msra.mxu0 0
    %1781 = vmatprep.subr.bf16.mxu0 0
    %1782 = vmatpush1.bf16.xpose.msra.mxu0 0
    %1783 = vmatprep.subr.bf16.mxu0 0
    %1784 = vmatpush1.bf16.xpose.msra.mxu0 0
    %1785 = vmatprep.subr.bf16.mxu0 0
    %1786 = vmatpush1.bf16.xpose.msra.mxu0 0
    %1787 = vmatprep.subr.bf16.mxu0 0
    %1788 = vmatpush1.bf16.xpose.msra.mxu0 0
    %1789 = vmatprep.subr.bf16.mxu0 0
    %1790 = vmatpush1.bf16.xpose.msra.mxu0 0
    %1791 = vmatprep.subr.bf16.mxu0 0
    %1792 = vmatpush1.bf16.xpose.msra.mxu0 0
    %1793 = vmatprep.subr.bf16.mxu0 0
    %1794 = vmatpush1.bf16.xpose.msra.mxu0 0
    %1795 = vmatprep.subr.bf16.mxu0 0
    %1796 = vmatpush1.bf16.xpose.msra.mxu0 0
    %1797 = vmatprep.subr.bf16.mxu0 0
    %1798 = vmatpush1.bf16.xpose.msra.mxu0 0
    %1799 = vmatprep.subr.bf16.mxu0 0
    %1800 = vmatpush1.bf16.xpose.msra.mxu0 0
    %1801 = vmatprep.subr.bf16.mxu0 0
    %1802 = vmatpush1.bf16.xpose.msra.mxu0 0
    %1803 = vmatprep.subr.bf16.mxu0 0
    %1804 = vmatpush1.bf16.xpose.msra.mxu0 0
    %1805 = vmatprep.subr.bf16.mxu0 0
    %1806 = vmatpush1.bf16.xpose.msra.mxu0 0
    %1807 = vmatprep.subr.bf16.mxu0 0
    %1808 = vmatpush1.bf16.xpose.msra.mxu0 0
    %1809 = vmatprep.mubr.bf16.mxu0 0
    %1810 = vmatmul.mubr.bf16.gmra.mrb[0].mxu0 %v1772
    %v1811 = vpop.f32.mrb[0].mxu0
    %v1812 = vadd.f32 0.0, %v1811
    %v1813 = vpop.f32.mrb[0].mxu0
    %v1814 = vpop.f32.mrb[0].mxu0
    %v1815 = vpop.f32.mrb[0].mxu0
    %1816 = vdwg.mxu0
    %v1817 = vunpack.c.l.b16 %v1470
    %v1818 = vpack.c.b16 %v1817, %v1817
    %1819 = vrot.lane.b32.xlu0 %v1818, 96
    %v1820 = vpop.permute.xlu0 %1819
    %v1822 = vsel %vm165, %v1470, 0
    %v1825 = vsel %vm165, %v1820, 0
    %1827 = vmatprep.subr.bf16.mxu0 0
    %1828 = vmatpush1.bf16.xpose.msra.mxu0 %v1825
    %1829 = vmatprep.subr.bf16.mxu0 0
    %1830 = vmatpush1.bf16.xpose.msra.mxu0 0
    %1831 = vmatprep.subr.bf16.mxu0 0
    %1832 = vmatpush1.bf16.xpose.msra.mxu0 0
    %1833 = vmatprep.subr.bf16.mxu0 0
    %1834 = vmatpush1.bf16.xpose.msra.mxu0 0
    %1835 = vmatprep.subr.bf16.mxu0 0
    %1836 = vmatpush1.bf16.xpose.msra.mxu0 0
    %1837 = vmatprep.subr.bf16.mxu0 0
    %1838 = vmatpush1.bf16.xpose.msra.mxu0 0
    %1839 = vmatprep.subr.bf16.mxu0 0
    %1840 = vmatpush1.bf16.xpose.msra.mxu0 0
    %1841 = vmatprep.subr.bf16.mxu0 0
    %1842 = vmatpush1.bf16.xpose.msra.mxu0 0
    %1843 = vmatprep.subr.bf16.mxu0 0
    %1844 = vmatpush1.bf16.xpose.msra.mxu0 0
    %1845 = vmatprep.subr.bf16.mxu0 0
    %1846 = vmatpush1.bf16.xpose.msra.mxu0 0
    %1847 = vmatprep.subr.bf16.mxu0 0
    %1848 = vmatpush1.bf16.xpose.msra.mxu0 0
    %1849 = vmatprep.subr.bf16.mxu0 0
    %1850 = vmatpush1.bf16.xpose.msra.mxu0 0
    %1851 = vmatprep.subr.bf16.mxu0 0
    %1852 = vmatpush1.bf16.xpose.msra.mxu0 0
    %1853 = vmatprep.subr.bf16.mxu0 0
    %1854 = vmatpush1.bf16.xpose.msra.mxu0 0
    %1855 = vmatprep.subr.bf16.mxu0 0
    %1856 = vmatpush1.bf16.xpose.msra.mxu0 0
    %1857 = vmatprep.subr.bf16.mxu0 0
    %1858 = vmatpush1.bf16.xpose.msra.mxu0 0
    %1859 = vmatprep.mubr.bf16.mxu0 0
    %1860 = vmatmul.mubr.bf16.gmra.mrb[0].mxu0 %v1822
    %v1861 = vpop.f32.mrb[0].mxu0
    %v1862 = vadd.f32 0.0, %v1861
    %v1863 = vpop.f32.mrb[0].mxu0
    %v1864 = vpop.f32.mrb[0].mxu0
    %v1865 = vpop.f32.mrb[0].mxu0
    %1866 = vdwg.mxu0
    %v1867 = vsel %vm165, %v1514, -inf
    %1868 = vmax.xlane.f32.xlu0 %v1867
    %v1869 = vpop.xlane.xlu0 %1868
    %v1870 = vsel %vm165, %v1562, -inf
    %1871 = vmax.xlane.f32.xlu0 %v1870
    %v1872 = vpop.xlane.xlu0 %1871
    %v1873 = vsel %vm165, %v1612, -inf
    %1874 = vmax.xlane.f32.xlu0 %v1873
    %v1875 = vpop.xlane.xlu0 %1874
    %v1876 = vsel %vm165, %v1662, -inf
    %1877 = vmax.xlane.f32.xlu0 %v1876
    %v1878 = vpop.xlane.xlu0 %1877
    %v1879 = vsel %vm165, %v1712, -inf
    %1880 = vmax.xlane.f32.xlu0 %v1879
    %v1881 = vpop.xlane.xlu0 %1880
    %v1882 = vsel %vm165, %v1762, -inf
    %1883 = vmax.xlane.f32.xlu0 %v1882
    %v1884 = vpop.xlane.xlu0 %1883
    %v1885 = vsel %vm165, %v1812, -inf
    %1886 = vmax.xlane.f32.xlu0 %v1885
    %v1887 = vpop.xlane.xlu0 %1886
    %v1888 = vsel %vm165, %v1862, -inf
    %1889 = vmax.xlane.f32.xlu0 %v1888
    %v1890 = vpop.xlane.xlu0 %1889
    %v1891 = vsub.f32 %v1514, %v1869
    %v1892 = vsub.f32 %v1562, %v1872
    %v1893 = vsub.f32 %v1612, %v1875
    %v1894 = vsub.f32 %v1662, %v1878
    %v1895 = vsub.f32 %v1712, %v1881
    %v1896 = vsub.f32 %v1762, %v1884
    %v1897 = vsub.f32 %v1812, %v1887
    %v1898 = vsub.f32 %v1862, %v1890
    %v1899 = vmul.f32 %v1891, 1.442695
    %v1900 = vpow.pop %v1899
    %v1901 = vmul.f32 %v1892, 1.442695
    %v1902 = vpow.pop %v1901
    %v1903 = vmul.f32 %v1893, 1.442695
    %v1904 = vpow.pop %v1903
    %v1905 = vmul.f32 %v1894, 1.442695
    %v1906 = vpow.pop %v1905
    %v1907 = vmul.f32 %v1895, 1.442695
    %v1908 = vpow.pop %v1907
    %v1909 = vmul.f32 %v1896, 1.442695
    %v1910 = vpow.pop %v1909
    %v1911 = vmul.f32 %v1897, 1.442695
    %v1912 = vpow.pop %v1911
    %v1913 = vmul.f32 %v1898, 1.442695
    %v1914 = vpow.pop %v1913
    %v1915 = vsel %vm165, %v1900, 0.0
    %1916 = vadd.xlane.f32.xlu0 %v1915
    %v1917 = vpop.xlane.xlu0 %1916
    %v1918 = vsel %vm165, %v1902, 0.0
    %1919 = vadd.xlane.f32.xlu0 %v1918
    %v1920 = vpop.xlane.xlu0 %1919
    %v1921 = vsel %vm165, %v1904, 0.0
    %1922 = vadd.xlane.f32.xlu0 %v1921
    %v1923 = vpop.xlane.xlu0 %1922
    %v1924 = vsel %vm165, %v1906, 0.0
    %1925 = vadd.xlane.f32.xlu0 %v1924
    %v1926 = vpop.xlane.xlu0 %1925
    %v1927 = vsel %vm165, %v1908, 0.0
    %1928 = vadd.xlane.f32.xlu0 %v1927
    %v1929 = vpop.xlane.xlu0 %1928
    %v1930 = vsel %vm165, %v1910, 0.0
    %1931 = vadd.xlane.f32.xlu0 %v1930
    %v1932 = vpop.xlane.xlu0 %1931
    %v1933 = vsel %vm165, %v1912, 0.0
    %1934 = vadd.xlane.f32.xlu0 %v1933
    %v1935 = vpop.xlane.xlu0 %1934
    %v1936 = vsel %vm165, %v1914, 0.0
    %1937 = vadd.xlane.f32.xlu0 %v1936
    %v1938 = vpop.xlane.xlu0 %1937
    %v1939 = vrcp.pop %v1917
    %v1940 = vrcp.pop %v1920
    %v1941 = vrcp.pop %v1923
    %v1942 = vrcp.pop %v1926
    %v1943 = vrcp.pop %v1929
    %v1944 = vrcp.pop %v1932
    %v1945 = vrcp.pop %v1935
    %v1946 = vrcp.pop %v1938
    %v1947 = vmul.f32 %v1900, %v1939
    %v1948 = vmul.f32 %v1902, %v1940
    %v1949 = vmul.f32 %v1904, %v1941
    %v1950 = vmul.f32 %v1906, %v1942
    %v1951 = vmul.f32 %v1908, %v1943
    %v1952 = vmul.f32 %v1910, %v1944
    %v1953 = vmul.f32 %v1912, %v1945
    %v1954 = vmul.f32 %v1914, %v1946
    %v1955 = vpack.c.bf16 %v1947, %v1947
    %v1956 = vpack.c.bf16 %v1948, %v1948
    %v1957 = vpack.c.bf16 %v1949, %v1949
    %v1958 = vpack.c.bf16 %v1950, %v1950
    %v1959 = vpack.c.bf16 %v1951, %v1951
    %v1960 = vpack.c.bf16 %v1952, %v1952
    %v1961 = vpack.c.bf16 %v1953, %v1953
    %v1962 = vpack.c.bf16 %v1954, %v1954
    %1963 = vrot.lane.b32.xlu0 %v1457, 64
    %v1964 = vpop.permute.xlu0 %1963
    %v1966 = vsel %vm165, %v1955, 0
    %v1969 = vsel %vm661, %v1964, 0
    %1971 = vmatprep.subr.bf16.mxu0 0
    %1972 = vmatpush1.bf16.msra.mxu0 %v1969
    %1973 = vmatprep.subr.bf16.mxu0 0
    %1974 = vmatpush1.bf16.msra.mxu0 0
    %1975 = vmatprep.subr.bf16.mxu0 0
    %1976 = vmatpush1.bf16.msra.mxu0 0
    %1977 = vmatprep.subr.bf16.mxu0 0
    %1978 = vmatpush1.bf16.msra.mxu0 0
    %1979 = vmatprep.subr.bf16.mxu0 0
    %1980 = vmatpush1.bf16.msra.mxu0 0
    %1981 = vmatprep.subr.bf16.mxu0 0
    %1982 = vmatpush1.bf16.msra.mxu0 0
    %1983 = vmatprep.subr.bf16.mxu0 0
    %1984 = vmatpush1.bf16.msra.mxu0 0
    %1985 = vmatprep.subr.bf16.mxu0 0
    %1986 = vmatpush1.bf16.msra.mxu0 0
    %1987 = vmatprep.subr.bf16.mxu0 0
    %1988 = vmatpush1.bf16.msra.mxu0 0
    %1989 = vmatprep.subr.bf16.mxu0 0
    %1990 = vmatpush1.bf16.msra.mxu0 0
    %1991 = vmatprep.subr.bf16.mxu0 0
    %1992 = vmatpush1.bf16.msra.mxu0 0
    %1993 = vmatprep.subr.bf16.mxu0 0
    %1994 = vmatpush1.bf16.msra.mxu0 0
    %1995 = vmatprep.subr.bf16.mxu0 0
    %1996 = vmatpush1.bf16.msra.mxu0 0
    %1997 = vmatprep.subr.bf16.mxu0 0
    %1998 = vmatpush1.bf16.msra.mxu0 0
    %1999 = vmatprep.subr.bf16.mxu0 0
    %2000 = vmatpush1.bf16.msra.mxu0 0
    %2001 = vmatprep.subr.bf16.mxu0 0
    %2002 = vmatpush1.bf16.msra.mxu0 0
    %2003 = vmatprep.mubr.bf16.mxu0 0
    %2004 = vmatmul.mubr.bf16.gmra.mrb[0].mxu0 %v1966
    %v2005 = vpop.f32.mrb[0].mxu0
    %v2006 = vadd.f32 0.0, %v2005
    %v2007 = vpop.f32.mrb[0].mxu0
    %v2008 = vpop.f32.mrb[0].mxu0
    %v2009 = vpop.f32.mrb[0].mxu0
    %2010 = vdwg.mxu0
    %2011 = vrot.lane.b32.xlu0 %v1458, 64
    %v2012 = vpop.permute.xlu0 %2011
    %v2014 = vsel %vm165, %v1956, 0
    %v2017 = vsel %vm661, %v2012, 0
    %2019 = vmatprep.subr.bf16.mxu0 0
    %2020 = vmatpush1.bf16.msra.mxu0 %v2017
    %2021 = vmatprep.subr.bf16.mxu0 0
    %2022 = vmatpush1.bf16.msra.mxu0 0
    %2023 = vmatprep.subr.bf16.mxu0 0
    %2024 = vmatpush1.bf16.msra.mxu0 0
    %2025 = vmatprep.subr.bf16.mxu0 0
    %2026 = vmatpush1.bf16.msra.mxu0 0
    %2027 = vmatprep.subr.bf16.mxu0 0
    %2028 = vmatpush1.bf16.msra.mxu0 0
    %2029 = vmatprep.subr.bf16.mxu0 0
    %2030 = vmatpush1.bf16.msra.mxu0 0
    %2031 = vmatprep.subr.bf16.mxu0 0
    %2032 = vmatpush1.bf16.msra.mxu0 0
    %2033 = vmatprep.subr.bf16.mxu0 0
    %2034 = vmatpush1.bf16.msra.mxu0 0
    %2035 = vmatprep.subr.bf16.mxu0 0
    %2036 = vmatpush1.bf16.msra.mxu0 0
    %2037 = vmatprep.subr.bf16.mxu0 0
    %2038 = vmatpush1.bf16.msra.mxu0 0
    %2039 = vmatprep.subr.bf16.mxu0 0
    %2040 = vmatpush1.bf16.msra.mxu0 0
    %2041 = vmatprep.subr.bf16.mxu0 0
    %2042 = vmatpush1.bf16.msra.mxu0 0
    %2043 = vmatprep.subr.bf16.mxu0 0
    %2044 = vmatpush1.bf16.msra.mxu0 0
    %2045 = vmatprep.subr.bf16.mxu0 0
    %2046 = vmatpush1.bf16.msra.mxu0 0
    %2047 = vmatprep.subr.bf16.mxu0 0
    %2048 = vmatpush1.bf16.msra.mxu0 0
    %2049 = vmatprep.subr.bf16.mxu0 0
    %2050 = vmatpush1.bf16.msra.mxu0 0
    %2051 = vmatprep.mubr.bf16.mxu0 0
    %2052 = vmatmul.mubr.bf16.gmra.mrb[0].mxu0 %v2014
    %v2053 = vpop.f32.mrb[0].mxu0
    %v2054 = vadd.f32 0.0, %v2053
    %v2055 = vpop.f32.mrb[0].mxu0
    %v2056 = vpop.f32.mrb[0].mxu0
    %v2057 = vpop.f32.mrb[0].mxu0
    %2058 = vdwg.mxu0
    %2059 = vrot.lane.b32.xlu0 %v1568, 64
    %v2060 = vpop.permute.xlu0 %2059
    %v2062 = vsel %vm165, %v1957, 0
    %v2065 = vsel %vm661, %v2060, 0
    %2067 = vmatprep.subr.bf16.mxu0 0
    %2068 = vmatpush1.bf16.msra.mxu0 %v2065
    %2069 = vmatprep.subr.bf16.mxu0 0
    %2070 = vmatpush1.bf16.msra.mxu0 0
    %2071 = vmatprep.subr.bf16.mxu0 0
    %2072 = vmatpush1.bf16.msra.mxu0 0
    %2073 = vmatprep.subr.bf16.mxu0 0
    %2074 = vmatpush1.bf16.msra.mxu0 0
    %2075 = vmatprep.subr.bf16.mxu0 0
    %2076 = vmatpush1.bf16.msra.mxu0 0
    %2077 = vmatprep.subr.bf16.mxu0 0
    %2078 = vmatpush1.bf16.msra.mxu0 0
    %2079 = vmatprep.subr.bf16.mxu0 0
    %2080 = vmatpush1.bf16.msra.mxu0 0
    %2081 = vmatprep.subr.bf16.mxu0 0
    %2082 = vmatpush1.bf16.msra.mxu0 0
    %2083 = vmatprep.subr.bf16.mxu0 0
    %2084 = vmatpush1.bf16.msra.mxu0 0
    %2085 = vmatprep.subr.bf16.mxu0 0
    %2086 = vmatpush1.bf16.msra.mxu0 0
    %2087 = vmatprep.subr.bf16.mxu0 0
    %2088 = vmatpush1.bf16.msra.mxu0 0
    %2089 = vmatprep.subr.bf16.mxu0 0
    %2090 = vmatpush1.bf16.msra.mxu0 0
    %2091 = vmatprep.subr.bf16.mxu0 0
    %2092 = vmatpush1.bf16.msra.mxu0 0
    %2093 = vmatprep.subr.bf16.mxu0 0
    %2094 = vmatpush1.bf16.msra.mxu0 0
    %2095 = vmatprep.subr.bf16.mxu0 0
    %2096 = vmatpush1.bf16.msra.mxu0 0
    %2097 = vmatprep.subr.bf16.mxu0 0
    %2098 = vmatpush1.bf16.msra.mxu0 0
    %2099 = vmatprep.mubr.bf16.mxu0 0
    %2100 = vmatmul.mubr.bf16.gmra.mrb[0].mxu0 %v2062
    %v2101 = vpop.f32.mrb[0].mxu0
    %v2102 = vadd.f32 0.0, %v2101
    %v2103 = vpop.f32.mrb[0].mxu0
    %v2104 = vpop.f32.mrb[0].mxu0
    %v2105 = vpop.f32.mrb[0].mxu0
    %2106 = vdwg.mxu0
    %2107 = vrot.lane.b32.xlu0 %v1618, 64
    %v2108 = vpop.permute.xlu0 %2107
    %v2110 = vsel %vm165, %v1958, 0
    %v2113 = vsel %vm661, %v2108, 0
    %2115 = vmatprep.subr.bf16.mxu0 0
    %2116 = vmatpush1.bf16.msra.mxu0 %v2113
    %2117 = vmatprep.subr.bf16.mxu0 0
    %2118 = vmatpush1.bf16.msra.mxu0 0
    %2119 = vmatprep.subr.bf16.mxu0 0
    %2120 = vmatpush1.bf16.msra.mxu0 0
    %2121 = vmatprep.subr.bf16.mxu0 0
    %2122 = vmatpush1.bf16.msra.mxu0 0
    %2123 = vmatprep.subr.bf16.mxu0 0
    %2124 = vmatpush1.bf16.msra.mxu0 0
    %2125 = vmatprep.subr.bf16.mxu0 0
    %2126 = vmatpush1.bf16.msra.mxu0 0
    %2127 = vmatprep.subr.bf16.mxu0 0
    %2128 = vmatpush1.bf16.msra.mxu0 0
    %2129 = vmatprep.subr.bf16.mxu0 0
    %2130 = vmatpush1.bf16.msra.mxu0 0
    %2131 = vmatprep.subr.bf16.mxu0 0
    %2132 = vmatpush1.bf16.msra.mxu0 0
    %2133 = vmatprep.subr.bf16.mxu0 0
    %2134 = vmatpush1.bf16.msra.mxu0 0
    %2135 = vmatprep.subr.bf16.mxu0 0
    %2136 = vmatpush1.bf16.msra.mxu0 0
    %2137 = vmatprep.subr.bf16.mxu0 0
    %2138 = vmatpush1.bf16.msra.mxu0 0
    %2139 = vmatprep.subr.bf16.mxu0 0
    %2140 = vmatpush1.bf16.msra.mxu0 0
    %2141 = vmatprep.subr.bf16.mxu0 0
    %2142 = vmatpush1.bf16.msra.mxu0 0
    %2143 = vmatprep.subr.bf16.mxu0 0
    %2144 = vmatpush1.bf16.msra.mxu0 0
    %2145 = vmatprep.subr.bf16.mxu0 0
    %2146 = vmatpush1.bf16.msra.mxu0 0
    %2147 = vmatprep.mubr.bf16.mxu0 0
    %2148 = vmatmul.mubr.bf16.gmra.mrb[0].mxu0 %v2110
    %v2149 = vpop.f32.mrb[0].mxu0
    %v2150 = vadd.f32 0.0, %v2149
    %v2151 = vpop.f32.mrb[0].mxu0
    %v2152 = vpop.f32.mrb[0].mxu0
    %v2153 = vpop.f32.mrb[0].mxu0
    %2154 = vdwg.mxu0
    %2155 = vrot.lane.b32.xlu0 %v1668, 64
    %v2156 = vpop.permute.xlu0 %2155
    %v2158 = vsel %vm165, %v1959, 0
    %v2161 = vsel %vm661, %v2156, 0
    %2163 = vmatprep.subr.bf16.mxu0 0
    %2164 = vmatpush1.bf16.msra.mxu0 %v2161
    %2165 = vmatprep.subr.bf16.mxu0 0
    %2166 = vmatpush1.bf16.msra.mxu0 0
    %2167 = vmatprep.subr.bf16.mxu0 0
    %2168 = vmatpush1.bf16.msra.mxu0 0
    %2169 = vmatprep.subr.bf16.mxu0 0
    %2170 = vmatpush1.bf16.msra.mxu0 0
    %2171 = vmatprep.subr.bf16.mxu0 0
    %2172 = vmatpush1.bf16.msra.mxu0 0
    %2173 = vmatprep.subr.bf16.mxu0 0
    %2174 = vmatpush1.bf16.msra.mxu0 0
    %2175 = vmatprep.subr.bf16.mxu0 0
    %2176 = vmatpush1.bf16.msra.mxu0 0
    %2177 = vmatprep.subr.bf16.mxu0 0
    %2178 = vmatpush1.bf16.msra.mxu0 0
    %2179 = vmatprep.subr.bf16.mxu0 0
    %2180 = vmatpush1.bf16.msra.mxu0 0
    %2181 = vmatprep.subr.bf16.mxu0 0
    %2182 = vmatpush1.bf16.msra.mxu0 0
    %2183 = vmatprep.subr.bf16.mxu0 0
    %2184 = vmatpush1.bf16.msra.mxu0 0
    %2185 = vmatprep.subr.bf16.mxu0 0
    %2186 = vmatpush1.bf16.msra.mxu0 0
    %2187 = vmatprep.subr.bf16.mxu0 0
    %2188 = vmatpush1.bf16.msra.mxu0 0
    %2189 = vmatprep.subr.bf16.mxu0 0
    %2190 = vmatpush1.bf16.msra.mxu0 0
    %2191 = vmatprep.subr.bf16.mxu0 0
    %2192 = vmatpush1.bf16.msra.mxu0 0
    %2193 = vmatprep.subr.bf16.mxu0 0
    %2194 = vmatpush1.bf16.msra.mxu0 0
    %2195 = vmatprep.mubr.bf16.mxu0 0
    %2196 = vmatmul.mubr.bf16.gmra.mrb[0].mxu0 %v2158
    %v2197 = vpop.f32.mrb[0].mxu0
    %v2198 = vadd.f32 0.0, %v2197
    %v2199 = vpop.f32.mrb[0].mxu0
    %v2200 = vpop.f32.mrb[0].mxu0
    %v2201 = vpop.f32.mrb[0].mxu0
    %2202 = vdwg.mxu0
    %2203 = vrot.lane.b32.xlu0 %v1718, 64
    %v2204 = vpop.permute.xlu0 %2203
    %v2206 = vsel %vm165, %v1960, 0
    %v2209 = vsel %vm661, %v2204, 0
    %2211 = vmatprep.subr.bf16.mxu0 0
    %2212 = vmatpush1.bf16.msra.mxu0 %v2209
    %2213 = vmatprep.subr.bf16.mxu0 0
    %2214 = vmatpush1.bf16.msra.mxu0 0
    %2215 = vmatprep.subr.bf16.mxu0 0
    %2216 = vmatpush1.bf16.msra.mxu0 0
    %2217 = vmatprep.subr.bf16.mxu0 0
    %2218 = vmatpush1.bf16.msra.mxu0 0
    %2219 = vmatprep.subr.bf16.mxu0 0
    %2220 = vmatpush1.bf16.msra.mxu0 0
    %2221 = vmatprep.subr.bf16.mxu0 0
    %2222 = vmatpush1.bf16.msra.mxu0 0
    %2223 = vmatprep.subr.bf16.mxu0 0
    %2224 = vmatpush1.bf16.msra.mxu0 0
    %2225 = vmatprep.subr.bf16.mxu0 0
    %2226 = vmatpush1.bf16.msra.mxu0 0
    %2227 = vmatprep.subr.bf16.mxu0 0
    %2228 = vmatpush1.bf16.msra.mxu0 0
    %2229 = vmatprep.subr.bf16.mxu0 0
    %2230 = vmatpush1.bf16.msra.mxu0 0
    %2231 = vmatprep.subr.bf16.mxu0 0
    %2232 = vmatpush1.bf16.msra.mxu0 0
    %2233 = vmatprep.subr.bf16.mxu0 0
    %2234 = vmatpush1.bf16.msra.mxu0 0
    %2235 = vmatprep.subr.bf16.mxu0 0
    %2236 = vmatpush1.bf16.msra.mxu0 0
    %2237 = vmatprep.subr.bf16.mxu0 0
    %2238 = vmatpush1.bf16.msra.mxu0 0
    %2239 = vmatprep.subr.bf16.mxu0 0
    %2240 = vmatpush1.bf16.msra.mxu0 0
    %2241 = vmatprep.subr.bf16.mxu0 0
    %2242 = vmatpush1.bf16.msra.mxu0 0
    %2243 = vmatprep.mubr.bf16.mxu0 0
    %2244 = vmatmul.mubr.bf16.gmra.mrb[0].mxu0 %v2206
    %v2245 = vpop.f32.mrb[0].mxu0
    %v2246 = vadd.f32 0.0, %v2245
    %v2247 = vpop.f32.mrb[0].mxu0
    %v2248 = vpop.f32.mrb[0].mxu0
    %v2249 = vpop.f32.mrb[0].mxu0
    %2250 = vdwg.mxu0
    %2251 = vrot.lane.b32.xlu0 %v1768, 64
    %v2252 = vpop.permute.xlu0 %2251
    %v2254 = vsel %vm165, %v1961, 0
    %v2257 = vsel %vm661, %v2252, 0
    %2259 = vmatprep.subr.bf16.mxu0 0
    %2260 = vmatpush1.bf16.msra.mxu0 %v2257
    %2261 = vmatprep.subr.bf16.mxu0 0
    %2262 = vmatpush1.bf16.msra.mxu0 0
    %2263 = vmatprep.subr.bf16.mxu0 0
    %2264 = vmatpush1.bf16.msra.mxu0 0
    %2265 = vmatprep.subr.bf16.mxu0 0
    %2266 = vmatpush1.bf16.msra.mxu0 0
    %2267 = vmatprep.subr.bf16.mxu0 0
    %2268 = vmatpush1.bf16.msra.mxu0 0
    %2269 = vmatprep.subr.bf16.mxu0 0
    %2270 = vmatpush1.bf16.msra.mxu0 0
    %2271 = vmatprep.subr.bf16.mxu0 0
    %2272 = vmatpush1.bf16.msra.mxu0 0
    %2273 = vmatprep.subr.bf16.mxu0 0
    %2274 = vmatpush1.bf16.msra.mxu0 0
    %2275 = vmatprep.subr.bf16.mxu0 0
    %2276 = vmatpush1.bf16.msra.mxu0 0
    %2277 = vmatprep.subr.bf16.mxu0 0
    %2278 = vmatpush1.bf16.msra.mxu0 0
    %2279 = vmatprep.subr.bf16.mxu0 0
    %2280 = vmatpush1.bf16.msra.mxu0 0
    %2281 = vmatprep.subr.bf16.mxu0 0
    %2282 = vmatpush1.bf16.msra.mxu0 0
    %2283 = vmatprep.subr.bf16.mxu0 0
    %2284 = vmatpush1.bf16.msra.mxu0 0
    %2285 = vmatprep.subr.bf16.mxu0 0
    %2286 = vmatpush1.bf16.msra.mxu0 0
    %2287 = vmatprep.subr.bf16.mxu0 0
    %2288 = vmatpush1.bf16.msra.mxu0 0
    %2289 = vmatprep.subr.bf16.mxu0 0
    %2290 = vmatpush1.bf16.msra.mxu0 0
    %2291 = vmatprep.mubr.bf16.mxu0 0
    %2292 = vmatmul.mubr.bf16.gmra.mrb[0].mxu0 %v2254
    %v2293 = vpop.f32.mrb[0].mxu0
    %v2294 = vadd.f32 0.0, %v2293
    %v2295 = vpop.f32.mrb[0].mxu0
    %v2296 = vpop.f32.mrb[0].mxu0
    %v2297 = vpop.f32.mrb[0].mxu0
    %2298 = vdwg.mxu0
    %2299 = vrot.lane.b32.xlu0 %v1818, 64
    %v2300 = vpop.permute.xlu0 %2299
    %v2302 = vsel %vm165, %v1962, 0
    %v2305 = vsel %vm661, %v2300, 0
    %2307 = vmatprep.subr.bf16.mxu0 0
    %2308 = vmatpush1.bf16.msra.mxu0 %v2305
    %2309 = vmatprep.subr.bf16.mxu0 0
    %2310 = vmatpush1.bf16.msra.mxu0 0
    %2311 = vmatprep.subr.bf16.mxu0 0
    %2312 = vmatpush1.bf16.msra.mxu0 0
    %2313 = vmatprep.subr.bf16.mxu0 0
    %2314 = vmatpush1.bf16.msra.mxu0 0
    %2315 = vmatprep.subr.bf16.mxu0 0
    %2316 = vmatpush1.bf16.msra.mxu0 0
    %2317 = vmatprep.subr.bf16.mxu0 0
    %2318 = vmatpush1.bf16.msra.mxu0 0
    %2319 = vmatprep.subr.bf16.mxu0 0
    %2320 = vmatpush1.bf16.msra.mxu0 0
    %2321 = vmatprep.subr.bf16.mxu0 0
    %2322 = vmatpush1.bf16.msra.mxu0 0
    %2323 = vmatprep.subr.bf16.mxu0 0
    %2324 = vmatpush1.bf16.msra.mxu0 0
    %2325 = vmatprep.subr.bf16.mxu0 0
    %2326 = vmatpush1.bf16.msra.mxu0 0
    %2327 = vmatprep.subr.bf16.mxu0 0
    %2328 = vmatpush1.bf16.msra.mxu0 0
    %2329 = vmatprep.subr.bf16.mxu0 0
    %2330 = vmatpush1.bf16.msra.mxu0 0
    %2331 = vmatprep.subr.bf16.mxu0 0
    %2332 = vmatpush1.bf16.msra.mxu0 0
    %2333 = vmatprep.subr.bf16.mxu0 0
    %2334 = vmatpush1.bf16.msra.mxu0 0
    %2335 = vmatprep.subr.bf16.mxu0 0
    %2336 = vmatpush1.bf16.msra.mxu0 0
    %2337 = vmatprep.subr.bf16.mxu0 0
    %2338 = vmatpush1.bf16.msra.mxu0 0
    %2339 = vmatprep.mubr.bf16.mxu0 0
    %2340 = vmatmul.mubr.bf16.gmra.mrb[0].mxu0 %v2302
    %v2341 = vpop.f32.mrb[0].mxu0
    %v2342 = vadd.f32 0.0, %v2341
    %v2343 = vpop.f32.mrb[0].mxu0
    %v2344 = vpop.f32.mrb[0].mxu0
    %v2345 = vpop.f32.mrb[0].mxu0
    %2346 = vdwg.mxu0
    %2349 = vrot.lane.b32.xlu0 %v2102, 8
    %v2350 = vpop.permute.xlu0 %2349
    %2351 = vrot.lane.b32.xlu0 %v2150, 8
    %v2352 = vpop.permute.xlu0 %2351
    %2357 = vrot.lane.b32.xlu0 %v2198, 16
    %v2358 = vpop.permute.xlu0 %2357
    %2359 = vrot.lane.b32.xlu0 %v2246, 16
    %v2360 = vpop.permute.xlu0 %2359
    %2365 = vrot.lane.b32.xlu0 %v2294, 24
    %v2366 = vpop.permute.xlu0 %2365
    %2367 = vrot.lane.b32.xlu0 %v2342, 24
    %v2368 = vpop.permute.xlu0 %2367
    %v2371 = vsel %vm165, %v2006, %v2350
    %v2372 = vsel %vm165, %v2054, %v2352
    %v2373 = vsel %vm1067, %v2371, %v2358
    %v2374 = vsel %vm1067, %v2372, %v2360
    %v2375 = vsel %vm1070, %v2373, %v2366
    %v2376 = vsel %vm1070, %v2374, %v2368
    %v2377 = vpack.c.bf16 %v2376, %v2375
    %v2378 = vlaneseq
    %v2379 = vshrl.u32 %v2378, 7
    %v2380 = vsub.s32 0, %v2379
    %v2381 = vrot.slane %v1361, %v2380
    %v2386 = vunpack.c.l.b16 %v1374
    %v2387 = vunpack.c.l.b16 %v1375
    %v2388 = vunpack.c.l.b16 %v1376
    %v2389 = vunpack.c.l.b16 %v1377
    %v2390 = vpack.c.b16 %v2387, %v2386
    %v2391 = vpack.c.b16 %v2389, %v2388
    %v2395 = vsel %vm100, %v2377, 0
    %2397 = vmatprep.subr.bf16.mxu0 0
    %2398 = vmatpush1.bf16.msra.mxu0 %v2390
    %2399 = vmatprep.subr.bf16.mxu0 0
    %2400 = vmatpush1.bf16.msra.mxu0 %v2391
    %2401 = vmatprep.subr.bf16.mxu0 0
    %2402 = vmatpush1.bf16.msra.mxu0 0
    %2403 = vmatprep.subr.bf16.mxu0 0
    %2404 = vmatpush1.bf16.msra.mxu0 0
    %2405 = vmatprep.subr.bf16.mxu0 0
    %2406 = vmatpush1.bf16.msra.mxu0 0
    %2407 = vmatprep.subr.bf16.mxu0 0
    %2408 = vmatpush1.bf16.msra.mxu0 0
    %2409 = vmatprep.subr.bf16.mxu0 0
    %2410 = vmatpush1.bf16.msra.mxu0 0
    %2411 = vmatprep.subr.bf16.mxu0 0
    %2412 = vmatpush1.bf16.msra.mxu0 0
    %2413 = vmatprep.subr.bf16.mxu0 0
    %2414 = vmatpush1.bf16.msra.mxu0 0
    %2415 = vmatprep.subr.bf16.mxu0 0
    %2416 = vmatpush1.bf16.msra.mxu0 0
    %2417 = vmatprep.subr.bf16.mxu0 0
    %2418 = vmatpush1.bf16.msra.mxu0 0
    %2419 = vmatprep.subr.bf16.mxu0 0
    %2420 = vmatpush1.bf16.msra.mxu0 0
    %2421 = vmatprep.subr.bf16.mxu0 0
    %2422 = vmatpush1.bf16.msra.mxu0 0
    %2423 = vmatprep.subr.bf16.mxu0 0
    %2424 = vmatpush1.bf16.msra.mxu0 0
    %2425 = vmatprep.subr.bf16.mxu0 0
    %2426 = vmatpush1.bf16.msra.mxu0 0
    %2427 = vmatprep.subr.bf16.mxu0 0
    %2428 = vmatpush1.bf16.msra.mxu0 0
    %2429 = vmatprep.mubr.bf16.mxu0 0
    %2430 = vmatmul.mubr.bf16.gmra.mrb[0].mxu0 %v2395
    %v2431 = vpop.f32.mrb[0].mxu0
    %v2432 = vadd.f32 %v2381, %v2431
    %v2433 = vpop.f32.mrb[0].mxu0
    %v2434 = vpop.f32.mrb[0].mxu0
    %v2435 = vadd.f32 %v2381, %v2434
    %v2436 = vpop.f32.mrb[0].mxu0
    %2437 = vdwg.mxu0
    %v2438 = vadd.f32 %v1358, %v2432
    %v2439 = vadd.f32 %v1359, %v2435
    %v2440 = vsel %vm100, %v2438, 0.0
    %2441 = vadd.xlane.f32.xlu0 %v2440
    %v2442 = vpop.xlane.xlu0 %2441
    %v2443 = vsel %vm100, %v2439, 0.0
    %2444 = vadd.xlane.f32.xlu0 %v2443
    %v2445 = vpop.xlane.xlu0 %2444
    %v2446 = vmul.f32 %v2442, %v1142
    %v2447 = vmul.f32 %v2445, %v1142
    %v2448 = vmul.f32 %v2438, %v2438
    %v2449 = vmul.f32 %v2439, %v2439
    %v2450 = vsel %vm100, %v2448, 0.0
    %2451 = vadd.xlane.f32.xlu0 %v2450
    %v2452 = vpop.xlane.xlu0 %2451
    %v2453 = vsel %vm100, %v2449, 0.0
    %2454 = vadd.xlane.f32.xlu0 %v2453
    %v2455 = vpop.xlane.xlu0 %2454
    %v2456 = vmul.f32 %v2452, %v1142
    %v2457 = vmul.f32 %v2455, %v1142
    %v2458 = vmul.f32 %v2446, %v2446
    %v2459 = vmul.f32 %v2447, %v2447
    %v2460 = vsub.f32 %v2456, %v2458
    %v2461 = vsub.f32 %v2457, %v2459
    %v2462 = vsub.f32 %v2438, %v2446
    %v2463 = vsub.f32 %v2439, %v2447
    %v2464 = vadd.f32 %v2460, 1e-05
    %v2465 = vadd.f32 %v2461, 1e-05
    %v2466 = vrsqrt.pop %v2464
    %v2467 = vrsqrt.pop %v2465
    %v2468 = vmul.f32 %v2462, %v2466
    %v2469 = vmul.f32 %v2463, %v2467
    %v2470 = vlaneseq
    %v2471 = vshrl.u32 %v2470, 7
    %v2472 = vsub.s32 0, %v2471
    %v2473 = vrot.slane %v1362, %v2472
    %v2474 = vmul.f32 %v2468, %v2473
    %v2475 = vmul.f32 %v2469, %v2473
    %v2476 = vlaneseq
    %v2477 = vshrl.u32 %v2476, 7
    %v2478 = vsub.s32 0, %v2477
    %v2479 = vrot.slane %v1363, %v2478
    %v2480 = vadd.f32 %v2474, %v2479
    %v2481 = vadd.f32 %v2475, %v2479
    %v2482 = vpack.c.bf16 %v2481, %v2480
    %v2483 = vlaneseq
    %v2484 = vshrl.u32 %v2483, 7
    %v2485 = vsub.s32 0, %v2484
    %v2486 = vrot.slane %v1366, %v2485
    %v2491 = vunpack.c.l.b16 %v1379
    %v2492 = vunpack.c.l.b16 %v1380
    %v2493 = vunpack.c.l.b16 %v1381
    %v2494 = vunpack.c.l.b16 %v1382
    %v2495 = vpack.c.b16 %v2492, %v2491
    %v2496 = vpack.c.b16 %v2494, %v2493
    %v2500 = vsel %vm100, %v2482, 0
    %2502 = vmatprep.subr.bf16.mxu0 0
    %2503 = vmatpush1.bf16.msra.mxu0 %v2495
    %2504 = vmatprep.subr.bf16.mxu0 0
    %2505 = vmatpush1.bf16.msra.mxu0 %v2496
    %2506 = vmatprep.subr.bf16.mxu0 0
    %2507 = vmatpush1.bf16.msra.mxu0 0
    %2508 = vmatprep.subr.bf16.mxu0 0
    %2509 = vmatpush1.bf16.msra.mxu0 0
    %2510 = vmatprep.subr.bf16.mxu0 0
    %2511 = vmatpush1.bf16.msra.mxu0 0
    %2512 = vmatprep.subr.bf16.mxu0 0
    %2513 = vmatpush1.bf16.msra.mxu0 0
    %2514 = vmatprep.subr.bf16.mxu0 0
    %2515 = vmatpush1.bf16.msra.mxu0 0
    %2516 = vmatprep.subr.bf16.mxu0 0
    %2517 = vmatpush1.bf16.msra.mxu0 0
    %2518 = vmatprep.subr.bf16.mxu0 0
    %2519 = vmatpush1.bf16.msra.mxu0 0
    %2520 = vmatprep.subr.bf16.mxu0 0
    %2521 = vmatpush1.bf16.msra.mxu0 0
    %2522 = vmatprep.subr.bf16.mxu0 0
    %2523 = vmatpush1.bf16.msra.mxu0 0
    %2524 = vmatprep.subr.bf16.mxu0 0
    %2525 = vmatpush1.bf16.msra.mxu0 0
    %2526 = vmatprep.subr.bf16.mxu0 0
    %2527 = vmatpush1.bf16.msra.mxu0 0
    %2528 = vmatprep.subr.bf16.mxu0 0
    %2529 = vmatpush1.bf16.msra.mxu0 0
    %2530 = vmatprep.subr.bf16.mxu0 0
    %2531 = vmatpush1.bf16.msra.mxu0 0
    %2532 = vmatprep.subr.bf16.mxu0 0
    %2533 = vmatpush1.bf16.msra.mxu0 0
    %2534 = vmatprep.mubr.bf16.mxu0 0
    %2535 = vmatmul.mubr.bf16.gmra.mrb[0].mxu0 %v2500
    %v2536 = vpop.f32.mrb[0].mxu0
    %v2537 = vadd.f32 %v2486, %v2536
    %v2538 = vpop.f32.mrb[0].mxu0
    %v2539 = vpop.f32.mrb[0].mxu0
    %v2540 = vadd.f32 %v2486, %v2539
    %v2541 = vpop.f32.mrb[0].mxu0
    %2542 = vdwg.mxu0
    %v2543 = vmax.f32 %v2537, 0.0
    %v2544 = vmax.f32 %v2540, 0.0
    %v2545 = vpack.c.bf16 %v2544, %v2543
    %v2546 = vlaneseq
    %v2547 = vshrl.u32 %v2546, 7
    %v2548 = vsub.s32 0, %v2547
    %v2549 = vrot.slane %v1367, %v2548
    %v2558 = vunpack.c.l.b16 %v1384
    %v2559 = vunpack.c.l.b16 %v1385
    %v2560 = vunpack.c.l.b16 %v1386
    %v2561 = vunpack.c.l.b16 %v1387
    %v2562 = vunpack.c.l.b16 %v1388
    %v2563 = vunpack.c.l.b16 %v1389
    %v2564 = vunpack.c.l.b16 %v1390
    %v2565 = vunpack.c.l.b16 %v1391
    %v2566 = vpack.c.b16 %v2559, %v2558
    %v2567 = vpack.c.b16 %v2561, %v2560
    %v2568 = vpack.c.b16 %v2563, %v2562
    %v2569 = vpack.c.b16 %v2565, %v2564
    %v2575 = vsel %vm1271, %v2545, 0
    %2577 = vmatprep.subr.bf16.mxu0 0
    %2578 = vmatpush1.bf16.msra.mxu0 %v2566
    %2579 = vmatprep.subr.bf16.mxu0 0
    %2580 = vmatpush1.bf16.msra.mxu0 %v2567
    %2581 = vmatprep.subr.bf16.mxu0 0
    %2582 = vmatpush1.bf16.msra.mxu0 %v2568
    %2583 = vmatprep.subr.bf16.mxu0 0
    %2584 = vmatpush1.bf16.msra.mxu0 %v2569
    %2585 = vmatprep.subr.bf16.mxu0 0
    %2586 = vmatpush1.bf16.msra.mxu0 0
    %2587 = vmatprep.subr.bf16.mxu0 0
    %2588 = vmatpush1.bf16.msra.mxu0 0
    %2589 = vmatprep.subr.bf16.mxu0 0
    %2590 = vmatpush1.bf16.msra.mxu0 0
    %2591 = vmatprep.subr.bf16.mxu0 0
    %2592 = vmatpush1.bf16.msra.mxu0 0
    %2593 = vmatprep.subr.bf16.mxu0 0
    %2594 = vmatpush1.bf16.msra.mxu0 0
    %2595 = vmatprep.subr.bf16.mxu0 0
    %2596 = vmatpush1.bf16.msra.mxu0 0
    %2597 = vmatprep.subr.bf16.mxu0 0
    %2598 = vmatpush1.bf16.msra.mxu0 0
    %2599 = vmatprep.subr.bf16.mxu0 0
    %2600 = vmatpush1.bf16.msra.mxu0 0
    %2601 = vmatprep.subr.bf16.mxu0 0
    %2602 = vmatpush1.bf16.msra.mxu0 0
    %2603 = vmatprep.subr.bf16.mxu0 0
    %2604 = vmatpush1.bf16.msra.mxu0 0
    %2605 = vmatprep.subr.bf16.mxu0 0
    %2606 = vmatpush1.bf16.msra.mxu0 0
    %2607 = vmatprep.subr.bf16.mxu0 0
    %2608 = vmatpush1.bf16.msra.mxu0 0
    %2609 = vmatprep.mubr.bf16.mxu0 0
    %2610 = vmatmul.mubr.bf16.gmra.mrb[0].mxu0 %v2575
    %v2611 = vpop.f32.mrb[0].mxu0
    %v2612 = vadd.f32 %v2549, %v2611
    %v2613 = vpop.f32.mrb[0].mxu0
    %v2614 = vpop.f32.mrb[0].mxu0
    %v2615 = vadd.f32 %v2549, %v2614
    %v2616 = vpop.f32.mrb[0].mxu0
    %2617 = vdwg.mxu0
    %v2618 = vadd.f32 %v2480, %v2612
    %v2619 = vadd.f32 %v2481, %v2615
    %v2620 = vsel %vm100, %v2618, 0.0
    %2621 = vadd.xlane.f32.xlu0 %v2620
    %v2622 = vpop.xlane.xlu0 %2621
    %v2623 = vsel %vm100, %v2619, 0.0
    %2624 = vadd.xlane.f32.xlu0 %v2623
    %v2625 = vpop.xlane.xlu0 %2624
    %v2626 = vmul.f32 %v2622, %v1142
    %v2627 = vmul.f32 %v2625, %v1142
    %v2628 = vmul.f32 %v2618, %v2618
    %v2629 = vmul.f32 %v2619, %v2619
    %v2630 = vsel %vm100, %v2628, 0.0
    %2631 = vadd.xlane.f32.xlu0 %v2630
    %v2632 = vpop.xlane.xlu0 %2631
    %v2633 = vsel %vm100, %v2629, 0.0
    %2634 = vadd.xlane.f32.xlu0 %v2633
    %v2635 = vpop.xlane.xlu0 %2634
    %v2636 = vmul.f32 %v2632, %v1142
    %v2637 = vmul.f32 %v2635, %v1142
    %v2638 = vmul.f32 %v2626, %v2626
    %v2639 = vmul.f32 %v2627, %v2627
    %v2640 = vsub.f32 %v2636, %v2638
    %v2641 = vsub.f32 %v2637, %v2639
    %v2642 = vsub.f32 %v2618, %v2626
    %v2643 = vsub.f32 %v2619, %v2627
    %v2644 = vadd.f32 %v2640, 1e-05
    %v2645 = vadd.f32 %v2641, 1e-05
    %v2646 = vrsqrt.pop %v2644
    %v2647 = vrsqrt.pop %v2645
    %v2648 = vmul.f32 %v2642, %v2646
    %v2649 = vmul.f32 %v2643, %v2647
    %v2650 = vlaneseq
    %v2651 = vshrl.u32 %v2650, 7
    %v2652 = vsub.s32 0, %v2651
    %v2653 = vrot.slane %v1364, %v2652
    %v2654 = vmul.f32 %v2648, %v2653
    %v2655 = vmul.f32 %v2649, %v2653
    %v2656 = vlaneseq
    %v2657 = vshrl.u32 %v2656, 7
    %v2658 = vsub.s32 0, %v2657
    %v2659 = vrot.slane %v1365, %v2658
    %v2660 = vadd.f32 %v2654, %v2659
    %v2661 = vadd.f32 %v2655, %v2659
    %v2662 = vld [vmem:[#allocation5 + $0x10] sm:$0x1]
    %v2663 = vld [vmem:[#allocation5 + $0x11] sm:$0x1]
    %v2664 = vsel %vm100, %v2660, 0.0
    %2665 = vadd.xlane.f32.xlu0 %v2664
    %v2666 = vpop.xlane.xlu0 %2665
    %v2667 = vsel %vm100, %v2661, 0.0
    %2668 = vadd.xlane.f32.xlu0 %v2667
    %v2669 = vpop.xlane.xlu0 %2668
    %v2670 = vmul.f32 %v2666, %v1142
    %v2671 = vmul.f32 %v2669, %v1142
    %v2672 = vmul.f32 %v2660, %v2660
    %v2673 = vmul.f32 %v2661, %v2661
    %v2674 = vsel %vm100, %v2672, 0.0
    %2675 = vadd.xlane.f32.xlu0 %v2674
    %v2676 = vpop.xlane.xlu0 %2675
    %v2677 = vsel %vm100, %v2673, 0.0
    %2678 = vadd.xlane.f32.xlu0 %v2677
    %v2679 = vpop.xlane.xlu0 %2678
    %v2680 = vmul.f32 %v2676, %v1142
    %v2681 = vmul.f32 %v2679, %v1142
    %v2682 = vmul.f32 %v2670, %v2670
    %v2683 = vmul.f32 %v2671, %v2671
    %v2684 = vsub.f32 %v2680, %v2682
    %v2685 = vsub.f32 %v2681, %v2683
    %v2686 = vsub.f32 %v2660, %v2670
    %v2687 = vsub.f32 %v2661, %v2671
    %v2688 = vadd.f32 %v2684, 1e-05
    %v2689 = vadd.f32 %v2685, 1e-05
    %v2690 = vrsqrt.pop %v2688
    %v2691 = vrsqrt.pop %v2689
    %v2692 = vmul.f32 %v2686, %v2690
    %v2693 = vmul.f32 %v2687, %v2691
    %v2694 = vlaneseq
    %v2695 = vshrl.u32 %v2694, 7
    %v2696 = vsub.s32 0, %v2695
    %v2697 = vrot.slane %v2662, %v2696
    %v2698 = vmul.f32 %v2692, %v2697
    %v2699 = vmul.f32 %v2693, %v2697
    %v2700 = vlaneseq
    %v2701 = vshrl.u32 %v2700, 7
    %v2702 = vsub.s32 0, %v2701
    %v2703 = vrot.slane %v2663, %v2702
    %v2704 = vadd.f32 %v2698, %v2703
    %v2705 = vadd.f32 %v2699, %v2703
    %2706 = vst.msk [vmem:[#allocation7] sm:$0xff] %vm100, %v2704
    %2707 = vst.msk [vmem:[#allocation7 + $0x8] sm:$0xff] %vm100, %v2705
    // Predicated region
    $region34: #{tpu_custom_call.1} parent=1 // pred_check
      _
    $region35: #{tpu_custom_call.1} parent=1 // pred_check_branch
      %2709 = sbr.rel (0) target = $region37
    $region36: #{tpu_custom_call.1} parent=1 // pred_region
      %s2711 = ssub.s32 256, 256
      %2712 = vsyncadd [#allocation4], %s2711
      %s2713 = sshll.u32 [#allocation7], 4
      %s2714 = int_to_ptr.vmem [resolvable:$true] %s2713
      %2719 = dma.vmem_to_hbm [thread:$0]  %s2714, 256, %s6, [#allocation4], 128, 128, 8
    $region37: #{tpu_custom_call.1} parent=1 // pred_fallthru
      _
    // Predicated region
    $region38: #{tpu_custom_call.1} parent=1 // pred_check
      _
    $region39: #{tpu_custom_call.1} parent=1 // pred_check_branch
      %2721 = sbr.rel (0) target = $region41
    $region40: #{tpu_custom_call.1} parent=1 // pred_region
      %2722 = dma.done [#allocation4], 256
    $region41: #{tpu_custom_call.1} parent=1 // pred_fallthru
      _
    %2723 = vsyncpa [#allocation3], 1
    %2724 = vsyncpa [#allocation6], 1
    %2725 = vsyncpa [#allocation4], 1

</llo_original>
